<compile_context>
chip_gen: v7x
topology: tpu7x:2x2x1
jax: 0.10.0
libtpu: 0.0.40
codegen_flags: <defaults>
</compile_context>

<pallas_src>
import functools
import math

import jax
import jax.numpy as jnp
from jax.experimental import pallas as pl
from jax.experimental.pallas import tpu as pltpu

NUM_HEADS = 4


def _sab_block(x, w_qkv, b_qkv, w_o, b_o, bt, seq, num_heads):
    """Self-attention block (inferred lnn.SAB): fused QKV, per-head softmax,
    per-head output-projection accumulation, residual.

    x: [bt*seq, H]  rows batched across the batch tile.
    """
    hidden = x.shape[-1]
    dh = hidden // num_heads
    scale = 1.0 / math.sqrt(dh)

    # Single fused QKV projection: one MXU pass with N = 3H instead of three N=H.
    qkv = jnp.dot(x, w_qkv, preferred_element_type=jnp.float32) + b_qkv   # [bt*S, 3H]
    q = qkv[:, 0 * hidden:1 * hidden].reshape(bt, seq, hidden)
    k = qkv[:, 1 * hidden:2 * hidden].reshape(bt, seq, hidden)
    v = qkv[:, 2 * hidden:3 * hidden].reshape(bt, seq, hidden)

    # Residual + output bias hoisted outside the head loop (broadcast once).
    out = x + b_o                                                         # [bt*S, H]

    for h in range(num_heads):                    # static unroll over 4 heads
        sl = slice(h * dh, (h + 1) * dh)
        s = jnp.einsum('bsd,btd->bst', q[..., sl], k[..., sl],
                       preferred_element_type=jnp.float32) * scale
        m = jnp.max(s, axis=-1, keepdims=True)
        e = jnp.exp(s - m)
        denom = jnp.sum(e, axis=-1, keepdims=True)
        # Exact reciprocal kept so the 1e-4 f32 check is guaranteed.
        p = e * pl.reciprocal(denom, approx=False)
        o_h = jnp.einsum('bst,btd->bsd', p, v[..., sl],
                         preferred_element_type=jnp.float32)              # [bt,S,dh]
        # Project this head's slice of w_o and accumulate in registers:
        # no scratch slab, no store->load round trip, no concatenate.
        out = out + jnp.dot(o_h.reshape(bt * seq, dh), w_o[sl, :],
                            preferred_element_type=jnp.float32)
    return out


def affinity_mul_kernel(x_ref,
                        fc_w1_ref, fc_b1_ref, fc_w2_ref, fc_b2_ref,
                        sab1_wqkv_ref, sab1_bqkv_ref, sab1_wo_ref, sab1_bo_ref,
                        sab2_wqkv_ref, sab2_bqkv_ref, sab2_wo_ref, sab2_bo_ref,
                        qk_w_ref, qk_b_ref,
                        out_ref, *, bt, seq):
    x = x_ref[...]                                               # [bt*S, Din]

    # fc: Linear -> Tanh -> Linear  (M = bt*S rows per matmul)
    h1 = jnp.tanh(jnp.dot(x, fc_w1_ref[...], preferred_element_type=jnp.float32)
                  + fc_b1_ref[...])
    x1 = (jnp.dot(h1, fc_w2_ref[...], preferred_element_type=jnp.float32)
          + fc_b2_ref[...])                                      # [bt*S, H]

    # Two SAB (self-attention) blocks.
    x2 = _sab_block(x1, sab1_wqkv_ref[...], sab1_bqkv_ref[...],
                    sab1_wo_ref[...], sab1_bo_ref[...], bt, seq, NUM_HEADS)
    x2 = _sab_block(x2, sab2_wqkv_ref[...], sab2_bqkv_ref[...],
                    sab2_wo_ref[...], sab2_bo_ref[...], bt, seq, NUM_HEADS)

    # fc_q | fc_k fused into one matmul (N = 2H), then multiplicative compat.
    hidden = x2.shape[-1]
    qk = (jnp.dot(x2, qk_w_ref[...], preferred_element_type=jnp.float32)
          + qk_b_ref[...])                                       # [bt*S, 2H]
    q = qk[:, :hidden].reshape(bt, seq, hidden)
    k = qk[:, hidden:].reshape(bt, seq, hidden)
    e = jnp.einsum('bsd,btd->bst', q, k, preferred_element_type=jnp.float32)
    half_inv = 0.5 / math.sqrt(hidden)

    # Symmetrize with an XLU transpose of each [S, S] tile (no second MXU
    # matmul) and assemble the lane-packed [S, bt*S] slab in registers so the
    # writeback is a single full-block store.
    cols = []
    for b in range(bt):                           # static unroll over batch tile
        e_b = e[b]                                               # [S, S]
        cols.append(half_inv * (e_b + e_b.T))
    out_ref[...] = jnp.concatenate(cols, axis=-1)                # [S, bt*S]


def _pick_batch_tile(batch, seq):
    if batch <= 1:
        return max(batch, 1)
    # Target ~256 rows per grid step (fills one 2x256 MXU pass on v6e/v7x,
    # two 128-passes on v5e).  Grid steps are a sequential loop on v5e/v6e
    # (single TensorCore) with ~0.35us fixed overhead each, so only split the
    # grid when the batch is large enough that every step still hits the
    # target row count.
    target_rows = 256
    bt = min(batch, max(1, target_rows // max(seq, 1)))
    while batch % bt:
        bt -= 1
    return bt


def affinity_mul(x, p, batch_tile=None):
    B, S, Din = x.shape
    H = p["fc_w1"].shape[1]
    bt = batch_tile if batch_tile is not None else _pick_batch_tile(B, S)
    assert B % bt == 0
    steps = B // bt
    f32 = jnp.float32

    # Fuse the Q/K/V (and fc_q/fc_k) weight stacks along the output dim once,
    # wrapper-side, so each is a single wide matmul inside the kernel.
    def fuse_sab(w, b):
        w_qkv = jnp.concatenate([w[0], w[1], w[2]], axis=1).astype(f32)    # [H, 3H]
        b_qkv = jnp.concatenate([b[0], b[1], b[2]])[None, :].astype(f32)   # [1, 3H]
        return w_qkv, b_qkv, w[3].astype(f32), b[3][None, :].astype(f32)

    s1_wqkv, s1_bqkv, s1_wo, s1_bo = fuse_sab(p["sab1_w"], p["sab1_b"])
    s2_wqkv, s2_bqkv, s2_wo, s2_bo = fuse_sab(p["sab2_w"], p["sab2_b"])
    qk_w = jnp.concatenate([p["qk_w"][0], p["qk_w"][1]], axis=1).astype(f32)   # [H, 2H]
    qk_b = jnp.concatenate([p["qk_b"][0], p["qk_b"][1]])[None, :].astype(f32)  # [1, 2H]

    def full(shape):
        return pl.BlockSpec(shape, lambda i, _n=len(shape): (0,) * _n)

    grid_spec = pltpu.PrefetchScalarGridSpec(
        num_scalar_prefetch=0,
        grid=(steps,),
        in_specs=[
            pl.BlockSpec((bt * S, Din), lambda i: (i, 0)),      # flattened X tile
            full((Din, H)), full((1, H)),                       # fc layer 1
            full((H, H)), full((1, H)),                         # fc layer 2
            full((H, 3 * H)), full((1, 3 * H)),                 # SAB1 fused QKV
            full((H, H)), full((1, H)),                         # SAB1 output proj
            full((H, 3 * H)), full((1, 3 * H)),                 # SAB2 fused QKV
            full((H, H)), full((1, H)),                         # SAB2 output proj
            full((H, 2 * H)), full((1, 2 * H)),                 # fused fc_q | fc_k
        ],
        out_specs=pl.BlockSpec((S, bt * S), lambda i: (i, 0)),
    )

    kernel = functools.partial(affinity_mul_kernel, bt=bt, seq=S)

    packed = pl.pallas_call(
        kernel,
        out_shape=jax.ShapeDtypeStruct((steps * S, bt * S), jnp.float32),
        grid_spec=grid_spec,
        compiler_params=pltpu.CompilerParams(
            dimension_semantics=("parallel",)),
    )(x.reshape(B * S, Din).astype(f32),
      p["fc_w1"].astype(f32), p["fc_b1"].astype(f32),
      p["fc_w2"].astype(f32), p["fc_b2"].astype(f32),
      s1_wqkv, s1_bqkv, s1_wo, s1_bo,
      s2_wqkv, s2_bqkv, s2_wo, s2_bo,
      qk_w, qk_b)

    # Un-pack the lane-packed [steps*S, bt*S] slab back to [B, S, S].
    return (packed.reshape(steps, S, bt, S)
                  .transpose(0, 2, 1, 3)
                  .reshape(B, S, S))


def reference(x, p):
    """Pure-JAX reference mirroring the kernel semantics (unfused params)."""
    def mha(x, w, b):
        q = x @ w[0] + b[0]
        k = x @ w[1] + b[1]
        v = x @ w[2] + b[2]
        H = x.shape[-1]
        dh = H // NUM_HEADS
        heads = []
        for h in range(NUM_HEADS):
            qh = q[..., h * dh:(h + 1) * dh]
            kh = k[..., h * dh:(h + 1) * dh]
            vh = v[..., h * dh:(h + 1) * dh]
            s = jnp.einsum('bsd,btd->bst', qh, kh) / math.sqrt(dh)
            pmat = jax.nn.softmax(s, axis=-1)
            heads.append(jnp.einsum('bst,btd->bsd', pmat, vh))
        o = jnp.concatenate(heads, axis=-1) @ w[3] + b[3]
        return x + o

    h1 = jnp.tanh(x @ p["fc_w1"] + p["fc_b1"][0])
    x1 = h1 @ p["fc_w2"] + p["fc_b2"][0]
    x2 = mha(x1, p["sab1_w"], p["sab1_b"])
    x2 = mha(x2, p["sab2_w"], p["sab2_b"])
    q = x2 @ p["qk_w"][0] + p["qk_b"][0]
    k = x2 @ p["qk_w"][1] + p["qk_b"][1]
    e = jnp.einsum('bsd,btd->bst', q, k) / math.sqrt(q.shape[-1])
    return 0.5 * (e + jnp.swapaxes(e, -1, -2))


def init_params(key, input_size, hidden_size):
    ks = jax.random.split(key, 11)
    n = lambda k, s, scale: (scale * jax.random.normal(k, s)).astype(jnp.float32)
    H, Din = hidden_size, input_size
    return {
        "fc_w1": n(ks[0], (Din, H), 0.2),
        "fc_b1": n(ks[1], (1, H), 0.05),
        "fc_w2": n(ks[2], (H, H), 0.2),
        "fc_b2": n(ks[3], (1, H), 0.05),
        "sab1_w": n(ks[4], (4, H, H), 0.2),   # stacked [q, k, v, o]
        "sab1_b": n(ks[5], (4, H), 0.05),
        "sab2_w": n(ks[6], (4, H, H), 0.2),
        "sab2_b": n(ks[7], (4, H), 0.05),
        "qk_w": n(ks[8], (2, H, H), 0.2),     # stacked [fc_q, fc_k]
        "qk_b": n(ks[9], (2, H), 0.05),
    }


if __name__ == "__main__":
    B, S, Din, H = 2, 8, 16, 32
    key = jax.random.PRNGKey(0)
    kx, kp = jax.random.split(key)
    x = jax.random.normal(kx, (B, S, Din), dtype=jnp.float32)
    params = init_params(kp, Din, H)

    out = jax.block_until_ready(affinity_mul(x, params))
    ref = jax.block_until_ready(reference(x, params))

    assert out.shape == (B, S, S)
    assert bool(jnp.allclose(out, ref, atol=1e-4, rtol=1e-4)), "mismatch vs reference"
    print("KERNEL_OK")
</pallas_src>

<mosaic_0001>
module attributes {stable_mosaic.version = 11 : i64} {
  func.func @affinity_mul_kernel(%arg0: i32, %arg1: memref<16x16xf32, #tpu.memory_space<vmem>>, %arg2: memref<16x32xf32, #tpu.memory_space<vmem>>, %arg3: memref<1x32xf32, #tpu.memory_space<vmem>>, %arg4: memref<32x32xf32, #tpu.memory_space<vmem>>, %arg5: memref<1x32xf32, #tpu.memory_space<vmem>>, %arg6: memref<32x96xf32, #tpu.memory_space<vmem>>, %arg7: memref<1x96xf32, #tpu.memory_space<vmem>>, %arg8: memref<32x32xf32, #tpu.memory_space<vmem>>, %arg9: memref<1x32xf32, #tpu.memory_space<vmem>>, %arg10: memref<32x96xf32, #tpu.memory_space<vmem>>, %arg11: memref<1x96xf32, #tpu.memory_space<vmem>>, %arg12: memref<32x32xf32, #tpu.memory_space<vmem>>, %arg13: memref<1x32xf32, #tpu.memory_space<vmem>>, %arg14: memref<32x64xf32, #tpu.memory_space<vmem>>, %arg15: memref<1x64xf32, #tpu.memory_space<vmem>>, %arg16: memref<8x16xf32, #tpu.memory_space<vmem>>) attributes {dimension_semantics = [#tpu.dimension_semantics<parallel>], iteration_bounds = array<i64: 1>, scalar_prefetch = 0 : i64, scratch_operands = 0 : i64, tpu.core_type = #tpu.core_type<tc>, window_params = [{transform_indices = @transform_0, window_bounds = array<i64: 16, 16>}, {pipeline_mode = #tpu.pipeline_mode<synchronous>, transform_indices = @transform_1, window_bounds = array<i64: 16, 32>}, {pipeline_mode = #tpu.pipeline_mode<synchronous>, transform_indices = @transform_2, window_bounds = array<i64: 1, 32>}, {pipeline_mode = #tpu.pipeline_mode<synchronous>, transform_indices = @transform_3, window_bounds = array<i64: 32, 32>}, {pipeline_mode = #tpu.pipeline_mode<synchronous>, transform_indices = @transform_4, window_bounds = array<i64: 1, 32>}, {pipeline_mode = #tpu.pipeline_mode<synchronous>, transform_indices = @transform_5, window_bounds = array<i64: 32, 96>}, {pipeline_mode = #tpu.pipeline_mode<synchronous>, transform_indices = @transform_6, window_bounds = array<i64: 1, 96>}, {pipeline_mode = #tpu.pipeline_mode<synchronous>, transform_indices = @transform_7, window_bounds = array<i64: 32, 32>}, {pipeline_mode = #tpu.pipeline_mode<synchronous>, transform_indices = @transform_8, window_bounds = array<i64: 1, 32>}, {pipeline_mode = #tpu.pipeline_mode<synchronous>, transform_indices = @transform_9, window_bounds = array<i64: 32, 96>}, {pipeline_mode = #tpu.pipeline_mode<synchronous>, transform_indices = @transform_10, window_bounds = array<i64: 1, 96>}, {pipeline_mode = #tpu.pipeline_mode<synchronous>, transform_indices = @transform_11, window_bounds = array<i64: 32, 32>}, {pipeline_mode = #tpu.pipeline_mode<synchronous>, transform_indices = @transform_12, window_bounds = array<i64: 1, 32>}, {pipeline_mode = #tpu.pipeline_mode<synchronous>, transform_indices = @transform_13, window_bounds = array<i64: 32, 64>}, {pipeline_mode = #tpu.pipeline_mode<synchronous>, transform_indices = @transform_14, window_bounds = array<i64: 1, 64>}, {transform_indices = @transform_15, window_bounds = array<i64: 8, 16>}]} {
    %c0 = arith.constant 0 : index
    %c0_0 = arith.constant 0 : index
    %0 = vector.load %arg1[%c0, %c0_0] : memref<16x16xf32, #tpu.memory_space<vmem>>, vector<16x16xf32>
    %c0_1 = arith.constant 0 : index
    %c0_2 = arith.constant 0 : index
    %1 = vector.load %arg2[%c0_1, %c0_2] : memref<16x32xf32, #tpu.memory_space<vmem>>, vector<16x32xf32>
    %cst = arith.constant dense<0.000000e+00> : vector<16x32xf32>
    %2 = tpu.matmul %0, %1, %cst {dimension_numbers = #tpu.dot_dimension_numbers<[1], [0], [0], [1], [0, 0, 1, 1], [], []>} : vector<16x16xf32>, vector<16x32xf32>, vector<16x32xf32> -> vector<16x32xf32>
    %c0_3 = arith.constant 0 : index
    %c0_4 = arith.constant 0 : index
    %3 = vector.load %arg3[%c0_3, %c0_4] : memref<1x32xf32, #tpu.memory_space<vmem>>, vector<1x32xf32>
    %4 = vector.broadcast %3 : vector<1x32xf32> to vector<16x32xf32>
    %5 = arith.addf %2, %4 : vector<16x32xf32>
    %6 = math.tanh %5 : vector<16x32xf32>
    %c0_5 = arith.constant 0 : index
    %c0_6 = arith.constant 0 : index
    %7 = vector.load %arg4[%c0_5, %c0_6] : memref<32x32xf32, #tpu.memory_space<vmem>>, vector<32x32xf32>
    %cst_7 = arith.constant dense<0.000000e+00> : vector<16x32xf32>
    %8 = tpu.matmul %6, %7, %cst_7 {dimension_numbers = #tpu.dot_dimension_numbers<[1], [0], [0], [1], [0, 0, 1, 1], [], []>} : vector<16x32xf32>, vector<32x32xf32>, vector<16x32xf32> -> vector<16x32xf32>
    %c0_8 = arith.constant 0 : index
    %c0_9 = arith.constant 0 : index
    %9 = vector.load %arg5[%c0_8, %c0_9] : memref<1x32xf32, #tpu.memory_space<vmem>>, vector<1x32xf32>
    %10 = vector.broadcast %9 : vector<1x32xf32> to vector<16x32xf32>
    %11 = arith.addf %8, %10 : vector<16x32xf32>
    %c0_10 = arith.constant 0 : index
    %c0_11 = arith.constant 0 : index
    %12 = vector.load %arg6[%c0_10, %c0_11] : memref<32x96xf32, #tpu.memory_space<vmem>>, vector<32x96xf32>
    %c0_12 = arith.constant 0 : index
    %c0_13 = arith.constant 0 : index
    %13 = vector.load %arg7[%c0_12, %c0_13] : memref<1x96xf32, #tpu.memory_space<vmem>>, vector<1x96xf32>
    %c0_14 = arith.constant 0 : index
    %c0_15 = arith.constant 0 : index
    %14 = vector.load %arg8[%c0_14, %c0_15] : memref<32x32xf32, #tpu.memory_space<vmem>>, vector<32x32xf32>
    %c0_16 = arith.constant 0 : index
    %c0_17 = arith.constant 0 : index
    %15 = vector.load %arg9[%c0_16, %c0_17] : memref<1x32xf32, #tpu.memory_space<vmem>>, vector<1x32xf32>
    %cst_18 = arith.constant dense<0.000000e+00> : vector<16x96xf32>
    %16 = tpu.matmul %11, %12, %cst_18 {dimension_numbers = #tpu.dot_dimension_numbers<[1], [0], [0], [1], [0, 0, 1, 1], [], []>} : vector<16x32xf32>, vector<32x96xf32>, vector<16x96xf32> -> vector<16x96xf32>
    %17 = vector.broadcast %13 : vector<1x96xf32> to vector<16x96xf32>
    %18 = arith.addf %16, %17 : vector<16x96xf32>
    %19 = vector.extract_strided_slice %18 {offsets = [0, 0], sizes = [16, 32], strides = [1, 1]} : vector<16x96xf32> to vector<16x32xf32>
    %20 = vector.shape_cast %19 : vector<16x32xf32> to vector<2x8x32xf32>
    %21 = vector.extract_strided_slice %18 {offsets = [0, 32], sizes = [16, 32], strides = [1, 1]} : vector<16x96xf32> to vector<16x32xf32>
    %22 = vector.shape_cast %21 : vector<16x32xf32> to vector<2x8x32xf32>
    %23 = vector.extract_strided_slice %18 {offsets = [0, 64], sizes = [16, 32], strides = [1, 1]} : vector<16x96xf32> to vector<16x32xf32>
    %24 = vector.shape_cast %23 : vector<16x32xf32> to vector<2x8x32xf32>
    %25 = vector.broadcast %15 : vector<1x32xf32> to vector<16x32xf32>
    %26 = arith.addf %11, %25 : vector<16x32xf32>
    %27 = vector.extract_strided_slice %20 {offsets = [0, 0, 0], sizes = [2, 8, 8], strides = [1, 1, 1]} : vector<2x8x32xf32> to vector<2x8x8xf32>
    %28 = vector.extract_strided_slice %22 {offsets = [0, 0, 0], sizes = [2, 8, 8], strides = [1, 1, 1]} : vector<2x8x32xf32> to vector<2x8x8xf32>
    "tpu.trace_start"() <{level = 10 : i32, message = "bsd,btd->bst"}> : () -> ()
    %cst_19 = arith.constant dense<0.000000e+00> : vector<2x8x8xf32>
    %29 = tpu.matmul %27, %28, %cst_19 {dimension_numbers = #tpu.dot_dimension_numbers<[2], [2], [1], [1], [0, 0, 0, 1, 1, 1], [0], [0]>} : vector<2x8x8xf32>, vector<2x8x8xf32>, vector<2x8x8xf32> -> vector<2x8x8xf32>
    "tpu.trace_stop"() : () -> ()
    %cst_20 = arith.constant 0.353553385 : f32
    %30 = vector.broadcast %cst_20 : f32 to vector<2x8x8xf32>
    %31 = arith.mulf %29, %30 : vector<2x8x8xf32>
    %cst_21 = arith.constant dense<0xFF800000> : vector<2x8xf32>
    %32 = vector.multi_reduction <maximumf>, %31, %cst_21 [2] : vector<2x8x8xf32> to vector<2x8xf32>
    %33 = vector.shape_cast %32 : vector<2x8xf32> to vector<2x8x1xf32>
    %34 = vector.broadcast %33 : vector<2x8x1xf32> to vector<2x8x8xf32>
    %35 = arith.subf %31, %34 : vector<2x8x8xf32>
    %36 = math.exp %35 : vector<2x8x8xf32>
    %cst_22 = arith.constant dense<0.000000e+00> : vector<2x8xf32>
    %37 = vector.multi_reduction <add>, %36, %cst_22 [2] : vector<2x8x8xf32> to vector<2x8xf32>
    %38 = vector.shape_cast %37 : vector<2x8xf32> to vector<2x8x1xf32>
    %39 = tpu.reciprocal %38 : vector<2x8x1xf32> -> vector<2x8x1xf32>
    %40 = vector.broadcast %39 : vector<2x8x1xf32> to vector<2x8x8xf32>
    %41 = arith.mulf %36, %40 : vector<2x8x8xf32>
    %42 = vector.extract_strided_slice %24 {offsets = [0, 0, 0], sizes = [2, 8, 8], strides = [1, 1, 1]} : vector<2x8x32xf32> to vector<2x8x8xf32>
    "tpu.trace_start"() <{level = 10 : i32, message = "bst,btd->bsd"}> : () -> ()
    %cst_23 = arith.constant dense<0.000000e+00> : vector<2x8x8xf32>
    %43 = tpu.matmul %41, %42, %cst_23 {dimension_numbers = #tpu.dot_dimension_numbers<[2], [1], [1], [2], [0, 0, 0, 1, 1, 2], [0], [0]>} : vector<2x8x8xf32>, vector<2x8x8xf32>, vector<2x8x8xf32> -> vector<2x8x8xf32>
    "tpu.trace_stop"() : () -> ()
    %44 = vector.shape_cast %43 : vector<2x8x8xf32> to vector<16x8xf32>
    %45 = vector.extract_strided_slice %14 {offsets = [0, 0], sizes = [8, 32], strides = [1, 1]} : vector<32x32xf32> to vector<8x32xf32>
    %cst_24 = arith.constant dense<0.000000e+00> : vector<16x32xf32>
    %46 = tpu.matmul %44, %45, %cst_24 {dimension_numbers = #tpu.dot_dimension_numbers<[1], [0], [0], [1], [0, 0, 1, 1], [], []>} : vector<16x8xf32>, vector<8x32xf32>, vector<16x32xf32> -> vector<16x32xf32>
    %47 = arith.addf %26, %46 : vector<16x32xf32>
    %48 = vector.extract_strided_slice %20 {offsets = [0, 0, 8], sizes = [2, 8, 8], strides = [1, 1, 1]} : vector<2x8x32xf32> to vector<2x8x8xf32>
    %49 = vector.extract_strided_slice %22 {offsets = [0, 0, 8], sizes = [2, 8, 8], strides = [1, 1, 1]} : vector<2x8x32xf32> to vector<2x8x8xf32>
    "tpu.trace_start"() <{level = 10 : i32, message = "bsd,btd->bst"}> : () -> ()
    %cst_25 = arith.constant dense<0.000000e+00> : vector<2x8x8xf32>
    %50 = tpu.matmul %48, %49, %cst_25 {dimension_numbers = #tpu.dot_dimension_numbers<[2], [2], [1], [1], [0, 0, 0, 1, 1, 1], [0], [0]>} : vector<2x8x8xf32>, vector<2x8x8xf32>, vector<2x8x8xf32> -> vector<2x8x8xf32>
    "tpu.trace_stop"() : () -> ()
    %cst_26 = arith.constant 0.353553385 : f32
    %51 = vector.broadcast %cst_26 : f32 to vector<2x8x8xf32>
    %52 = arith.mulf %50, %51 : vector<2x8x8xf32>
    %cst_27 = arith.constant dense<0xFF800000> : vector<2x8xf32>
    %53 = vector.multi_reduction <maximumf>, %52, %cst_27 [2] : vector<2x8x8xf32> to vector<2x8xf32>
    %54 = vector.shape_cast %53 : vector<2x8xf32> to vector<2x8x1xf32>
    %55 = vector.broadcast %54 : vector<2x8x1xf32> to vector<2x8x8xf32>
    %56 = arith.subf %52, %55 : vector<2x8x8xf32>
    %57 = math.exp %56 : vector<2x8x8xf32>
    %cst_28 = arith.constant dense<0.000000e+00> : vector<2x8xf32>
    %58 = vector.multi_reduction <add>, %57, %cst_28 [2] : vector<2x8x8xf32> to vector<2x8xf32>
    %59 = vector.shape_cast %58 : vector<2x8xf32> to vector<2x8x1xf32>
    %60 = tpu.reciprocal %59 : vector<2x8x1xf32> -> vector<2x8x1xf32>
    %61 = vector.broadcast %60 : vector<2x8x1xf32> to vector<2x8x8xf32>
    %62 = arith.mulf %57, %61 : vector<2x8x8xf32>
    %63 = vector.extract_strided_slice %24 {offsets = [0, 0, 8], sizes = [2, 8, 8], strides = [1, 1, 1]} : vector<2x8x32xf32> to vector<2x8x8xf32>
    "tpu.trace_start"() <{level = 10 : i32, message = "bst,btd->bsd"}> : () -> ()
    %cst_29 = arith.constant dense<0.000000e+00> : vector<2x8x8xf32>
    %64 = tpu.matmul %62, %63, %cst_29 {dimension_numbers = #tpu.dot_dimension_numbers<[2], [1], [1], [2], [0, 0, 0, 1, 1, 2], [0], [0]>} : vector<2x8x8xf32>, vector<2x8x8xf32>, vector<2x8x8xf32> -> vector<2x8x8xf32>
    "tpu.trace_stop"() : () -> ()
    %65 = vector.shape_cast %64 : vector<2x8x8xf32> to vector<16x8xf32>
    %66 = vector.extract_strided_slice %14 {offsets = [8, 0], sizes = [8, 32], strides = [1, 1]} : vector<32x32xf32> to vector<8x32xf32>
    %cst_30 = arith.constant dense<0.000000e+00> : vector<16x32xf32>
    %67 = tpu.matmul %65, %66, %cst_30 {dimension_numbers = #tpu.dot_dimension_numbers<[1], [0], [0], [1], [0, 0, 1, 1], [], []>} : vector<16x8xf32>, vector<8x32xf32>, vector<16x32xf32> -> vector<16x32xf32>
    %68 = arith.addf %47, %67 : vector<16x32xf32>
    %69 = vector.extract_strided_slice %20 {offsets = [0, 0, 16], sizes = [2, 8, 8], strides = [1, 1, 1]} : vector<2x8x32xf32> to vector<2x8x8xf32>
    %70 = vector.extract_strided_slice %22 {offsets = [0, 0, 16], sizes = [2, 8, 8], strides = [1, 1, 1]} : vector<2x8x32xf32> to vector<2x8x8xf32>
    "tpu.trace_start"() <{level = 10 : i32, message = "bsd,btd->bst"}> : () -> ()
    %cst_31 = arith.constant dense<0.000000e+00> : vector<2x8x8xf32>
    %71 = tpu.matmul %69, %70, %cst_31 {dimension_numbers = #tpu.dot_dimension_numbers<[2], [2], [1], [1], [0, 0, 0, 1, 1, 1], [0], [0]>} : vector<2x8x8xf32>, vector<2x8x8xf32>, vector<2x8x8xf32> -> vector<2x8x8xf32>
    "tpu.trace_stop"() : () -> ()
    %cst_32 = arith.constant 0.353553385 : f32
    %72 = vector.broadcast %cst_32 : f32 to vector<2x8x8xf32>
    %73 = arith.mulf %71, %72 : vector<2x8x8xf32>
    %cst_33 = arith.constant dense<0xFF800000> : vector<2x8xf32>
    %74 = vector.multi_reduction <maximumf>, %73, %cst_33 [2] : vector<2x8x8xf32> to vector<2x8xf32>
    %75 = vector.shape_cast %74 : vector<2x8xf32> to vector<2x8x1xf32>
    %76 = vector.broadcast %75 : vector<2x8x1xf32> to vector<2x8x8xf32>
    %77 = arith.subf %73, %76 : vector<2x8x8xf32>
    %78 = math.exp %77 : vector<2x8x8xf32>
    %cst_34 = arith.constant dense<0.000000e+00> : vector<2x8xf32>
    %79 = vector.multi_reduction <add>, %78, %cst_34 [2] : vector<2x8x8xf32> to vector<2x8xf32>
    %80 = vector.shape_cast %79 : vector<2x8xf32> to vector<2x8x1xf32>
    %81 = tpu.reciprocal %80 : vector<2x8x1xf32> -> vector<2x8x1xf32>
    %82 = vector.broadcast %81 : vector<2x8x1xf32> to vector<2x8x8xf32>
    %83 = arith.mulf %78, %82 : vector<2x8x8xf32>
    %84 = vector.extract_strided_slice %24 {offsets = [0, 0, 16], sizes = [2, 8, 8], strides = [1, 1, 1]} : vector<2x8x32xf32> to vector<2x8x8xf32>
    "tpu.trace_start"() <{level = 10 : i32, message = "bst,btd->bsd"}> : () -> ()
    %cst_35 = arith.constant dense<0.000000e+00> : vector<2x8x8xf32>
    %85 = tpu.matmul %83, %84, %cst_35 {dimension_numbers = #tpu.dot_dimension_numbers<[2], [1], [1], [2], [0, 0, 0, 1, 1, 2], [0], [0]>} : vector<2x8x8xf32>, vector<2x8x8xf32>, vector<2x8x8xf32> -> vector<2x8x8xf32>
    "tpu.trace_stop"() : () -> ()
    %86 = vector.shape_cast %85 : vector<2x8x8xf32> to vector<16x8xf32>
    %87 = vector.extract_strided_slice %14 {offsets = [16, 0], sizes = [8, 32], strides = [1, 1]} : vector<32x32xf32> to vector<8x32xf32>
    %cst_36 = arith.constant dense<0.000000e+00> : vector<16x32xf32>
    %88 = tpu.matmul %86, %87, %cst_36 {dimension_numbers = #tpu.dot_dimension_numbers<[1], [0], [0], [1], [0, 0, 1, 1], [], []>} : vector<16x8xf32>, vector<8x32xf32>, vector<16x32xf32> -> vector<16x32xf32>
    %89 = arith.addf %68, %88 : vector<16x32xf32>
    %90 = vector.extract_strided_slice %20 {offsets = [0, 0, 24], sizes = [2, 8, 8], strides = [1, 1, 1]} : vector<2x8x32xf32> to vector<2x8x8xf32>
    %91 = vector.extract_strided_slice %22 {offsets = [0, 0, 24], sizes = [2, 8, 8], strides = [1, 1, 1]} : vector<2x8x32xf32> to vector<2x8x8xf32>
    "tpu.trace_start"() <{level = 10 : i32, message = "bsd,btd->bst"}> : () -> ()
    %cst_37 = arith.constant dense<0.000000e+00> : vector<2x8x8xf32>
    %92 = tpu.matmul %90, %91, %cst_37 {dimension_numbers = #tpu.dot_dimension_numbers<[2], [2], [1], [1], [0, 0, 0, 1, 1, 1], [0], [0]>} : vector<2x8x8xf32>, vector<2x8x8xf32>, vector<2x8x8xf32> -> vector<2x8x8xf32>
    "tpu.trace_stop"() : () -> ()
    %cst_38 = arith.constant 0.353553385 : f32
    %93 = vector.broadcast %cst_38 : f32 to vector<2x8x8xf32>
    %94 = arith.mulf %92, %93 : vector<2x8x8xf32>
    %cst_39 = arith.constant dense<0xFF800000> : vector<2x8xf32>
    %95 = vector.multi_reduction <maximumf>, %94, %cst_39 [2] : vector<2x8x8xf32> to vector<2x8xf32>
    %96 = vector.shape_cast %95 : vector<2x8xf32> to vector<2x8x1xf32>
    %97 = vector.broadcast %96 : vector<2x8x1xf32> to vector<2x8x8xf32>
    %98 = arith.subf %94, %97 : vector<2x8x8xf32>
    %99 = math.exp %98 : vector<2x8x8xf32>
    %cst_40 = arith.constant dense<0.000000e+00> : vector<2x8xf32>
    %100 = vector.multi_reduction <add>, %99, %cst_40 [2] : vector<2x8x8xf32> to vector<2x8xf32>
    %101 = vector.shape_cast %100 : vector<2x8xf32> to vector<2x8x1xf32>
    %102 = tpu.reciprocal %101 : vector<2x8x1xf32> -> vector<2x8x1xf32>
    %103 = vector.broadcast %102 : vector<2x8x1xf32> to vector<2x8x8xf32>
    %104 = arith.mulf %99, %103 : vector<2x8x8xf32>
    %105 = vector.extract_strided_slice %24 {offsets = [0, 0, 24], sizes = [2, 8, 8], strides = [1, 1, 1]} : vector<2x8x32xf32> to vector<2x8x8xf32>
    "tpu.trace_start"() <{level = 10 : i32, message = "bst,btd->bsd"}> : () -> ()
    %cst_41 = arith.constant dense<0.000000e+00> : vector<2x8x8xf32>
    %106 = tpu.matmul %104, %105, %cst_41 {dimension_numbers = #tpu.dot_dimension_numbers<[2], [1], [1], [2], [0, 0, 0, 1, 1, 2], [0], [0]>} : vector<2x8x8xf32>, vector<2x8x8xf32>, vector<2x8x8xf32> -> vector<2x8x8xf32>
    "tpu.trace_stop"() : () -> ()
    %107 = vector.shape_cast %106 : vector<2x8x8xf32> to vector<16x8xf32>
    %108 = vector.extract_strided_slice %14 {offsets = [24, 0], sizes = [8, 32], strides = [1, 1]} : vector<32x32xf32> to vector<8x32xf32>
    %cst_42 = arith.constant dense<0.000000e+00> : vector<16x32xf32>
    %109 = tpu.matmul %107, %108, %cst_42 {dimension_numbers = #tpu.dot_dimension_numbers<[1], [0], [0], [1], [0, 0, 1, 1], [], []>} : vector<16x8xf32>, vector<8x32xf32>, vector<16x32xf32> -> vector<16x32xf32>
    %110 = arith.addf %89, %109 : vector<16x32xf32>
    %c0_43 = arith.constant 0 : index
    %c0_44 = arith.constant 0 : index
    %111 = vector.load %arg10[%c0_43, %c0_44] : memref<32x96xf32, #tpu.memory_space<vmem>>, vector<32x96xf32>
    %c0_45 = arith.constant 0 : index
    %c0_46 = arith.constant 0 : index
    %112 = vector.load %arg11[%c0_45, %c0_46] : memref<1x96xf32, #tpu.memory_space<vmem>>, vector<1x96xf32>
    %c0_47 = arith.constant 0 : index
    %c0_48 = arith.constant 0 : index
    %113 = vector.load %arg12[%c0_47, %c0_48] : memref<32x32xf32, #tpu.memory_space<vmem>>, vector<32x32xf32>
    %c0_49 = arith.constant 0 : index
    %c0_50 = arith.constant 0 : index
    %114 = vector.load %arg13[%c0_49, %c0_50] : memref<1x32xf32, #tpu.memory_space<vmem>>, vector<1x32xf32>
    %cst_51 = arith.constant dense<0.000000e+00> : vector<16x96xf32>
    %115 = tpu.matmul %110, %111, %cst_51 {dimension_numbers = #tpu.dot_dimension_numbers<[1], [0], [0], [1], [0, 0, 1, 1], [], []>} : vector<16x32xf32>, vector<32x96xf32>, vector<16x96xf32> -> vector<16x96xf32>
    %116 = vector.broadcast %112 : vector<1x96xf32> to vector<16x96xf32>
    %117 = arith.addf %115, %116 : vector<16x96xf32>
    %118 = vector.extract_strided_slice %117 {offsets = [0, 0], sizes = [16, 32], strides = [1, 1]} : vector<16x96xf32> to vector<16x32xf32>
    %119 = vector.shape_cast %118 : vector<16x32xf32> to vector<2x8x32xf32>
    %120 = vector.extract_strided_slice %117 {offsets = [0, 32], sizes = [16, 32], strides = [1, 1]} : vector<16x96xf32> to vector<16x32xf32>
    %121 = vector.shape_cast %120 : vector<16x32xf32> to vector<2x8x32xf32>
    %122 = vector.extract_strided_slice %117 {offsets = [0, 64], sizes = [16, 32], strides = [1, 1]} : vector<16x96xf32> to vector<16x32xf32>
    %123 = vector.shape_cast %122 : vector<16x32xf32> to vector<2x8x32xf32>
    %124 = vector.broadcast %114 : vector<1x32xf32> to vector<16x32xf32>
    %125 = arith.addf %110, %124 : vector<16x32xf32>
    %126 = vector.extract_strided_slice %119 {offsets = [0, 0, 0], sizes = [2, 8, 8], strides = [1, 1, 1]} : vector<2x8x32xf32> to vector<2x8x8xf32>
    %127 = vector.extract_strided_slice %121 {offsets = [0, 0, 0], sizes = [2, 8, 8], strides = [1, 1, 1]} : vector<2x8x32xf32> to vector<2x8x8xf32>
    "tpu.trace_start"() <{level = 10 : i32, message = "bsd,btd->bst"}> : () -> ()
    %cst_52 = arith.constant dense<0.000000e+00> : vector<2x8x8xf32>
    %128 = tpu.matmul %126, %127, %cst_52 {dimension_numbers = #tpu.dot_dimension_numbers<[2], [2], [1], [1], [0, 0, 0, 1, 1, 1], [0], [0]>} : vector<2x8x8xf32>, vector<2x8x8xf32>, vector<2x8x8xf32> -> vector<2x8x8xf32>
    "tpu.trace_stop"() : () -> ()
    %cst_53 = arith.constant 0.353553385 : f32
    %129 = vector.broadcast %cst_53 : f32 to vector<2x8x8xf32>
    %130 = arith.mulf %128, %129 : vector<2x8x8xf32>
    %cst_54 = arith.constant dense<0xFF800000> : vector<2x8xf32>
    %131 = vector.multi_reduction <maximumf>, %130, %cst_54 [2] : vector<2x8x8xf32> to vector<2x8xf32>
    %132 = vector.shape_cast %131 : vector<2x8xf32> to vector<2x8x1xf32>
    %133 = vector.broadcast %132 : vector<2x8x1xf32> to vector<2x8x8xf32>
    %134 = arith.subf %130, %133 : vector<2x8x8xf32>
    %135 = math.exp %134 : vector<2x8x8xf32>
    %cst_55 = arith.constant dense<0.000000e+00> : vector<2x8xf32>
    %136 = vector.multi_reduction <add>, %135, %cst_55 [2] : vector<2x8x8xf32> to vector<2x8xf32>
    %137 = vector.shape_cast %136 : vector<2x8xf32> to vector<2x8x1xf32>
    %138 = tpu.reciprocal %137 : vector<2x8x1xf32> -> vector<2x8x1xf32>
    %139 = vector.broadcast %138 : vector<2x8x1xf32> to vector<2x8x8xf32>
    %140 = arith.mulf %135, %139 : vector<2x8x8xf32>
    %141 = vector.extract_strided_slice %123 {offsets = [0, 0, 0], sizes = [2, 8, 8], strides = [1, 1, 1]} : vector<2x8x32xf32> to vector<2x8x8xf32>
    "tpu.trace_start"() <{level = 10 : i32, message = "bst,btd->bsd"}> : () -> ()
    %cst_56 = arith.constant dense<0.000000e+00> : vector<2x8x8xf32>
    %142 = tpu.matmul %140, %141, %cst_56 {dimension_numbers = #tpu.dot_dimension_numbers<[2], [1], [1], [2], [0, 0, 0, 1, 1, 2], [0], [0]>} : vector<2x8x8xf32>, vector<2x8x8xf32>, vector<2x8x8xf32> -> vector<2x8x8xf32>
    "tpu.trace_stop"() : () -> ()
    %143 = vector.shape_cast %142 : vector<2x8x8xf32> to vector<16x8xf32>
    %144 = vector.extract_strided_slice %113 {offsets = [0, 0], sizes = [8, 32], strides = [1, 1]} : vector<32x32xf32> to vector<8x32xf32>
    %cst_57 = arith.constant dense<0.000000e+00> : vector<16x32xf32>
    %145 = tpu.matmul %143, %144, %cst_57 {dimension_numbers = #tpu.dot_dimension_numbers<[1], [0], [0], [1], [0, 0, 1, 1], [], []>} : vector<16x8xf32>, vector<8x32xf32>, vector<16x32xf32> -> vector<16x32xf32>
    %146 = arith.addf %125, %145 : vector<16x32xf32>
    %147 = vector.extract_strided_slice %119 {offsets = [0, 0, 8], sizes = [2, 8, 8], strides = [1, 1, 1]} : vector<2x8x32xf32> to vector<2x8x8xf32>
    %148 = vector.extract_strided_slice %121 {offsets = [0, 0, 8], sizes = [2, 8, 8], strides = [1, 1, 1]} : vector<2x8x32xf32> to vector<2x8x8xf32>
    "tpu.trace_start"() <{level = 10 : i32, message = "bsd,btd->bst"}> : () -> ()
    %cst_58 = arith.constant dense<0.000000e+00> : vector<2x8x8xf32>
    %149 = tpu.matmul %147, %148, %cst_58 {dimension_numbers = #tpu.dot_dimension_numbers<[2], [2], [1], [1], [0, 0, 0, 1, 1, 1], [0], [0]>} : vector<2x8x8xf32>, vector<2x8x8xf32>, vector<2x8x8xf32> -> vector<2x8x8xf32>
    "tpu.trace_stop"() : () -> ()
    %cst_59 = arith.constant 0.353553385 : f32
    %150 = vector.broadcast %cst_59 : f32 to vector<2x8x8xf32>
    %151 = arith.mulf %149, %150 : vector<2x8x8xf32>
    %cst_60 = arith.constant dense<0xFF800000> : vector<2x8xf32>
    %152 = vector.multi_reduction <maximumf>, %151, %cst_60 [2] : vector<2x8x8xf32> to vector<2x8xf32>
    %153 = vector.shape_cast %152 : vector<2x8xf32> to vector<2x8x1xf32>
    %154 = vector.broadcast %153 : vector<2x8x1xf32> to vector<2x8x8xf32>
    %155 = arith.subf %151, %154 : vector<2x8x8xf32>
    %156 = math.exp %155 : vector<2x8x8xf32>
    %cst_61 = arith.constant dense<0.000000e+00> : vector<2x8xf32>
    %157 = vector.multi_reduction <add>, %156, %cst_61 [2] : vector<2x8x8xf32> to vector<2x8xf32>
    %158 = vector.shape_cast %157 : vector<2x8xf32> to vector<2x8x1xf32>
    %159 = tpu.reciprocal %158 : vector<2x8x1xf32> -> vector<2x8x1xf32>
    %160 = vector.broadcast %159 : vector<2x8x1xf32> to vector<2x8x8xf32>
    %161 = arith.mulf %156, %160 : vector<2x8x8xf32>
    %162 = vector.extract_strided_slice %123 {offsets = [0, 0, 8], sizes = [2, 8, 8], strides = [1, 1, 1]} : vector<2x8x32xf32> to vector<2x8x8xf32>
    "tpu.trace_start"() <{level = 10 : i32, message = "bst,btd->bsd"}> : () -> ()
    %cst_62 = arith.constant dense<0.000000e+00> : vector<2x8x8xf32>
    %163 = tpu.matmul %161, %162, %cst_62 {dimension_numbers = #tpu.dot_dimension_numbers<[2], [1], [1], [2], [0, 0, 0, 1, 1, 2], [0], [0]>} : vector<2x8x8xf32>, vector<2x8x8xf32>, vector<2x8x8xf32> -> vector<2x8x8xf32>
    "tpu.trace_stop"() : () -> ()
    %164 = vector.shape_cast %163 : vector<2x8x8xf32> to vector<16x8xf32>
    %165 = vector.extract_strided_slice %113 {offsets = [8, 0], sizes = [8, 32], strides = [1, 1]} : vector<32x32xf32> to vector<8x32xf32>
    %cst_63 = arith.constant dense<0.000000e+00> : vector<16x32xf32>
    %166 = tpu.matmul %164, %165, %cst_63 {dimension_numbers = #tpu.dot_dimension_numbers<[1], [0], [0], [1], [0, 0, 1, 1], [], []>} : vector<16x8xf32>, vector<8x32xf32>, vector<16x32xf32> -> vector<16x32xf32>
    %167 = arith.addf %146, %166 : vector<16x32xf32>
    %168 = vector.extract_strided_slice %119 {offsets = [0, 0, 16], sizes = [2, 8, 8], strides = [1, 1, 1]} : vector<2x8x32xf32> to vector<2x8x8xf32>
    %169 = vector.extract_strided_slice %121 {offsets = [0, 0, 16], sizes = [2, 8, 8], strides = [1, 1, 1]} : vector<2x8x32xf32> to vector<2x8x8xf32>
    "tpu.trace_start"() <{level = 10 : i32, message = "bsd,btd->bst"}> : () -> ()
    %cst_64 = arith.constant dense<0.000000e+00> : vector<2x8x8xf32>
    %170 = tpu.matmul %168, %169, %cst_64 {dimension_numbers = #tpu.dot_dimension_numbers<[2], [2], [1], [1], [0, 0, 0, 1, 1, 1], [0], [0]>} : vector<2x8x8xf32>, vector<2x8x8xf32>, vector<2x8x8xf32> -> vector<2x8x8xf32>
    "tpu.trace_stop"() : () -> ()
    %cst_65 = arith.constant 0.353553385 : f32
    %171 = vector.broadcast %cst_65 : f32 to vector<2x8x8xf32>
    %172 = arith.mulf %170, %171 : vector<2x8x8xf32>
    %cst_66 = arith.constant dense<0xFF800000> : vector<2x8xf32>
    %173 = vector.multi_reduction <maximumf>, %172, %cst_66 [2] : vector<2x8x8xf32> to vector<2x8xf32>
    %174 = vector.shape_cast %173 : vector<2x8xf32> to vector<2x8x1xf32>
    %175 = vector.broadcast %174 : vector<2x8x1xf32> to vector<2x8x8xf32>
    %176 = arith.subf %172, %175 : vector<2x8x8xf32>
    %177 = math.exp %176 : vector<2x8x8xf32>
    %cst_67 = arith.constant dense<0.000000e+00> : vector<2x8xf32>
    %178 = vector.multi_reduction <add>, %177, %cst_67 [2] : vector<2x8x8xf32> to vector<2x8xf32>
    %179 = vector.shape_cast %178 : vector<2x8xf32> to vector<2x8x1xf32>
    %180 = tpu.reciprocal %179 : vector<2x8x1xf32> -> vector<2x8x1xf32>
    %181 = vector.broadcast %180 : vector<2x8x1xf32> to vector<2x8x8xf32>
    %182 = arith.mulf %177, %181 : vector<2x8x8xf32>
    %183 = vector.extract_strided_slice %123 {offsets = [0, 0, 16], sizes = [2, 8, 8], strides = [1, 1, 1]} : vector<2x8x32xf32> to vector<2x8x8xf32>
    "tpu.trace_start"() <{level = 10 : i32, message = "bst,btd->bsd"}> : () -> ()
    %cst_68 = arith.constant dense<0.000000e+00> : vector<2x8x8xf32>
    %184 = tpu.matmul %182, %183, %cst_68 {dimension_numbers = #tpu.dot_dimension_numbers<[2], [1], [1], [2], [0, 0, 0, 1, 1, 2], [0], [0]>} : vector<2x8x8xf32>, vector<2x8x8xf32>, vector<2x8x8xf32> -> vector<2x8x8xf32>
    "tpu.trace_stop"() : () -> ()
    %185 = vector.shape_cast %184 : vector<2x8x8xf32> to vector<16x8xf32>
    %186 = vector.extract_strided_slice %113 {offsets = [16, 0], sizes = [8, 32], strides = [1, 1]} : vector<32x32xf32> to vector<8x32xf32>
    %cst_69 = arith.constant dense<0.000000e+00> : vector<16x32xf32>
    %187 = tpu.matmul %185, %186, %cst_69 {dimension_numbers = #tpu.dot_dimension_numbers<[1], [0], [0], [1], [0, 0, 1, 1], [], []>} : vector<16x8xf32>, vector<8x32xf32>, vector<16x32xf32> -> vector<16x32xf32>
    %188 = arith.addf %167, %187 : vector<16x32xf32>
    %189 = vector.extract_strided_slice %119 {offsets = [0, 0, 24], sizes = [2, 8, 8], strides = [1, 1, 1]} : vector<2x8x32xf32> to vector<2x8x8xf32>
    %190 = vector.extract_strided_slice %121 {offsets = [0, 0, 24], sizes = [2, 8, 8], strides = [1, 1, 1]} : vector<2x8x32xf32> to vector<2x8x8xf32>
    "tpu.trace_start"() <{level = 10 : i32, message = "bsd,btd->bst"}> : () -> ()
    %cst_70 = arith.constant dense<0.000000e+00> : vector<2x8x8xf32>
    %191 = tpu.matmul %189, %190, %cst_70 {dimension_numbers = #tpu.dot_dimension_numbers<[2], [2], [1], [1], [0, 0, 0, 1, 1, 1], [0], [0]>} : vector<2x8x8xf32>, vector<2x8x8xf32>, vector<2x8x8xf32> -> vector<2x8x8xf32>
    "tpu.trace_stop"() : () -> ()
    %cst_71 = arith.constant 0.353553385 : f32
    %192 = vector.broadcast %cst_71 : f32 to vector<2x8x8xf32>
    %193 = arith.mulf %191, %192 : vector<2x8x8xf32>
    %cst_72 = arith.constant dense<0xFF800000> : vector<2x8xf32>
    %194 = vector.multi_reduction <maximumf>, %193, %cst_72 [2] : vector<2x8x8xf32> to vector<2x8xf32>
    %195 = vector.shape_cast %194 : vector<2x8xf32> to vector<2x8x1xf32>
    %196 = vector.broadcast %195 : vector<2x8x1xf32> to vector<2x8x8xf32>
    %197 = arith.subf %193, %196 : vector<2x8x8xf32>
    %198 = math.exp %197 : vector<2x8x8xf32>
    %cst_73 = arith.constant dense<0.000000e+00> : vector<2x8xf32>
    %199 = vector.multi_reduction <add>, %198, %cst_73 [2] : vector<2x8x8xf32> to vector<2x8xf32>
    %200 = vector.shape_cast %199 : vector<2x8xf32> to vector<2x8x1xf32>
    %201 = tpu.reciprocal %200 : vector<2x8x1xf32> -> vector<2x8x1xf32>
    %202 = vector.broadcast %201 : vector<2x8x1xf32> to vector<2x8x8xf32>
    %203 = arith.mulf %198, %202 : vector<2x8x8xf32>
    %204 = vector.extract_strided_slice %123 {offsets = [0, 0, 24], sizes = [2, 8, 8], strides = [1, 1, 1]} : vector<2x8x32xf32> to vector<2x8x8xf32>
    "tpu.trace_start"() <{level = 10 : i32, message = "bst,btd->bsd"}> : () -> ()
    %cst_74 = arith.constant dense<0.000000e+00> : vector<2x8x8xf32>
    %205 = tpu.matmul %203, %204, %cst_74 {dimension_numbers = #tpu.dot_dimension_numbers<[2], [1], [1], [2], [0, 0, 0, 1, 1, 2], [0], [0]>} : vector<2x8x8xf32>, vector<2x8x8xf32>, vector<2x8x8xf32> -> vector<2x8x8xf32>
    "tpu.trace_stop"() : () -> ()
    %206 = vector.shape_cast %205 : vector<2x8x8xf32> to vector<16x8xf32>
    %207 = vector.extract_strided_slice %113 {offsets = [24, 0], sizes = [8, 32], strides = [1, 1]} : vector<32x32xf32> to vector<8x32xf32>
    %cst_75 = arith.constant dense<0.000000e+00> : vector<16x32xf32>
    %208 = tpu.matmul %206, %207, %cst_75 {dimension_numbers = #tpu.dot_dimension_numbers<[1], [0], [0], [1], [0, 0, 1, 1], [], []>} : vector<16x8xf32>, vector<8x32xf32>, vector<16x32xf32> -> vector<16x32xf32>
    %209 = arith.addf %188, %208 : vector<16x32xf32>
    %c0_76 = arith.constant 0 : index
    %c0_77 = arith.constant 0 : index
    %210 = vector.load %arg14[%c0_76, %c0_77] : memref<32x64xf32, #tpu.memory_space<vmem>>, vector<32x64xf32>
    %cst_78 = arith.constant dense<0.000000e+00> : vector<16x64xf32>
    %211 = tpu.matmul %209, %210, %cst_78 {dimension_numbers = #tpu.dot_dimension_numbers<[1], [0], [0], [1], [0, 0, 1, 1], [], []>} : vector<16x32xf32>, vector<32x64xf32>, vector<16x64xf32> -> vector<16x64xf32>
    %c0_79 = arith.constant 0 : index
    %c0_80 = arith.constant 0 : index
    %212 = vector.load %arg15[%c0_79, %c0_80] : memref<1x64xf32, #tpu.memory_space<vmem>>, vector<1x64xf32>
    %213 = vector.broadcast %212 : vector<1x64xf32> to vector<16x64xf32>
    %214 = arith.addf %211, %213 : vector<16x64xf32>
    %215 = vector.extract_strided_slice %214 {offsets = [0, 0], sizes = [16, 32], strides = [1, 1]} : vector<16x64xf32> to vector<16x32xf32>
    %216 = vector.shape_cast %215 : vector<16x32xf32> to vector<2x8x32xf32>
    %217 = vector.extract_strided_slice %214 {offsets = [0, 32], sizes = [16, 32], strides = [1, 1]} : vector<16x64xf32> to vector<16x32xf32>
    %218 = vector.shape_cast %217 : vector<16x32xf32> to vector<2x8x32xf32>
    "tpu.trace_start"() <{level = 10 : i32, message = "bsd,btd->bst"}> : () -> ()
    %cst_81 = arith.constant dense<0.000000e+00> : vector<2x8x8xf32>
    %219 = tpu.matmul %216, %218, %cst_81 {dimension_numbers = #tpu.dot_dimension_numbers<[2], [2], [1], [1], [0, 0, 0, 1, 1, 1], [0], [0]>} : vector<2x8x32xf32>, vector<2x8x32xf32>, vector<2x8x8xf32> -> vector<2x8x8xf32>
    "tpu.trace_stop"() : () -> ()
    %220 = vector.extract_strided_slice %219 {offsets = [0, 0, 0], sizes = [1, 8, 8], strides = [1, 1, 1]} : vector<2x8x8xf32> to vector<1x8x8xf32>
    %221 = vector.shape_cast %220 : vector<1x8x8xf32> to vector<8x8xf32>
    %222 = tpu.transpose %221, [1, 0] : vector<8x8xf32> -> vector<8x8xf32>
    %223 = arith.addf %221, %222 : vector<8x8xf32>
    %cst_82 = arith.constant 0.0883883461 : f32
    %224 = vector.broadcast %cst_82 : f32 to vector<8x8xf32>
    %225 = arith.mulf %224, %223 : vector<8x8xf32>
    %226 = vector.extract_strided_slice %219 {offsets = [1, 0, 0], sizes = [1, 8, 8], strides = [1, 1, 1]} : vector<2x8x8xf32> to vector<1x8x8xf32>
    %227 = vector.shape_cast %226 : vector<1x8x8xf32> to vector<8x8xf32>
    %228 = tpu.transpose %227, [1, 0] : vector<8x8xf32> -> vector<8x8xf32>
    %229 = arith.addf %227, %228 : vector<8x8xf32>
    %cst_83 = arith.constant 0.0883883461 : f32
    %230 = vector.broadcast %cst_83 : f32 to vector<8x8xf32>
    %231 = arith.mulf %230, %229 : vector<8x8xf32>
    %232 = tpu.concatenate %225, %231 in 1 : vector<8x8xf32>, vector<8x8xf32> -> vector<8x16xf32>
    %c0_84 = arith.constant 0 : index
    %c0_85 = arith.constant 0 : index
    %233 = vector.load %arg16[%c0_84, %c0_85] : memref<8x16xf32, #tpu.memory_space<vmem>>, vector<8x16xf32>
    tpu.vector_store %arg16[%c0_84, %c0_85], %232 {strides = array<i32>} : memref<8x16xf32, #tpu.memory_space<vmem>>, vector<8x16xf32>,
    return
  }
  func.func @transform_0(%arg0: i32) -> (i32, i32) {
    %c0_i32 = arith.constant 0 : i32
    %c0_i32_0 = arith.constant 0 : i32
    return %arg0, %c0_i32 : i32, i32
  }
  func.func @transform_1(%arg0: i32) -> (i32, i32) {
    %c0_i32 = arith.constant 0 : i32
    %c0_i32_0 = arith.constant 0 : i32
    %c0_i32_1 = arith.constant 0 : i32
    return %c0_i32, %c0_i32_0 : i32, i32
  }
  func.func @transform_2(%arg0: i32) -> (i32, i32) {
    %c0_i32 = arith.constant 0 : i32
    %c0_i32_0 = arith.constant 0 : i32
    %c0_i32_1 = arith.constant 0 : i32
    return %c0_i32, %c0_i32_0 : i32, i32
  }
  func.func @transform_3(%arg0: i32) -> (i32, i32) {
    %c0_i32 = arith.constant 0 : i32
    %c0_i32_0 = arith.constant 0 : i32
    %c0_i32_1 = arith.constant 0 : i32
    return %c0_i32, %c0_i32_0 : i32, i32
  }
  func.func @transform_4(%arg0: i32) -> (i32, i32) {
    %c0_i32 = arith.constant 0 : i32
    %c0_i32_0 = arith.constant 0 : i32
    %c0_i32_1 = arith.constant 0 : i32
    return %c0_i32, %c0_i32_0 : i32, i32
  }
  func.func @transform_5(%arg0: i32) -> (i32, i32) {
    %c0_i32 = arith.constant 0 : i32
    %c0_i32_0 = arith.constant 0 : i32
    %c0_i32_1 = arith.constant 0 : i32
    return %c0_i32, %c0_i32_0 : i32, i32
  }
  func.func @transform_6(%arg0: i32) -> (i32, i32) {
    %c0_i32 = arith.constant 0 : i32
    %c0_i32_0 = arith.constant 0 : i32
    %c0_i32_1 = arith.constant 0 : i32
    return %c0_i32, %c0_i32_0 : i32, i32
  }
  func.func @transform_7(%arg0: i32) -> (i32, i32) {
    %c0_i32 = arith.constant 0 : i32
    %c0_i32_0 = arith.constant 0 : i32
    %c0_i32_1 = arith.constant 0 : i32
    return %c0_i32, %c0_i32_0 : i32, i32
  }
  func.func @transform_8(%arg0: i32) -> (i32, i32) {
    %c0_i32 = arith.constant 0 : i32
    %c0_i32_0 = arith.constant 0 : i32
    %c0_i32_1 = arith.constant 0 : i32
    return %c0_i32, %c0_i32_0 : i32, i32
  }
  func.func @transform_9(%arg0: i32) -> (i32, i32) {
    %c0_i32 = arith.constant 0 : i32
    %c0_i32_0 = arith.constant 0 : i32
    %c0_i32_1 = arith.constant 0 : i32
    return %c0_i32, %c0_i32_0 : i32, i32
  }
  func.func @transform_10(%arg0: i32) -> (i32, i32) {
    %c0_i32 = arith.constant 0 : i32
    %c0_i32_0 = arith.constant 0 : i32
    %c0_i32_1 = arith.constant 0 : i32
    return %c0_i32, %c0_i32_0 : i32, i32
  }
  func.func @transform_11(%arg0: i32) -> (i32, i32) {
    %c0_i32 = arith.constant 0 : i32
    %c0_i32_0 = arith.constant 0 : i32
    %c0_i32_1 = arith.constant 0 : i32
    return %c0_i32, %c0_i32_0 : i32, i32
  }
  func.func @transform_12(%arg0: i32) -> (i32, i32) {
    %c0_i32 = arith.constant 0 : i32
    %c0_i32_0 = arith.constant 0 : i32
    %c0_i32_1 = arith.constant 0 : i32
    return %c0_i32, %c0_i32_0 : i32, i32
  }
  func.func @transform_13(%arg0: i32) -> (i32, i32) {
    %c0_i32 = arith.constant 0 : i32
    %c0_i32_0 = arith.constant 0 : i32
    %c0_i32_1 = arith.constant 0 : i32
    return %c0_i32, %c0_i32_0 : i32, i32
  }
  func.func @transform_14(%arg0: i32) -> (i32, i32) {
    %c0_i32 = arith.constant 0 : i32
    %c0_i32_0 = arith.constant 0 : i32
    %c0_i32_1 = arith.constant 0 : i32
    return %c0_i32, %c0_i32_0 : i32, i32
  }
  func.func @transform_15(%arg0: i32) -> (i32, i32) {
    %c0_i32 = arith.constant 0 : i32
    %c0_i32_0 = arith.constant 0 : i32
    return %arg0, %c0_i32 : i32, i32
  }
}

</mosaic_0001>

<llo_original>
// kernel: tpu_custom_call.1
$region0: #{tpu_custom_call.1}
  #allocation0 [shape = 'u32[]', space=smem, size = 0x4, offset = 0x4, fixed_abs, tag = 'smem constant byte address 0x4 - core index']
  #allocation1 [shape = 'u32[144,128]{1,0:T(1,128)}', space=vmem, size = 0x12000, scoped, tag = 'internal scratch']
  %s0 = inlined_call_operand.hbm [shape: f32[16,16], index: 0, kind: input, shape index: {}]
  %s1 = inlined_call_operand.hbm [shape: f32[16,32], index: 1, kind: input, shape index: {}]
  %s2 = inlined_call_operand.vmem [shape: f32[1,32], index: 2, kind: input, shape index: {}]
  %s3 = inlined_call_operand.hbm [shape: f32[32,32], index: 3, kind: input, shape index: {}]
  %s4 = inlined_call_operand.vmem [shape: f32[1,32], index: 4, kind: input, shape index: {}]
  %s5 = inlined_call_operand.hbm [shape: f32[32,96], index: 5, kind: input, shape index: {}]
  %s6 = inlined_call_operand.hbm [shape: f32[1,96], index: 6, kind: input, shape index: {}]
  %s7 = inlined_call_operand.hbm [shape: f32[32,32], index: 7, kind: input, shape index: {}]
  %s8 = inlined_call_operand.hbm [shape: f32[1,32], index: 8, kind: input, shape index: {}]
  %s9 = inlined_call_operand.vmem [shape: f32[32,96], index: 9, kind: input, shape index: {}]
  %s10 = inlined_call_operand.vmem [shape: f32[1,96], index: 10, kind: input, shape index: {}]
  %s11 = inlined_call_operand.hbm [shape: f32[32,32], index: 11, kind: input, shape index: {}]
  %s12 = inlined_call_operand.vmem [shape: f32[1,32], index: 12, kind: input, shape index: {}]
  %s13 = inlined_call_operand.hbm [shape: f32[32,64], index: 13, kind: input, shape index: {}]
  %s14 = inlined_call_operand.vmem [shape: f32[1,64], index: 14, kind: input, shape index: {}]
  %s15 = inlined_call_operand.hbm [shape: f32[8,16], index: 15, kind: output, shape index: {}]
  %s16 = sld [smem:[#allocation0]]
  $region106: #{tpu_custom_call.1} parent=0
    _
  %s18 = ssub.s32 1, %s16
  %s19 = scalar_select 0, %s18, %s16
  $region1: #{tpu_custom_call.1} parent=0
    #allocation2 [shape = 'u8[8192]{0}', space=vmem, size = 0x2000, scoped, tag = 'input window, operand 0, single buffered']
    #allocation3 [shape = 's32[1]{0}', space=sflag, size = 0x4, scoped, tag = 'scoped memory for tpu_custom_call.1']
    #allocation4 [shape = 's32[1]{0}', space=sflag, size = 0x4, scoped, tag = 'scoped memory for tpu_custom_call.1']
    #allocation5 [shape = 'u8[8192]{0}', space=vmem, size = 0x2000, scoped, tag = 'input window, operand 1, single buffered']
    #allocation6 [shape = 's32[1]{0}', space=sflag, size = 0x4, scoped, tag = 'scoped memory for tpu_custom_call.1']
    #allocation7 [shape = 'u8[16384]{0}', space=vmem, size = 0x4000, scoped, tag = 'input window, operand 3, single buffered']
    #allocation8 [shape = 'u8[16384]{0}', space=vmem, size = 0x4000, scoped, tag = 'input window, operand 5, single buffered']
    #allocation9 [shape = 's32[1]{0}', space=sflag, size = 0x4, scoped, tag = 'scoped memory for tpu_custom_call.1']
    #allocation10 [shape = 'u8[512]{0}', space=vmem, size = 0x400, scoped, tag = 'input window, operand 6, single buffered']
    #allocation11 [shape = 'u8[16384]{0}', space=vmem, size = 0x4000, scoped, tag = 'input window, operand 7, single buffered']
    #allocation12 [shape = 's32[1]{0}', space=sflag, size = 0x4, scoped, tag = 'scoped memory for tpu_custom_call.1']
    #allocation13 [shape = 'u8[512]{0}', space=vmem, size = 0x400, scoped, tag = 'input window, operand 8, single buffered']
    #allocation14 [shape = 'u8[16384]{0}', space=vmem, size = 0x4000, scoped, tag = 'input window, operand 11, single buffered']
    #allocation15 [shape = 's32[1]{0}', space=sflag, size = 0x4, scoped, tag = 'scoped memory for tpu_custom_call.1']
    #allocation16 [shape = 'u8[16384]{0}', space=vmem, size = 0x4000, scoped, tag = 'input window, operand 13, single buffered']
    #allocation17 [shape = 'u8[4096]{0}', space=vmem, size = 0x1000, scoped, tag = 'output window, operand 0, single buffered']
    %20 = vsyncpa [#allocation3], 0
    %21 = vsyncpa [#allocation6], 0
    %22 = vsyncpa [#allocation9], 0
    %23 = vsyncpa [#allocation12], 0
    %24 = vsyncpa [#allocation15], 0
    %25 = vsyncpa [#allocation4], 0
    // Predicated region
    $region2: #{tpu_custom_call.1} parent=1 // pred_check
      _
    $region3: #{tpu_custom_call.1} parent=1 // pred_check_branch
      %27 = sbr.rel (0) target = $region5
    $region4: #{tpu_custom_call.1} parent=1 // pred_region
      %s29 = ssub.s32 256, 256
      %30 = vsyncadd [#allocation3], %s29
      %s31 = sshll.u32 [#allocation2], 4
      %s32 = int_to_ptr.vmem [resolvable:$true] %s31
      %37 = dma.hbm_to_vmem [thread:$0]  %s0, 256, %s32, [#allocation3], 128, 128, 8
    $region5: #{tpu_custom_call.1} parent=1 // pred_fallthru
      _
    // Predicated region
    $region6: #{tpu_custom_call.1} parent=1 // pred_check
      _
    $region7: #{tpu_custom_call.1} parent=1 // pred_check_branch
      %39 = sbr.rel (0) target = $region9
    $region8: #{tpu_custom_call.1} parent=1 // pred_region
      %s41 = ssub.s32 256, 256
      %42 = vsyncadd [#allocation6], %s41
      %s43 = sshll.u32 [#allocation5], 4
      %s44 = int_to_ptr.vmem [resolvable:$true] %s43
      %49 = dma.hbm_to_vmem [thread:$0]  %s1, 256, %s44, [#allocation6], 128, 128, 8
    $region9: #{tpu_custom_call.1} parent=1 // pred_fallthru
      _
    // Predicated region
    $region10: #{tpu_custom_call.1} parent=1 // pred_check
      _
    $region11: #{tpu_custom_call.1} parent=1 // pred_check_branch
      %51 = sbr.rel (0) target = $region13
    $region12: #{tpu_custom_call.1} parent=1 // pred_region
      _
    $region13: #{tpu_custom_call.1} parent=1 // pred_fallthru
      _
    // Predicated region
    $region14: #{tpu_custom_call.1} parent=1 // pred_check
      _
    $region15: #{tpu_custom_call.1} parent=1 // pred_check_branch
      %53 = sbr.rel (0) target = $region17
    $region16: #{tpu_custom_call.1} parent=1 // pred_region
      %s55 = ssub.s32 512, 512
      %56 = vsyncadd [#allocation6], %s55
      %s57 = sshll.u32 [#allocation7], 4
      %s58 = int_to_ptr.vmem [resolvable:$true] %s57
      %63 = dma.hbm_to_vmem [thread:$0]  %s3, 512, %s58, [#allocation6], 128, 128, 8
    $region17: #{tpu_custom_call.1} parent=1 // pred_fallthru
      _
    // Predicated region
    $region18: #{tpu_custom_call.1} parent=1 // pred_check
      _
    $region19: #{tpu_custom_call.1} parent=1 // pred_check_branch
      %65 = sbr.rel (0) target = $region21
    $region20: #{tpu_custom_call.1} parent=1 // pred_region
      _
    $region21: #{tpu_custom_call.1} parent=1 // pred_fallthru
      _
    // Predicated region
    $region22: #{tpu_custom_call.1} parent=1 // pred_check
      _
    $region23: #{tpu_custom_call.1} parent=1 // pred_check_branch
      %67 = sbr.rel (0) target = $region25
    $region24: #{tpu_custom_call.1} parent=1 // pred_region
      %s69 = ssub.s32 512, 512
      %70 = vsyncadd [#allocation9], %s69
      %s71 = sshll.u32 [#allocation8], 4
      %s72 = int_to_ptr.vmem [resolvable:$true] %s71
      %77 = dma.hbm_to_vmem [thread:$0]  %s5, 512, %s72, [#allocation9], 128, 128, 8
    $region25: #{tpu_custom_call.1} parent=1 // pred_fallthru
      _
    // Predicated region
    $region26: #{tpu_custom_call.1} parent=1 // pred_check
      _
    $region27: #{tpu_custom_call.1} parent=1 // pred_check_branch
      %79 = sbr.rel (0) target = $region29
    $region28: #{tpu_custom_call.1} parent=1 // pred_region
      %s81 = ssub.s32 16, 16
      %82 = vsyncadd [#allocation9], %s81
      %s84 = sshll.u32 [#allocation10], 4
      %s85 = int_to_ptr.vmem [resolvable:$true] %s84
      %87 = dma.hbm_to_vmem [thread:$0]  %s6, 16, %s85, [#allocation9]
    $region29: #{tpu_custom_call.1} parent=1 // pred_fallthru
      _
    // Predicated region
    $region30: #{tpu_custom_call.1} parent=1 // pred_check
      _
    $region31: #{tpu_custom_call.1} parent=1 // pred_check_branch
      %89 = sbr.rel (0) target = $region33
    $region32: #{tpu_custom_call.1} parent=1 // pred_region
      %s91 = ssub.s32 512, 512
      %92 = vsyncadd [#allocation12], %s91
      %s93 = sshll.u32 [#allocation11], 4
      %s94 = int_to_ptr.vmem [resolvable:$true] %s93
      %99 = dma.hbm_to_vmem [thread:$0]  %s7, 512, %s94, [#allocation12], 128, 128, 8
    $region33: #{tpu_custom_call.1} parent=1 // pred_fallthru
      _
    // Predicated region
    $region34: #{tpu_custom_call.1} parent=1 // pred_check
      _
    $region35: #{tpu_custom_call.1} parent=1 // pred_check_branch
      %101 = sbr.rel (0) target = $region37
    $region36: #{tpu_custom_call.1} parent=1 // pred_region
      %s103 = ssub.s32 16, 16
      %104 = vsyncadd [#allocation12], %s103
      %s106 = sshll.u32 [#allocation13], 4
      %s107 = int_to_ptr.vmem [resolvable:$true] %s106
      %109 = dma.hbm_to_vmem [thread:$0]  %s8, 16, %s107, [#allocation12]
    $region37: #{tpu_custom_call.1} parent=1 // pred_fallthru
      _
    // Predicated region
    $region38: #{tpu_custom_call.1} parent=1 // pred_check
      _
    $region39: #{tpu_custom_call.1} parent=1 // pred_check_branch
      %111 = sbr.rel (0) target = $region41
    $region40: #{tpu_custom_call.1} parent=1 // pred_region
      _
    $region41: #{tpu_custom_call.1} parent=1 // pred_fallthru
      _
    // Predicated region
    $region42: #{tpu_custom_call.1} parent=1 // pred_check
      _
    $region43: #{tpu_custom_call.1} parent=1 // pred_check_branch
      %113 = sbr.rel (0) target = $region45
    $region44: #{tpu_custom_call.1} parent=1 // pred_region
      _
    $region45: #{tpu_custom_call.1} parent=1 // pred_fallthru
      _
    // Predicated region
    $region46: #{tpu_custom_call.1} parent=1 // pred_check
      _
    $region47: #{tpu_custom_call.1} parent=1 // pred_check_branch
      %115 = sbr.rel (0) target = $region49
    $region48: #{tpu_custom_call.1} parent=1 // pred_region
      %s117 = ssub.s32 512, 512
      %118 = vsyncadd [#allocation15], %s117
      %s119 = sshll.u32 [#allocation14], 4
      %s120 = int_to_ptr.vmem [resolvable:$true] %s119
      %125 = dma.hbm_to_vmem [thread:$0]  %s11, 512, %s120, [#allocation15], 128, 128, 8
    $region49: #{tpu_custom_call.1} parent=1 // pred_fallthru
      _
    // Predicated region
    $region50: #{tpu_custom_call.1} parent=1 // pred_check
      _
    $region51: #{tpu_custom_call.1} parent=1 // pred_check_branch
      %127 = sbr.rel (0) target = $region53
    $region52: #{tpu_custom_call.1} parent=1 // pred_region
      _
    $region53: #{tpu_custom_call.1} parent=1 // pred_fallthru
      _
    // Predicated region
    $region54: #{tpu_custom_call.1} parent=1 // pred_check
      _
    $region55: #{tpu_custom_call.1} parent=1 // pred_check_branch
      %129 = sbr.rel (0) target = $region57
    $region56: #{tpu_custom_call.1} parent=1 // pred_region
      %s131 = ssub.s32 512, 512
      %132 = vsyncadd [#allocation15], %s131
      %s133 = sshll.u32 [#allocation16], 4
      %s134 = int_to_ptr.vmem [resolvable:$true] %s133
      %139 = dma.hbm_to_vmem [thread:$0]  %s13, 512, %s134, [#allocation15], 128, 128, 8
    $region57: #{tpu_custom_call.1} parent=1 // pred_fallthru
      _
    // Predicated region
    $region58: #{tpu_custom_call.1} parent=1 // pred_check
      _
    $region59: #{tpu_custom_call.1} parent=1 // pred_check_branch
      %141 = sbr.rel (0) target = $region61
    $region60: #{tpu_custom_call.1} parent=1 // pred_region
      _
    $region61: #{tpu_custom_call.1} parent=1 // pred_fallthru
      _
    // Predicated region
    $region62: #{tpu_custom_call.1} parent=1 // pred_check
      _
    $region63: #{tpu_custom_call.1} parent=1 // pred_check_branch
      %143 = sbr.rel (0) target = $region65
    $region64: #{tpu_custom_call.1} parent=1 // pred_region
      %144 = dma.done [#allocation3], 256
    $region65: #{tpu_custom_call.1} parent=1 // pred_fallthru
      _
    // Predicated region
    $region66: #{tpu_custom_call.1} parent=1 // pred_check
      _
    $region67: #{tpu_custom_call.1} parent=1 // pred_check_branch
      %146 = sbr.rel (0) target = $region69
    $region68: #{tpu_custom_call.1} parent=1 // pred_region
      %147 = dma.done [#allocation6], 256
    $region69: #{tpu_custom_call.1} parent=1 // pred_fallthru
      _
    // Predicated region
    $region70: #{tpu_custom_call.1} parent=1 // pred_check
      _
    $region71: #{tpu_custom_call.1} parent=1 // pred_check_branch
      %149 = sbr.rel (0) target = $region73
    $region72: #{tpu_custom_call.1} parent=1 // pred_region
      %150 = dma.done [#allocation6], 512
    $region73: #{tpu_custom_call.1} parent=1 // pred_fallthru
      _
    // Predicated region
    $region74: #{tpu_custom_call.1} parent=1 // pred_check
      _
    $region75: #{tpu_custom_call.1} parent=1 // pred_check_branch
      %152 = sbr.rel (0) target = $region77
    $region76: #{tpu_custom_call.1} parent=1 // pred_region
      %153 = dma.done [#allocation9], 512
    $region77: #{tpu_custom_call.1} parent=1 // pred_fallthru
      _
    // Predicated region
    $region78: #{tpu_custom_call.1} parent=1 // pred_check
      _
    $region79: #{tpu_custom_call.1} parent=1 // pred_check_branch
      %155 = sbr.rel (0) target = $region81
    $region80: #{tpu_custom_call.1} parent=1 // pred_region
      %156 = dma.done [#allocation9], 16
    $region81: #{tpu_custom_call.1} parent=1 // pred_fallthru
      _
    // Predicated region
    $region82: #{tpu_custom_call.1} parent=1 // pred_check
      _
    $region83: #{tpu_custom_call.1} parent=1 // pred_check_branch
      %158 = sbr.rel (0) target = $region85
    $region84: #{tpu_custom_call.1} parent=1 // pred_region
      %159 = dma.done [#allocation12], 512
    $region85: #{tpu_custom_call.1} parent=1 // pred_fallthru
      _
    // Predicated region
    $region86: #{tpu_custom_call.1} parent=1 // pred_check
      _
    $region87: #{tpu_custom_call.1} parent=1 // pred_check_branch
      %161 = sbr.rel (0) target = $region89
    $region88: #{tpu_custom_call.1} parent=1 // pred_region
      %162 = dma.done [#allocation12], 16
    $region89: #{tpu_custom_call.1} parent=1 // pred_fallthru
      _
    // Predicated region
    $region90: #{tpu_custom_call.1} parent=1 // pred_check
      _
    $region91: #{tpu_custom_call.1} parent=1 // pred_check_branch
      %164 = sbr.rel (0) target = $region93
    $region92: #{tpu_custom_call.1} parent=1 // pred_region
      %165 = dma.done [#allocation15], 512
    $region93: #{tpu_custom_call.1} parent=1 // pred_fallthru
      _
    // Predicated region
    $region94: #{tpu_custom_call.1} parent=1 // pred_check
      _
    $region95: #{tpu_custom_call.1} parent=1 // pred_check_branch
      %167 = sbr.rel (0) target = $region97
    $region96: #{tpu_custom_call.1} parent=1 // pred_region
      %168 = dma.done [#allocation15], 512
    $region97: #{tpu_custom_call.1} parent=1 // pred_fallthru
      _
    %v169 = vld [vmem:[#allocation2] sm:$0xff]
    %v170 = vld [vmem:[#allocation2 + $0x8] sm:$0xff]
    %v171 = vld [vmem:[#allocation5] sm:$0xff]
    %v172 = vld [vmem:[#allocation5 + $0x8] sm:$0xff]
    %v173 = vld [vmem:[%s2] sm:$0x1]
    %v175 = vlaneseq
    %v176 = vshrl.u32 %v175, 7
    %v177 = vsub.s32 0, %v176
    %v178 = vrot.slane %v173, %v177
    %vm180 = vcmask 130048
    %v182 = vsel %vm180, %v169, 0
    %v185 = vsel %vm180, %v170, 0
    %187 = vmatprep.subr.mxu0 0.0
    %188 = vmatpush1.msra.mxu0 %v171
    %189 = vmatprep.subr.mxu0 0.0
    %190 = vmatpush1.msra.mxu0 %v172
    %191 = vmatprep.subr.mxu0 0.0
    %192 = vmatpush1.msra.mxu0 0.0
    %193 = vmatprep.subr.mxu0 0.0
    %194 = vmatpush1.msra.mxu0 0.0
    %195 = vmatprep.subr.mxu0 0.0
    %196 = vmatpush1.msra.mxu0 0.0
    %197 = vmatprep.subr.mxu0 0.0
    %198 = vmatpush1.msra.mxu0 0.0
    %199 = vmatprep.subr.mxu0 0.0
    %200 = vmatpush1.msra.mxu0 0.0
    %201 = vmatprep.subr.mxu0 0.0
    %202 = vmatpush1.msra.mxu0 0.0
    %203 = vmatprep.subr.mxu0 0.0
    %204 = vmatpush1.msra.mxu0 0.0
    %205 = vmatprep.subr.mxu0 0.0
    %206 = vmatpush1.msra.mxu0 0.0
    %207 = vmatprep.subr.mxu0 0.0
    %208 = vmatpush1.msra.mxu0 0.0
    %209 = vmatprep.subr.mxu0 0.0
    %210 = vmatpush1.msra.mxu0 0.0
    %211 = vmatprep.subr.mxu0 0.0
    %212 = vmatpush1.msra.mxu0 0.0
    %213 = vmatprep.subr.mxu0 0.0
    %214 = vmatpush1.msra.mxu0 0.0
    %215 = vmatprep.subr.mxu0 0.0
    %216 = vmatpush1.msra.mxu0 0.0
    %217 = vmatprep.subr.mxu0 0.0
    %218 = vmatpush1.msra.mxu0 0.0
    %219 = vmatprep.subr.mxu0 0.0
    %220 = vmatpush1.msra.mxu0 0.0
    %221 = vmatprep.subr.mxu0 0.0
    %222 = vmatpush1.msra.mxu0 0.0
    %223 = vmatprep.subr.mxu0 0.0
    %224 = vmatpush1.msra.mxu0 0.0
    %225 = vmatprep.subr.mxu0 0.0
    %226 = vmatpush1.msra.mxu0 0.0
    %227 = vmatprep.subr.mxu0 0.0
    %228 = vmatpush1.msra.mxu0 0.0
    %229 = vmatprep.subr.mxu0 0.0
    %230 = vmatpush1.msra.mxu0 0.0
    %231 = vmatprep.subr.mxu0 0.0
    %232 = vmatpush1.msra.mxu0 0.0
    %233 = vmatprep.subr.mxu0 0.0
    %234 = vmatpush1.msra.mxu0 0.0
    %235 = vmatprep.subr.mxu0 0.0
    %236 = vmatpush1.msra.mxu0 0.0
    %237 = vmatprep.subr.mxu0 0.0
    %238 = vmatpush1.msra.mxu0 0.0
    %239 = vmatprep.subr.mxu0 0.0
    %240 = vmatpush1.msra.mxu0 0.0
    %241 = vmatprep.subr.mxu0 0.0
    %242 = vmatpush1.msra.mxu0 0.0
    %243 = vmatprep.subr.mxu0 0.0
    %244 = vmatpush1.msra.mxu0 0.0
    %245 = vmatprep.subr.mxu0 0.0
    %246 = vmatpush1.msra.mxu0 0.0
    %247 = vmatprep.subr.mxu0 0.0
    %248 = vmatpush1.msra.mxu0 0.0
    %249 = vmatprep.subr.mxu0 0.0
    %250 = vmatpush1.msra.mxu0 0.0
    %251 = vmatprep.mubr.f32.mxu0 0.0
    %252 = vmatmul.mubr.f32.gmra.mrb[0].mxu0 %v182
    %v253 = vpop.f32.mrb[0].mxu0
    %v254 = vadd.f32 %v178, %v253
    %v255 = vpop.f32.mrb[0].mxu0
    %256 = vmatprep.mubr.f32.mxu0 0.0
    %257 = vmatmul.mubr.f32.gmra.mrb[0].mxu0 %v185
    %v258 = vpop.f32.mrb[0].mxu0
    %v259 = vadd.f32 %v178, %v258
    %v260 = vpop.f32.mrb[0].mxu0
    %261 = vdwg.mxu0
    %v262 = vtanh.pop %v254
    %v263 = vtanh.pop %v259
    %v264 = vld [vmem:[#allocation7] sm:$0xff]
    %v265 = vld [vmem:[#allocation7 + $0x8] sm:$0xff]
    %v266 = vld [vmem:[#allocation7 + $0x10] sm:$0xff]
    %v267 = vld [vmem:[#allocation7 + $0x18] sm:$0xff]
    %v268 = vld [vmem:[%s4] sm:$0x1]
    %v270 = vlaneseq
    %v271 = vshrl.u32 %v270, 7
    %v272 = vsub.s32 0, %v271
    %v273 = vrot.slane %v268, %v272
    %vm275 = vcmask 261120
    %v277 = vsel %vm275, %v262, 0
    %v280 = vsel %vm275, %v263, 0
    %282 = vmatprep.subr.mxu0 0.0
    %283 = vmatpush1.msra.mxu0 %v264
    %284 = vmatprep.subr.mxu0 0.0
    %285 = vmatpush1.msra.mxu0 %v265
    %286 = vmatprep.subr.mxu0 0.0
    %287 = vmatpush1.msra.mxu0 %v266
    %288 = vmatprep.subr.mxu0 0.0
    %289 = vmatpush1.msra.mxu0 %v267
    %290 = vmatprep.subr.mxu0 0.0
    %291 = vmatpush1.msra.mxu0 0.0
    %292 = vmatprep.subr.mxu0 0.0
    %293 = vmatpush1.msra.mxu0 0.0
    %294 = vmatprep.subr.mxu0 0.0
    %295 = vmatpush1.msra.mxu0 0.0
    %296 = vmatprep.subr.mxu0 0.0
    %297 = vmatpush1.msra.mxu0 0.0
    %298 = vmatprep.subr.mxu0 0.0
    %299 = vmatpush1.msra.mxu0 0.0
    %300 = vmatprep.subr.mxu0 0.0
    %301 = vmatpush1.msra.mxu0 0.0
    %302 = vmatprep.subr.mxu0 0.0
    %303 = vmatpush1.msra.mxu0 0.0
    %304 = vmatprep.subr.mxu0 0.0
    %305 = vmatpush1.msra.mxu0 0.0
    %306 = vmatprep.subr.mxu0 0.0
    %307 = vmatpush1.msra.mxu0 0.0
    %308 = vmatprep.subr.mxu0 0.0
    %309 = vmatpush1.msra.mxu0 0.0
    %310 = vmatprep.subr.mxu0 0.0
    %311 = vmatpush1.msra.mxu0 0.0
    %312 = vmatprep.subr.mxu0 0.0
    %313 = vmatpush1.msra.mxu0 0.0
    %314 = vmatprep.subr.mxu0 0.0
    %315 = vmatpush1.msra.mxu0 0.0
    %316 = vmatprep.subr.mxu0 0.0
    %317 = vmatpush1.msra.mxu0 0.0
    %318 = vmatprep.subr.mxu0 0.0
    %319 = vmatpush1.msra.mxu0 0.0
    %320 = vmatprep.subr.mxu0 0.0
    %321 = vmatpush1.msra.mxu0 0.0
    %322 = vmatprep.subr.mxu0 0.0
    %323 = vmatpush1.msra.mxu0 0.0
    %324 = vmatprep.subr.mxu0 0.0
    %325 = vmatpush1.msra.mxu0 0.0
    %326 = vmatprep.subr.mxu0 0.0
    %327 = vmatpush1.msra.mxu0 0.0
    %328 = vmatprep.subr.mxu0 0.0
    %329 = vmatpush1.msra.mxu0 0.0
    %330 = vmatprep.subr.mxu0 0.0
    %331 = vmatpush1.msra.mxu0 0.0
    %332 = vmatprep.subr.mxu0 0.0
    %333 = vmatpush1.msra.mxu0 0.0
    %334 = vmatprep.subr.mxu0 0.0
    %335 = vmatpush1.msra.mxu0 0.0
    %336 = vmatprep.subr.mxu0 0.0
    %337 = vmatpush1.msra.mxu0 0.0
    %338 = vmatprep.subr.mxu0 0.0
    %339 = vmatpush1.msra.mxu0 0.0
    %340 = vmatprep.subr.mxu0 0.0
    %341 = vmatpush1.msra.mxu0 0.0
    %342 = vmatprep.subr.mxu0 0.0
    %343 = vmatpush1.msra.mxu0 0.0
    %344 = vmatprep.subr.mxu0 0.0
    %345 = vmatpush1.msra.mxu0 0.0
    %346 = vmatprep.mubr.f32.mxu0 0.0
    %347 = vmatmul.mubr.f32.gmra.mrb[0].mxu0 %v277
    %v348 = vpop.f32.mrb[0].mxu0
    %v349 = vadd.f32 %v273, %v348
    %v350 = vpop.f32.mrb[0].mxu0
    %351 = vmatprep.mubr.f32.mxu0 0.0
    %352 = vmatmul.mubr.f32.gmra.mrb[0].mxu0 %v280
    %v353 = vpop.f32.mrb[0].mxu0
    %v354 = vadd.f32 %v273, %v353
    %v355 = vpop.f32.mrb[0].mxu0
    %356 = vdwg.mxu0
    %v357 = vld [vmem:[#allocation8] sm:$0xff]
    %v358 = vld [vmem:[#allocation8 + $0x8] sm:$0xff]
    %v359 = vld [vmem:[#allocation8 + $0x10] sm:$0xff]
    %v360 = vld [vmem:[#allocation8 + $0x18] sm:$0xff]
    %v361 = vld [vmem:[#allocation10] sm:$0x1]
    %v362 = vld [vmem:[#allocation11] sm:$0xff]
    %v363 = vld [vmem:[#allocation11 + $0x8] sm:$0xff]
    %v364 = vld [vmem:[#allocation11 + $0x10] sm:$0xff]
    %v365 = vld [vmem:[#allocation11 + $0x18] sm:$0xff]
    %v366 = vld [vmem:[#allocation13] sm:$0x1]
    %v368 = vlaneseq
    %v369 = vshrl.u32 %v368, 7
    %v370 = vsub.s32 0, %v369
    %v371 = vrot.slane %v361, %v370
    %v374 = vsel %vm275, %v349, 0
    %v377 = vsel %vm275, %v354, 0
    %379 = vmatprep.subr.mxu0 0.0
    %380 = vmatpush1.msra.mxu0 %v357
    %381 = vmatprep.subr.mxu0 0.0
    %382 = vmatpush1.msra.mxu0 %v358
    %383 = vmatprep.subr.mxu0 0.0
    %384 = vmatpush1.msra.mxu0 %v359
    %385 = vmatprep.subr.mxu0 0.0
    %386 = vmatpush1.msra.mxu0 %v360
    %387 = vmatprep.subr.mxu0 0.0
    %388 = vmatpush1.msra.mxu0 0.0
    %389 = vmatprep.subr.mxu0 0.0
    %390 = vmatpush1.msra.mxu0 0.0
    %391 = vmatprep.subr.mxu0 0.0
    %392 = vmatpush1.msra.mxu0 0.0
    %393 = vmatprep.subr.mxu0 0.0
    %394 = vmatpush1.msra.mxu0 0.0
    %395 = vmatprep.subr.mxu0 0.0
    %396 = vmatpush1.msra.mxu0 0.0
    %397 = vmatprep.subr.mxu0 0.0
    %398 = vmatpush1.msra.mxu0 0.0
    %399 = vmatprep.subr.mxu0 0.0
    %400 = vmatpush1.msra.mxu0 0.0
    %401 = vmatprep.subr.mxu0 0.0
    %402 = vmatpush1.msra.mxu0 0.0
    %403 = vmatprep.subr.mxu0 0.0
    %404 = vmatpush1.msra.mxu0 0.0
    %405 = vmatprep.subr.mxu0 0.0
    %406 = vmatpush1.msra.mxu0 0.0
    %407 = vmatprep.subr.mxu0 0.0
    %408 = vmatpush1.msra.mxu0 0.0
    %409 = vmatprep.subr.mxu0 0.0
    %410 = vmatpush1.msra.mxu0 0.0
    %411 = vmatprep.subr.mxu0 0.0
    %412 = vmatpush1.msra.mxu0 0.0
    %413 = vmatprep.subr.mxu0 0.0
    %414 = vmatpush1.msra.mxu0 0.0
    %415 = vmatprep.subr.mxu0 0.0
    %416 = vmatpush1.msra.mxu0 0.0
    %417 = vmatprep.subr.mxu0 0.0
    %418 = vmatpush1.msra.mxu0 0.0
    %419 = vmatprep.subr.mxu0 0.0
    %420 = vmatpush1.msra.mxu0 0.0
    %421 = vmatprep.subr.mxu0 0.0
    %422 = vmatpush1.msra.mxu0 0.0
    %423 = vmatprep.subr.mxu0 0.0
    %424 = vmatpush1.msra.mxu0 0.0
    %425 = vmatprep.subr.mxu0 0.0
    %426 = vmatpush1.msra.mxu0 0.0
    %427 = vmatprep.subr.mxu0 0.0
    %428 = vmatpush1.msra.mxu0 0.0
    %429 = vmatprep.subr.mxu0 0.0
    %430 = vmatpush1.msra.mxu0 0.0
    %431 = vmatprep.subr.mxu0 0.0
    %432 = vmatpush1.msra.mxu0 0.0
    %433 = vmatprep.subr.mxu0 0.0
    %434 = vmatpush1.msra.mxu0 0.0
    %435 = vmatprep.subr.mxu0 0.0
    %436 = vmatpush1.msra.mxu0 0.0
    %437 = vmatprep.subr.mxu0 0.0
    %438 = vmatpush1.msra.mxu0 0.0
    %439 = vmatprep.subr.mxu0 0.0
    %440 = vmatpush1.msra.mxu0 0.0
    %441 = vmatprep.subr.mxu0 0.0
    %442 = vmatpush1.msra.mxu0 0.0
    %443 = vmatprep.mubr.f32.mxu0 0.0
    %444 = vmatmul.mubr.f32.gmra.mrb[0].mxu0 %v374
    %v445 = vpop.f32.mrb[0].mxu0
    %v446 = vadd.f32 %v371, %v445
    %v447 = vpop.f32.mrb[0].mxu0
    %448 = vmatprep.mubr.f32.mxu0 0.0
    %449 = vmatmul.mubr.f32.gmra.mrb[0].mxu0 %v377
    %v450 = vpop.f32.mrb[0].mxu0
    %v451 = vadd.f32 %v371, %v450
    %v452 = vpop.f32.mrb[0].mxu0
    %453 = vdwg.mxu0
    %v455 = vlaneseq
    %v456 = vshrl.u32 %v455, 7
    %v457 = vsub.s32 0, %v456
    %v458 = vrot.slane %v366, %v457
    %v460 = vadd.f32 %v349, %v458
    %v461 = vadd.f32 %v354, %v458
    %463 = vrot.lane.b32.xlu0 %v446, 96
    %v464 = vpop.permute.xlu0 %463
    %vm465 = vcmask 64512
    %v466 = vsel %vm465, %v446, 0
    %v468 = vsel %vm465, %v464, 0
    %470 = vmatprep.subr.mxu0 0.0
    %471 = vmatpush1.xpose.msra.mxu0 %v468
    %472 = vmatprep.subr.mxu0 0.0
    %473 = vmatpush1.xpose.msra.mxu0 0.0
    %474 = vmatprep.subr.mxu0 0.0
    %475 = vmatpush1.xpose.msra.mxu0 0.0
    %476 = vmatprep.subr.mxu0 0.0
    %477 = vmatpush1.xpose.msra.mxu0 0.0
    %478 = vmatprep.subr.mxu0 0.0
    %479 = vmatpush1.xpose.msra.mxu0 0.0
    %480 = vmatprep.subr.mxu0 0.0
    %481 = vmatpush1.xpose.msra.mxu0 0.0
    %482 = vmatprep.subr.mxu0 0.0
    %483 = vmatpush1.xpose.msra.mxu0 0.0
    %484 = vmatprep.subr.mxu0 0.0
    %485 = vmatpush1.xpose.msra.mxu0 0.0
    %486 = vmatprep.subr.mxu0 0.0
    %487 = vmatpush1.xpose.msra.mxu0 0.0
    %488 = vmatprep.subr.mxu0 0.0
    %489 = vmatpush1.xpose.msra.mxu0 0.0
    %490 = vmatprep.subr.mxu0 0.0
    %491 = vmatpush1.xpose.msra.mxu0 0.0
    %492 = vmatprep.subr.mxu0 0.0
    %493 = vmatpush1.xpose.msra.mxu0 0.0
    %494 = vmatprep.subr.mxu0 0.0
    %495 = vmatpush1.xpose.msra.mxu0 0.0
    %496 = vmatprep.subr.mxu0 0.0
    %497 = vmatpush1.xpose.msra.mxu0 0.0
    %498 = vmatprep.subr.mxu0 0.0
    %499 = vmatpush1.xpose.msra.mxu0 0.0
    %500 = vmatprep.subr.mxu0 0.0
    %501 = vmatpush1.xpose.msra.mxu0 0.0
    %502 = vmatprep.subr.mxu0 0.0
    %503 = vmatpush1.xpose.msra.mxu0 0.0
    %504 = vmatprep.subr.mxu0 0.0
    %505 = vmatpush1.xpose.msra.mxu0 0.0
    %506 = vmatprep.subr.mxu0 0.0
    %507 = vmatpush1.xpose.msra.mxu0 0.0
    %508 = vmatprep.subr.mxu0 0.0
    %509 = vmatpush1.xpose.msra.mxu0 0.0
    %510 = vmatprep.subr.mxu0 0.0
    %511 = vmatpush1.xpose.msra.mxu0 0.0
    %512 = vmatprep.subr.mxu0 0.0
    %513 = vmatpush1.xpose.msra.mxu0 0.0
    %514 = vmatprep.subr.mxu0 0.0
    %515 = vmatpush1.xpose.msra.mxu0 0.0
    %516 = vmatprep.subr.mxu0 0.0
    %517 = vmatpush1.xpose.msra.mxu0 0.0
    %518 = vmatprep.subr.mxu0 0.0
    %519 = vmatpush1.xpose.msra.mxu0 0.0
    %520 = vmatprep.subr.mxu0 0.0
    %521 = vmatpush1.xpose.msra.mxu0 0.0
    %522 = vmatprep.subr.mxu0 0.0
    %523 = vmatpush1.xpose.msra.mxu0 0.0
    %524 = vmatprep.subr.mxu0 0.0
    %525 = vmatpush1.xpose.msra.mxu0 0.0
    %526 = vmatprep.subr.mxu0 0.0
    %527 = vmatpush1.xpose.msra.mxu0 0.0
    %528 = vmatprep.subr.mxu0 0.0
    %529 = vmatpush1.xpose.msra.mxu0 0.0
    %530 = vmatprep.subr.mxu0 0.0
    %531 = vmatpush1.xpose.msra.mxu0 0.0
    %532 = vmatprep.subr.mxu0 0.0
    %533 = vmatpush1.xpose.msra.mxu0 0.0
    %534 = vmatprep.mubr.f32.mxu0 0.0
    %535 = vmatmul.mubr.f32.gmra.mrb[0].mxu0 %v466
    %v536 = vpop.f32.mrb[0].mxu0
    %v537 = vadd.f32 0.0, %v536
    %v538 = vpop.f32.mrb[0].mxu0
    %539 = vdwg.mxu0
    %541 = vrot.lane.b32.xlu0 %v451, 96
    %v542 = vpop.permute.xlu0 %541
    %v543 = vsel %vm465, %v451, 0
    %v545 = vsel %vm465, %v542, 0
    %547 = vmatprep.subr.mxu0 0.0
    %548 = vmatpush1.xpose.msra.mxu0 %v545
    %549 = vmatprep.subr.mxu0 0.0
    %550 = vmatpush1.xpose.msra.mxu0 0.0
    %551 = vmatprep.subr.mxu0 0.0
    %552 = vmatpush1.xpose.msra.mxu0 0.0
    %553 = vmatprep.subr.mxu0 0.0
    %554 = vmatpush1.xpose.msra.mxu0 0.0
    %555 = vmatprep.subr.mxu0 0.0
    %556 = vmatpush1.xpose.msra.mxu0 0.0
    %557 = vmatprep.subr.mxu0 0.0
    %558 = vmatpush1.xpose.msra.mxu0 0.0
    %559 = vmatprep.subr.mxu0 0.0
    %560 = vmatpush1.xpose.msra.mxu0 0.0
    %561 = vmatprep.subr.mxu0 0.0
    %562 = vmatpush1.xpose.msra.mxu0 0.0
    %563 = vmatprep.subr.mxu0 0.0
    %564 = vmatpush1.xpose.msra.mxu0 0.0
    %565 = vmatprep.subr.mxu0 0.0
    %566 = vmatpush1.xpose.msra.mxu0 0.0
    %567 = vmatprep.subr.mxu0 0.0
    %568 = vmatpush1.xpose.msra.mxu0 0.0
    %569 = vmatprep.subr.mxu0 0.0
    %570 = vmatpush1.xpose.msra.mxu0 0.0
    %571 = vmatprep.subr.mxu0 0.0
    %572 = vmatpush1.xpose.msra.mxu0 0.0
    %573 = vmatprep.subr.mxu0 0.0
    %574 = vmatpush1.xpose.msra.mxu0 0.0
    %575 = vmatprep.subr.mxu0 0.0
    %576 = vmatpush1.xpose.msra.mxu0 0.0
    %577 = vmatprep.subr.mxu0 0.0
    %578 = vmatpush1.xpose.msra.mxu0 0.0
    %579 = vmatprep.subr.mxu0 0.0
    %580 = vmatpush1.xpose.msra.mxu0 0.0
    %581 = vmatprep.subr.mxu0 0.0
    %582 = vmatpush1.xpose.msra.mxu0 0.0
    %583 = vmatprep.subr.mxu0 0.0
    %584 = vmatpush1.xpose.msra.mxu0 0.0
    %585 = vmatprep.subr.mxu0 0.0
    %586 = vmatpush1.xpose.msra.mxu0 0.0
    %587 = vmatprep.subr.mxu0 0.0
    %588 = vmatpush1.xpose.msra.mxu0 0.0
    %589 = vmatprep.subr.mxu0 0.0
    %590 = vmatpush1.xpose.msra.mxu0 0.0
    %591 = vmatprep.subr.mxu0 0.0
    %592 = vmatpush1.xpose.msra.mxu0 0.0
    %593 = vmatprep.subr.mxu0 0.0
    %594 = vmatpush1.xpose.msra.mxu0 0.0
    %595 = vmatprep.subr.mxu0 0.0
    %596 = vmatpush1.xpose.msra.mxu0 0.0
    %597 = vmatprep.subr.mxu0 0.0
    %598 = vmatpush1.xpose.msra.mxu0 0.0
    %599 = vmatprep.subr.mxu0 0.0
    %600 = vmatpush1.xpose.msra.mxu0 0.0
    %601 = vmatprep.subr.mxu0 0.0
    %602 = vmatpush1.xpose.msra.mxu0 0.0
    %603 = vmatprep.subr.mxu0 0.0
    %604 = vmatpush1.xpose.msra.mxu0 0.0
    %605 = vmatprep.subr.mxu0 0.0
    %606 = vmatpush1.xpose.msra.mxu0 0.0
    %607 = vmatprep.subr.mxu0 0.0
    %608 = vmatpush1.xpose.msra.mxu0 0.0
    %609 = vmatprep.subr.mxu0 0.0
    %610 = vmatpush1.xpose.msra.mxu0 0.0
    %611 = vmatprep.mubr.f32.mxu0 0.0
    %612 = vmatmul.mubr.f32.gmra.mrb[0].mxu0 %v543
    %v613 = vpop.f32.mrb[0].mxu0
    %v614 = vadd.f32 0.0, %v613
    %v615 = vpop.f32.mrb[0].mxu0
    %616 = vdwg.mxu0
    %v617 = vmul.f32 %v537, 0.35355338
    %v618 = vmul.f32 %v614, 0.35355338
    %v619 = vsel %vm465, %v617, -inf
    %620 = vmax.xlane.f32.xlu0 %v619
    %v621 = vpop.xlane.xlu0 %620
    %v622 = vsel %vm465, %v618, -inf
    %623 = vmax.xlane.f32.xlu0 %v622
    %v624 = vpop.xlane.xlu0 %623
    %v625 = vsub.f32 %v617, %v621
    %v626 = vsub.f32 %v618, %v624
    %v627 = vmul.f32 %v625, 1.442695
    %v628 = vpow.pop %v627
    %v629 = vmul.f32 %v626, 1.442695
    %v630 = vpow.pop %v629
    %v631 = vsel %vm465, %v628, 0.0
    %632 = vadd.xlane.f32.xlu0 %v631
    %v633 = vpop.xlane.xlu0 %632
    %v634 = vsel %vm465, %v630, 0.0
    %635 = vadd.xlane.f32.xlu0 %v634
    %v636 = vpop.xlane.xlu0 %635
    %v637 = vrcp.pop %v633
    %v638 = vrcp.pop %v636
    %v639 = vmul.f32 %v628, %v637
    %v640 = vmul.f32 %v630, %v638
    %641 = vrot.lane.b32.xlu0 %v446, 64
    %v642 = vpop.permute.xlu0 %641
    %v645 = vsel %vm465, %v639, 0
    %647 = vmatprep.subr.mxu0 0.0
    %648 = vmatpush1.msra.mxu0 %v642
    %649 = vmatprep.subr.mxu0 0.0
    %650 = vmatpush1.msra.mxu0 0.0
    %651 = vmatprep.subr.mxu0 0.0
    %652 = vmatpush1.msra.mxu0 0.0
    %653 = vmatprep.subr.mxu0 0.0
    %654 = vmatpush1.msra.mxu0 0.0
    %655 = vmatprep.subr.mxu0 0.0
    %656 = vmatpush1.msra.mxu0 0.0
    %657 = vmatprep.subr.mxu0 0.0
    %658 = vmatpush1.msra.mxu0 0.0
    %659 = vmatprep.subr.mxu0 0.0
    %660 = vmatpush1.msra.mxu0 0.0
    %661 = vmatprep.subr.mxu0 0.0
    %662 = vmatpush1.msra.mxu0 0.0
    %663 = vmatprep.subr.mxu0 0.0
    %664 = vmatpush1.msra.mxu0 0.0
    %665 = vmatprep.subr.mxu0 0.0
    %666 = vmatpush1.msra.mxu0 0.0
    %667 = vmatprep.subr.mxu0 0.0
    %668 = vmatpush1.msra.mxu0 0.0
    %669 = vmatprep.subr.mxu0 0.0
    %670 = vmatpush1.msra.mxu0 0.0
    %671 = vmatprep.subr.mxu0 0.0
    %672 = vmatpush1.msra.mxu0 0.0
    %673 = vmatprep.subr.mxu0 0.0
    %674 = vmatpush1.msra.mxu0 0.0
    %675 = vmatprep.subr.mxu0 0.0
    %676 = vmatpush1.msra.mxu0 0.0
    %677 = vmatprep.subr.mxu0 0.0
    %678 = vmatpush1.msra.mxu0 0.0
    %679 = vmatprep.subr.mxu0 0.0
    %680 = vmatpush1.msra.mxu0 0.0
    %681 = vmatprep.subr.mxu0 0.0
    %682 = vmatpush1.msra.mxu0 0.0
    %683 = vmatprep.subr.mxu0 0.0
    %684 = vmatpush1.msra.mxu0 0.0
    %685 = vmatprep.subr.mxu0 0.0
    %686 = vmatpush1.msra.mxu0 0.0
    %687 = vmatprep.subr.mxu0 0.0
    %688 = vmatpush1.msra.mxu0 0.0
    %689 = vmatprep.subr.mxu0 0.0
    %690 = vmatpush1.msra.mxu0 0.0
    %691 = vmatprep.subr.mxu0 0.0
    %692 = vmatpush1.msra.mxu0 0.0
    %693 = vmatprep.subr.mxu0 0.0
    %694 = vmatpush1.msra.mxu0 0.0
    %695 = vmatprep.subr.mxu0 0.0
    %696 = vmatpush1.msra.mxu0 0.0
    %697 = vmatprep.subr.mxu0 0.0
    %698 = vmatpush1.msra.mxu0 0.0
    %699 = vmatprep.subr.mxu0 0.0
    %700 = vmatpush1.msra.mxu0 0.0
    %701 = vmatprep.subr.mxu0 0.0
    %702 = vmatpush1.msra.mxu0 0.0
    %703 = vmatprep.subr.mxu0 0.0
    %704 = vmatpush1.msra.mxu0 0.0
    %705 = vmatprep.subr.mxu0 0.0
    %706 = vmatpush1.msra.mxu0 0.0
    %707 = vmatprep.subr.mxu0 0.0
    %708 = vmatpush1.msra.mxu0 0.0
    %709 = vmatprep.subr.mxu0 0.0
    %710 = vmatpush1.msra.mxu0 0.0
    %711 = vmatprep.mubr.f32.mxu0 0.0
    %712 = vmatmul.mubr.f32.gmra.mrb[0].mxu0 %v645
    %v713 = vpop.f32.mrb[0].mxu0
    %v714 = vadd.f32 0.0, %v713
    %v715 = vpop.f32.mrb[0].mxu0
    %716 = vdwg.mxu0
    %717 = vrot.lane.b32.xlu0 %v451, 64
    %v718 = vpop.permute.xlu0 %717
    %v721 = vsel %vm465, %v640, 0
    %723 = vmatprep.subr.mxu0 0.0
    %724 = vmatpush1.msra.mxu0 %v718
    %725 = vmatprep.subr.mxu0 0.0
    %726 = vmatpush1.msra.mxu0 0.0
    %727 = vmatprep.subr.mxu0 0.0
    %728 = vmatpush1.msra.mxu0 0.0
    %729 = vmatprep.subr.mxu0 0.0
    %730 = vmatpush1.msra.mxu0 0.0
    %731 = vmatprep.subr.mxu0 0.0
    %732 = vmatpush1.msra.mxu0 0.0
    %733 = vmatprep.subr.mxu0 0.0
    %734 = vmatpush1.msra.mxu0 0.0
    %735 = vmatprep.subr.mxu0 0.0
    %736 = vmatpush1.msra.mxu0 0.0
    %737 = vmatprep.subr.mxu0 0.0
    %738 = vmatpush1.msra.mxu0 0.0
    %739 = vmatprep.subr.mxu0 0.0
    %740 = vmatpush1.msra.mxu0 0.0
    %741 = vmatprep.subr.mxu0 0.0
    %742 = vmatpush1.msra.mxu0 0.0
    %743 = vmatprep.subr.mxu0 0.0
    %744 = vmatpush1.msra.mxu0 0.0
    %745 = vmatprep.subr.mxu0 0.0
    %746 = vmatpush1.msra.mxu0 0.0
    %747 = vmatprep.subr.mxu0 0.0
    %748 = vmatpush1.msra.mxu0 0.0
    %749 = vmatprep.subr.mxu0 0.0
    %750 = vmatpush1.msra.mxu0 0.0
    %751 = vmatprep.subr.mxu0 0.0
    %752 = vmatpush1.msra.mxu0 0.0
    %753 = vmatprep.subr.mxu0 0.0
    %754 = vmatpush1.msra.mxu0 0.0
    %755 = vmatprep.subr.mxu0 0.0
    %756 = vmatpush1.msra.mxu0 0.0
    %757 = vmatprep.subr.mxu0 0.0
    %758 = vmatpush1.msra.mxu0 0.0
    %759 = vmatprep.subr.mxu0 0.0
    %760 = vmatpush1.msra.mxu0 0.0
    %761 = vmatprep.subr.mxu0 0.0
    %762 = vmatpush1.msra.mxu0 0.0
    %763 = vmatprep.subr.mxu0 0.0
    %764 = vmatpush1.msra.mxu0 0.0
    %765 = vmatprep.subr.mxu0 0.0
    %766 = vmatpush1.msra.mxu0 0.0
    %767 = vmatprep.subr.mxu0 0.0
    %768 = vmatpush1.msra.mxu0 0.0
    %769 = vmatprep.subr.mxu0 0.0
    %770 = vmatpush1.msra.mxu0 0.0
    %771 = vmatprep.subr.mxu0 0.0
    %772 = vmatpush1.msra.mxu0 0.0
    %773 = vmatprep.subr.mxu0 0.0
    %774 = vmatpush1.msra.mxu0 0.0
    %775 = vmatprep.subr.mxu0 0.0
    %776 = vmatpush1.msra.mxu0 0.0
    %777 = vmatprep.subr.mxu0 0.0
    %778 = vmatpush1.msra.mxu0 0.0
    %779 = vmatprep.subr.mxu0 0.0
    %780 = vmatpush1.msra.mxu0 0.0
    %781 = vmatprep.subr.mxu0 0.0
    %782 = vmatpush1.msra.mxu0 0.0
    %783 = vmatprep.subr.mxu0 0.0
    %784 = vmatpush1.msra.mxu0 0.0
    %785 = vmatprep.subr.mxu0 0.0
    %786 = vmatpush1.msra.mxu0 0.0
    %787 = vmatprep.mubr.f32.mxu0 0.0
    %788 = vmatmul.mubr.f32.gmra.mrb[0].mxu0 %v721
    %v789 = vpop.f32.mrb[0].mxu0
    %v790 = vadd.f32 0.0, %v789
    %v791 = vpop.f32.mrb[0].mxu0
    %792 = vdwg.mxu0
    %v794 = vsel %vm465, %v714, 0
    %v797 = vsel %vm465, %v790, 0
    %799 = vmatprep.subr.mxu0 0.0
    %800 = vmatpush1.msra.mxu0 %v362
    %801 = vmatprep.subr.mxu0 0.0
    %802 = vmatpush1.msra.mxu0 0.0
    %803 = vmatprep.subr.mxu0 0.0
    %804 = vmatpush1.msra.mxu0 0.0
    %805 = vmatprep.subr.mxu0 0.0
    %806 = vmatpush1.msra.mxu0 0.0
    %807 = vmatprep.subr.mxu0 0.0
    %808 = vmatpush1.msra.mxu0 0.0
    %809 = vmatprep.subr.mxu0 0.0
    %810 = vmatpush1.msra.mxu0 0.0
    %811 = vmatprep.subr.mxu0 0.0
    %812 = vmatpush1.msra.mxu0 0.0
    %813 = vmatprep.subr.mxu0 0.0
    %814 = vmatpush1.msra.mxu0 0.0
    %815 = vmatprep.subr.mxu0 0.0
    %816 = vmatpush1.msra.mxu0 0.0
    %817 = vmatprep.subr.mxu0 0.0
    %818 = vmatpush1.msra.mxu0 0.0
    %819 = vmatprep.subr.mxu0 0.0
    %820 = vmatpush1.msra.mxu0 0.0
    %821 = vmatprep.subr.mxu0 0.0
    %822 = vmatpush1.msra.mxu0 0.0
    %823 = vmatprep.subr.mxu0 0.0
    %824 = vmatpush1.msra.mxu0 0.0
    %825 = vmatprep.subr.mxu0 0.0
    %826 = vmatpush1.msra.mxu0 0.0
    %827 = vmatprep.subr.mxu0 0.0
    %828 = vmatpush1.msra.mxu0 0.0
    %829 = vmatprep.subr.mxu0 0.0
    %830 = vmatpush1.msra.mxu0 0.0
    %831 = vmatprep.subr.mxu0 0.0
    %832 = vmatpush1.msra.mxu0 0.0
    %833 = vmatprep.subr.mxu0 0.0
    %834 = vmatpush1.msra.mxu0 0.0
    %835 = vmatprep.subr.mxu0 0.0
    %836 = vmatpush1.msra.mxu0 0.0
    %837 = vmatprep.subr.mxu0 0.0
    %838 = vmatpush1.msra.mxu0 0.0
    %839 = vmatprep.subr.mxu0 0.0
    %840 = vmatpush1.msra.mxu0 0.0
    %841 = vmatprep.subr.mxu0 0.0
    %842 = vmatpush1.msra.mxu0 0.0
    %843 = vmatprep.subr.mxu0 0.0
    %844 = vmatpush1.msra.mxu0 0.0
    %845 = vmatprep.subr.mxu0 0.0
    %846 = vmatpush1.msra.mxu0 0.0
    %847 = vmatprep.subr.mxu0 0.0
    %848 = vmatpush1.msra.mxu0 0.0
    %849 = vmatprep.subr.mxu0 0.0
    %850 = vmatpush1.msra.mxu0 0.0
    %851 = vmatprep.subr.mxu0 0.0
    %852 = vmatpush1.msra.mxu0 0.0
    %853 = vmatprep.subr.mxu0 0.0
    %854 = vmatpush1.msra.mxu0 0.0
    %855 = vmatprep.subr.mxu0 0.0
    %856 = vmatpush1.msra.mxu0 0.0
    %857 = vmatprep.subr.mxu0 0.0
    %858 = vmatpush1.msra.mxu0 0.0
    %859 = vmatprep.subr.mxu0 0.0
    %860 = vmatpush1.msra.mxu0 0.0
    %861 = vmatprep.subr.mxu0 0.0
    %862 = vmatpush1.msra.mxu0 0.0
    %863 = vmatprep.mubr.f32.mxu0 0.0
    %864 = vmatmul.mubr.f32.gmra.mrb[0].mxu0 %v794
    %v865 = vpop.f32.mrb[0].mxu0
    %v866 = vadd.f32 0.0, %v865
    %v867 = vpop.f32.mrb[0].mxu0
    %868 = vmatprep.mubr.f32.mxu0 0.0
    %869 = vmatmul.mubr.f32.gmra.mrb[0].mxu0 %v797
    %v870 = vpop.f32.mrb[0].mxu0
    %v871 = vadd.f32 0.0, %v870
    %v872 = vpop.f32.mrb[0].mxu0
    %873 = vdwg.mxu0
    %v874 = vadd.f32 %v460, %v866
    %v875 = vadd.f32 %v461, %v871
    %876 = vrot.lane.b32.xlu0 %v446, 120
    %v877 = vpop.permute.xlu0 %876
    %878 = vrot.lane.b32.xlu0 %v446, 88
    %v879 = vpop.permute.xlu0 %878
    %v880 = vsel %vm465, %v877, 0
    %v882 = vsel %vm465, %v879, 0
    %884 = vmatprep.subr.mxu0 0.0
    %885 = vmatpush1.xpose.msra.mxu0 %v882
    %886 = vmatprep.subr.mxu0 0.0
    %887 = vmatpush1.xpose.msra.mxu0 0.0
    %888 = vmatprep.subr.mxu0 0.0
    %889 = vmatpush1.xpose.msra.mxu0 0.0
    %890 = vmatprep.subr.mxu0 0.0
    %891 = vmatpush1.xpose.msra.mxu0 0.0
    %892 = vmatprep.subr.mxu0 0.0
    %893 = vmatpush1.xpose.msra.mxu0 0.0
    %894 = vmatprep.subr.mxu0 0.0
    %895 = vmatpush1.xpose.msra.mxu0 0.0
    %896 = vmatprep.subr.mxu0 0.0
    %897 = vmatpush1.xpose.msra.mxu0 0.0
    %898 = vmatprep.subr.mxu0 0.0
    %899 = vmatpush1.xpose.msra.mxu0 0.0
    %900 = vmatprep.subr.mxu0 0.0
    %901 = vmatpush1.xpose.msra.mxu0 0.0
    %902 = vmatprep.subr.mxu0 0.0
    %903 = vmatpush1.xpose.msra.mxu0 0.0
    %904 = vmatprep.subr.mxu0 0.0
    %905 = vmatpush1.xpose.msra.mxu0 0.0
    %906 = vmatprep.subr.mxu0 0.0
    %907 = vmatpush1.xpose.msra.mxu0 0.0
    %908 = vmatprep.subr.mxu0 0.0
    %909 = vmatpush1.xpose.msra.mxu0 0.0
    %910 = vmatprep.subr.mxu0 0.0
    %911 = vmatpush1.xpose.msra.mxu0 0.0
    %912 = vmatprep.subr.mxu0 0.0
    %913 = vmatpush1.xpose.msra.mxu0 0.0
    %914 = vmatprep.subr.mxu0 0.0
    %915 = vmatpush1.xpose.msra.mxu0 0.0
    %916 = vmatprep.subr.mxu0 0.0
    %917 = vmatpush1.xpose.msra.mxu0 0.0
    %918 = vmatprep.subr.mxu0 0.0
    %919 = vmatpush1.xpose.msra.mxu0 0.0
    %920 = vmatprep.subr.mxu0 0.0
    %921 = vmatpush1.xpose.msra.mxu0 0.0
    %922 = vmatprep.subr.mxu0 0.0
    %923 = vmatpush1.xpose.msra.mxu0 0.0
    %924 = vmatprep.subr.mxu0 0.0
    %925 = vmatpush1.xpose.msra.mxu0 0.0
    %926 = vmatprep.subr.mxu0 0.0
    %927 = vmatpush1.xpose.msra.mxu0 0.0
    %928 = vmatprep.subr.mxu0 0.0
    %929 = vmatpush1.xpose.msra.mxu0 0.0
    %930 = vmatprep.subr.mxu0 0.0
    %931 = vmatpush1.xpose.msra.mxu0 0.0
    %932 = vmatprep.subr.mxu0 0.0
    %933 = vmatpush1.xpose.msra.mxu0 0.0
    %934 = vmatprep.subr.mxu0 0.0
    %935 = vmatpush1.xpose.msra.mxu0 0.0
    %936 = vmatprep.subr.mxu0 0.0
    %937 = vmatpush1.xpose.msra.mxu0 0.0
    %938 = vmatprep.subr.mxu0 0.0
    %939 = vmatpush1.xpose.msra.mxu0 0.0
    %940 = vmatprep.subr.mxu0 0.0
    %941 = vmatpush1.xpose.msra.mxu0 0.0
    %942 = vmatprep.subr.mxu0 0.0
    %943 = vmatpush1.xpose.msra.mxu0 0.0
    %944 = vmatprep.subr.mxu0 0.0
    %945 = vmatpush1.xpose.msra.mxu0 0.0
    %946 = vmatprep.subr.mxu0 0.0
    %947 = vmatpush1.xpose.msra.mxu0 0.0
    %948 = vmatprep.mubr.f32.mxu0 0.0
    %949 = vmatmul.mubr.f32.gmra.mrb[0].mxu0 %v880
    %v950 = vpop.f32.mrb[0].mxu0
    %v951 = vadd.f32 0.0, %v950
    %v952 = vpop.f32.mrb[0].mxu0
    %953 = vdwg.mxu0
    %954 = vrot.lane.b32.xlu0 %v451, 120
    %v955 = vpop.permute.xlu0 %954
    %956 = vrot.lane.b32.xlu0 %v451, 88
    %v957 = vpop.permute.xlu0 %956
    %v958 = vsel %vm465, %v955, 0
    %v960 = vsel %vm465, %v957, 0
    %962 = vmatprep.subr.mxu0 0.0
    %963 = vmatpush1.xpose.msra.mxu0 %v960
    %964 = vmatprep.subr.mxu0 0.0
    %965 = vmatpush1.xpose.msra.mxu0 0.0
    %966 = vmatprep.subr.mxu0 0.0
    %967 = vmatpush1.xpose.msra.mxu0 0.0
    %968 = vmatprep.subr.mxu0 0.0
    %969 = vmatpush1.xpose.msra.mxu0 0.0
    %970 = vmatprep.subr.mxu0 0.0
    %971 = vmatpush1.xpose.msra.mxu0 0.0
    %972 = vmatprep.subr.mxu0 0.0
    %973 = vmatpush1.xpose.msra.mxu0 0.0
    %974 = vmatprep.subr.mxu0 0.0
    %975 = vmatpush1.xpose.msra.mxu0 0.0
    %976 = vmatprep.subr.mxu0 0.0
    %977 = vmatpush1.xpose.msra.mxu0 0.0
    %978 = vmatprep.subr.mxu0 0.0
    %979 = vmatpush1.xpose.msra.mxu0 0.0
    %980 = vmatprep.subr.mxu0 0.0
    %981 = vmatpush1.xpose.msra.mxu0 0.0
    %982 = vmatprep.subr.mxu0 0.0
    %983 = vmatpush1.xpose.msra.mxu0 0.0
    %984 = vmatprep.subr.mxu0 0.0
    %985 = vmatpush1.xpose.msra.mxu0 0.0
    %986 = vmatprep.subr.mxu0 0.0
    %987 = vmatpush1.xpose.msra.mxu0 0.0
    %988 = vmatprep.subr.mxu0 0.0
    %989 = vmatpush1.xpose.msra.mxu0 0.0
    %990 = vmatprep.subr.mxu0 0.0
    %991 = vmatpush1.xpose.msra.mxu0 0.0
    %992 = vmatprep.subr.mxu0 0.0
    %993 = vmatpush1.xpose.msra.mxu0 0.0
    %994 = vmatprep.subr.mxu0 0.0
    %995 = vmatpush1.xpose.msra.mxu0 0.0
    %996 = vmatprep.subr.mxu0 0.0
    %997 = vmatpush1.xpose.msra.mxu0 0.0
    %998 = vmatprep.subr.mxu0 0.0
    %999 = vmatpush1.xpose.msra.mxu0 0.0
    %1000 = vmatprep.subr.mxu0 0.0
    %1001 = vmatpush1.xpose.msra.mxu0 0.0
    %1002 = vmatprep.subr.mxu0 0.0
    %1003 = vmatpush1.xpose.msra.mxu0 0.0
    %1004 = vmatprep.subr.mxu0 0.0
    %1005 = vmatpush1.xpose.msra.mxu0 0.0
    %1006 = vmatprep.subr.mxu0 0.0
    %1007 = vmatpush1.xpose.msra.mxu0 0.0
    %1008 = vmatprep.subr.mxu0 0.0
    %1009 = vmatpush1.xpose.msra.mxu0 0.0
    %1010 = vmatprep.subr.mxu0 0.0
    %1011 = vmatpush1.xpose.msra.mxu0 0.0
    %1012 = vmatprep.subr.mxu0 0.0
    %1013 = vmatpush1.xpose.msra.mxu0 0.0
    %1014 = vmatprep.subr.mxu0 0.0
    %1015 = vmatpush1.xpose.msra.mxu0 0.0
    %1016 = vmatprep.subr.mxu0 0.0
    %1017 = vmatpush1.xpose.msra.mxu0 0.0
    %1018 = vmatprep.subr.mxu0 0.0
    %1019 = vmatpush1.xpose.msra.mxu0 0.0
    %1020 = vmatprep.subr.mxu0 0.0
    %1021 = vmatpush1.xpose.msra.mxu0 0.0
    %1022 = vmatprep.subr.mxu0 0.0
    %1023 = vmatpush1.xpose.msra.mxu0 0.0
    %1024 = vmatprep.subr.mxu0 0.0
    %1025 = vmatpush1.xpose.msra.mxu0 0.0
    %1026 = vmatprep.mubr.f32.mxu0 0.0
    %1027 = vmatmul.mubr.f32.gmra.mrb[0].mxu0 %v958
    %v1028 = vpop.f32.mrb[0].mxu0
    %v1029 = vadd.f32 0.0, %v1028
    %v1030 = vpop.f32.mrb[0].mxu0
    %1031 = vdwg.mxu0
    %v1032 = vmul.f32 %v951, 0.35355338
    %v1033 = vmul.f32 %v1029, 0.35355338
    %v1034 = vsel %vm465, %v1032, -inf
    %1035 = vmax.xlane.f32.xlu0 %v1034
    %v1036 = vpop.xlane.xlu0 %1035
    %v1037 = vsel %vm465, %v1033, -inf
    %1038 = vmax.xlane.f32.xlu0 %v1037
    %v1039 = vpop.xlane.xlu0 %1038
    %v1040 = vsub.f32 %v1032, %v1036
    %v1041 = vsub.f32 %v1033, %v1039
    %v1042 = vmul.f32 %v1040, 1.442695
    %v1043 = vpow.pop %v1042
    %v1044 = vmul.f32 %v1041, 1.442695
    %v1045 = vpow.pop %v1044
    %v1046 = vsel %vm465, %v1043, 0.0
    %1047 = vadd.xlane.f32.xlu0 %v1046
    %v1048 = vpop.xlane.xlu0 %1047
    %v1049 = vsel %vm465, %v1045, 0.0
    %1050 = vadd.xlane.f32.xlu0 %v1049
    %v1051 = vpop.xlane.xlu0 %1050
    %v1052 = vrcp.pop %v1048
    %v1053 = vrcp.pop %v1051
    %v1054 = vmul.f32 %v1043, %v1052
    %v1055 = vmul.f32 %v1045, %v1053
    %1056 = vrot.lane.b32.xlu0 %v446, 56
    %v1057 = vpop.permute.xlu0 %1056
    %v1060 = vsel %vm465, %v1054, 0
    %1062 = vmatprep.subr.mxu0 0.0
    %1063 = vmatpush1.msra.mxu0 %v1057
    %1064 = vmatprep.subr.mxu0 0.0
    %1065 = vmatpush1.msra.mxu0 0.0
    %1066 = vmatprep.subr.mxu0 0.0
    %1067 = vmatpush1.msra.mxu0 0.0
    %1068 = vmatprep.subr.mxu0 0.0
    %1069 = vmatpush1.msra.mxu0 0.0
    %1070 = vmatprep.subr.mxu0 0.0
    %1071 = vmatpush1.msra.mxu0 0.0
    %1072 = vmatprep.subr.mxu0 0.0
    %1073 = vmatpush1.msra.mxu0 0.0
    %1074 = vmatprep.subr.mxu0 0.0
    %1075 = vmatpush1.msra.mxu0 0.0
    %1076 = vmatprep.subr.mxu0 0.0
    %1077 = vmatpush1.msra.mxu0 0.0
    %1078 = vmatprep.subr.mxu0 0.0
    %1079 = vmatpush1.msra.mxu0 0.0
    %1080 = vmatprep.subr.mxu0 0.0
    %1081 = vmatpush1.msra.mxu0 0.0
    %1082 = vmatprep.subr.mxu0 0.0
    %1083 = vmatpush1.msra.mxu0 0.0
    %1084 = vmatprep.subr.mxu0 0.0
    %1085 = vmatpush1.msra.mxu0 0.0
    %1086 = vmatprep.subr.mxu0 0.0
    %1087 = vmatpush1.msra.mxu0 0.0
    %1088 = vmatprep.subr.mxu0 0.0
    %1089 = vmatpush1.msra.mxu0 0.0
    %1090 = vmatprep.subr.mxu0 0.0
    %1091 = vmatpush1.msra.mxu0 0.0
    %1092 = vmatprep.subr.mxu0 0.0
    %1093 = vmatpush1.msra.mxu0 0.0
    %1094 = vmatprep.subr.mxu0 0.0
    %1095 = vmatpush1.msra.mxu0 0.0
    %1096 = vmatprep.subr.mxu0 0.0
    %1097 = vmatpush1.msra.mxu0 0.0
    %1098 = vmatprep.subr.mxu0 0.0
    %1099 = vmatpush1.msra.mxu0 0.0
    %1100 = vmatprep.subr.mxu0 0.0
    %1101 = vmatpush1.msra.mxu0 0.0
    %1102 = vmatprep.subr.mxu0 0.0
    %1103 = vmatpush1.msra.mxu0 0.0
    %1104 = vmatprep.subr.mxu0 0.0
    %1105 = vmatpush1.msra.mxu0 0.0
    %1106 = vmatprep.subr.mxu0 0.0
    %1107 = vmatpush1.msra.mxu0 0.0
    %1108 = vmatprep.subr.mxu0 0.0
    %1109 = vmatpush1.msra.mxu0 0.0
    %1110 = vmatprep.subr.mxu0 0.0
    %1111 = vmatpush1.msra.mxu0 0.0
    %1112 = vmatprep.subr.mxu0 0.0
    %1113 = vmatpush1.msra.mxu0 0.0
    %1114 = vmatprep.subr.mxu0 0.0
    %1115 = vmatpush1.msra.mxu0 0.0
    %1116 = vmatprep.subr.mxu0 0.0
    %1117 = vmatpush1.msra.mxu0 0.0
    %1118 = vmatprep.subr.mxu0 0.0
    %1119 = vmatpush1.msra.mxu0 0.0
    %1120 = vmatprep.subr.mxu0 0.0
    %1121 = vmatpush1.msra.mxu0 0.0
    %1122 = vmatprep.subr.mxu0 0.0
    %1123 = vmatpush1.msra.mxu0 0.0
    %1124 = vmatprep.subr.mxu0 0.0
    %1125 = vmatpush1.msra.mxu0 0.0
    %1126 = vmatprep.mubr.f32.mxu0 0.0
    %1127 = vmatmul.mubr.f32.gmra.mrb[0].mxu0 %v1060
    %v1128 = vpop.f32.mrb[0].mxu0
    %v1129 = vadd.f32 0.0, %v1128
    %v1130 = vpop.f32.mrb[0].mxu0
    %1131 = vdwg.mxu0
    %1132 = vrot.lane.b32.xlu0 %v451, 56
    %v1133 = vpop.permute.xlu0 %1132
    %v1136 = vsel %vm465, %v1055, 0
    %1138 = vmatprep.subr.mxu0 0.0
    %1139 = vmatpush1.msra.mxu0 %v1133
    %1140 = vmatprep.subr.mxu0 0.0
    %1141 = vmatpush1.msra.mxu0 0.0
    %1142 = vmatprep.subr.mxu0 0.0
    %1143 = vmatpush1.msra.mxu0 0.0
    %1144 = vmatprep.subr.mxu0 0.0
    %1145 = vmatpush1.msra.mxu0 0.0
    %1146 = vmatprep.subr.mxu0 0.0
    %1147 = vmatpush1.msra.mxu0 0.0
    %1148 = vmatprep.subr.mxu0 0.0
    %1149 = vmatpush1.msra.mxu0 0.0
    %1150 = vmatprep.subr.mxu0 0.0
    %1151 = vmatpush1.msra.mxu0 0.0
    %1152 = vmatprep.subr.mxu0 0.0
    %1153 = vmatpush1.msra.mxu0 0.0
    %1154 = vmatprep.subr.mxu0 0.0
    %1155 = vmatpush1.msra.mxu0 0.0
    %1156 = vmatprep.subr.mxu0 0.0
    %1157 = vmatpush1.msra.mxu0 0.0
    %1158 = vmatprep.subr.mxu0 0.0
    %1159 = vmatpush1.msra.mxu0 0.0
    %1160 = vmatprep.subr.mxu0 0.0
    %1161 = vmatpush1.msra.mxu0 0.0
    %1162 = vmatprep.subr.mxu0 0.0
    %1163 = vmatpush1.msra.mxu0 0.0
    %1164 = vmatprep.subr.mxu0 0.0
    %1165 = vmatpush1.msra.mxu0 0.0
    %1166 = vmatprep.subr.mxu0 0.0
    %1167 = vmatpush1.msra.mxu0 0.0
    %1168 = vmatprep.subr.mxu0 0.0
    %1169 = vmatpush1.msra.mxu0 0.0
    %1170 = vmatprep.subr.mxu0 0.0
    %1171 = vmatpush1.msra.mxu0 0.0
    %1172 = vmatprep.subr.mxu0 0.0
    %1173 = vmatpush1.msra.mxu0 0.0
    %1174 = vmatprep.subr.mxu0 0.0
    %1175 = vmatpush1.msra.mxu0 0.0
    %1176 = vmatprep.subr.mxu0 0.0
    %1177 = vmatpush1.msra.mxu0 0.0
    %1178 = vmatprep.subr.mxu0 0.0
    %1179 = vmatpush1.msra.mxu0 0.0
    %1180 = vmatprep.subr.mxu0 0.0
    %1181 = vmatpush1.msra.mxu0 0.0
    %1182 = vmatprep.subr.mxu0 0.0
    %1183 = vmatpush1.msra.mxu0 0.0
    %1184 = vmatprep.subr.mxu0 0.0
    %1185 = vmatpush1.msra.mxu0 0.0
    %1186 = vmatprep.subr.mxu0 0.0
    %1187 = vmatpush1.msra.mxu0 0.0
    %1188 = vmatprep.subr.mxu0 0.0
    %1189 = vmatpush1.msra.mxu0 0.0
    %1190 = vmatprep.subr.mxu0 0.0
    %1191 = vmatpush1.msra.mxu0 0.0
    %1192 = vmatprep.subr.mxu0 0.0
    %1193 = vmatpush1.msra.mxu0 0.0
    %1194 = vmatprep.subr.mxu0 0.0
    %1195 = vmatpush1.msra.mxu0 0.0
    %1196 = vmatprep.subr.mxu0 0.0
    %1197 = vmatpush1.msra.mxu0 0.0
    %1198 = vmatprep.subr.mxu0 0.0
    %1199 = vmatpush1.msra.mxu0 0.0
    %1200 = vmatprep.subr.mxu0 0.0
    %1201 = vmatpush1.msra.mxu0 0.0
    %1202 = vmatprep.mubr.f32.mxu0 0.0
    %1203 = vmatmul.mubr.f32.gmra.mrb[0].mxu0 %v1136
    %v1204 = vpop.f32.mrb[0].mxu0
    %v1205 = vadd.f32 0.0, %v1204
    %v1206 = vpop.f32.mrb[0].mxu0
    %1207 = vdwg.mxu0
    %v1209 = vsel %vm465, %v1129, 0
    %v1212 = vsel %vm465, %v1205, 0
    %1214 = vmatprep.subr.mxu0 0.0
    %1215 = vmatpush1.msra.mxu0 %v363
    %1216 = vmatprep.subr.mxu0 0.0
    %1217 = vmatpush1.msra.mxu0 0.0
    %1218 = vmatprep.subr.mxu0 0.0
    %1219 = vmatpush1.msra.mxu0 0.0
    %1220 = vmatprep.subr.mxu0 0.0
    %1221 = vmatpush1.msra.mxu0 0.0
    %1222 = vmatprep.subr.mxu0 0.0
    %1223 = vmatpush1.msra.mxu0 0.0
    %1224 = vmatprep.subr.mxu0 0.0
    %1225 = vmatpush1.msra.mxu0 0.0
    %1226 = vmatprep.subr.mxu0 0.0
    %1227 = vmatpush1.msra.mxu0 0.0
    %1228 = vmatprep.subr.mxu0 0.0
    %1229 = vmatpush1.msra.mxu0 0.0
    %1230 = vmatprep.subr.mxu0 0.0
    %1231 = vmatpush1.msra.mxu0 0.0
    %1232 = vmatprep.subr.mxu0 0.0
    %1233 = vmatpush1.msra.mxu0 0.0
    %1234 = vmatprep.subr.mxu0 0.0
    %1235 = vmatpush1.msra.mxu0 0.0
    %1236 = vmatprep.subr.mxu0 0.0
    %1237 = vmatpush1.msra.mxu0 0.0
    %1238 = vmatprep.subr.mxu0 0.0
    %1239 = vmatpush1.msra.mxu0 0.0
    %1240 = vmatprep.subr.mxu0 0.0
    %1241 = vmatpush1.msra.mxu0 0.0
    %1242 = vmatprep.subr.mxu0 0.0
    %1243 = vmatpush1.msra.mxu0 0.0
    %1244 = vmatprep.subr.mxu0 0.0
    %1245 = vmatpush1.msra.mxu0 0.0
    %1246 = vmatprep.subr.mxu0 0.0
    %1247 = vmatpush1.msra.mxu0 0.0
    %1248 = vmatprep.subr.mxu0 0.0
    %1249 = vmatpush1.msra.mxu0 0.0
    %1250 = vmatprep.subr.mxu0 0.0
    %1251 = vmatpush1.msra.mxu0 0.0
    %1252 = vmatprep.subr.mxu0 0.0
    %1253 = vmatpush1.msra.mxu0 0.0
    %1254 = vmatprep.subr.mxu0 0.0
    %1255 = vmatpush1.msra.mxu0 0.0
    %1256 = vmatprep.subr.mxu0 0.0
    %1257 = vmatpush1.msra.mxu0 0.0
    %1258 = vmatprep.subr.mxu0 0.0
    %1259 = vmatpush1.msra.mxu0 0.0
    %1260 = vmatprep.subr.mxu0 0.0
    %1261 = vmatpush1.msra.mxu0 0.0
    %1262 = vmatprep.subr.mxu0 0.0
    %1263 = vmatpush1.msra.mxu0 0.0
    %1264 = vmatprep.subr.mxu0 0.0
    %1265 = vmatpush1.msra.mxu0 0.0
    %1266 = vmatprep.subr.mxu0 0.0
    %1267 = vmatpush1.msra.mxu0 0.0
    %1268 = vmatprep.subr.mxu0 0.0
    %1269 = vmatpush1.msra.mxu0 0.0
    %1270 = vmatprep.subr.mxu0 0.0
    %1271 = vmatpush1.msra.mxu0 0.0
    %1272 = vmatprep.subr.mxu0 0.0
    %1273 = vmatpush1.msra.mxu0 0.0
    %1274 = vmatprep.subr.mxu0 0.0
    %1275 = vmatpush1.msra.mxu0 0.0
    %1276 = vmatprep.subr.mxu0 0.0
    %1277 = vmatpush1.msra.mxu0 0.0
    %1278 = vmatprep.mubr.f32.mxu0 0.0
    %1279 = vmatmul.mubr.f32.gmra.mrb[0].mxu0 %v1209
    %v1280 = vpop.f32.mrb[0].mxu0
    %v1281 = vadd.f32 0.0, %v1280
    %v1282 = vpop.f32.mrb[0].mxu0
    %1283 = vmatprep.mubr.f32.mxu0 0.0
    %1284 = vmatmul.mubr.f32.gmra.mrb[0].mxu0 %v1212
    %v1285 = vpop.f32.mrb[0].mxu0
    %v1286 = vadd.f32 0.0, %v1285
    %v1287 = vpop.f32.mrb[0].mxu0
    %1288 = vdwg.mxu0
    %v1289 = vadd.f32 %v874, %v1281
    %v1290 = vadd.f32 %v875, %v1286
    %1291 = vrot.lane.b32.xlu0 %v446, 112
    %v1292 = vpop.permute.xlu0 %1291
    %1293 = vrot.lane.b32.xlu0 %v446, 80
    %v1294 = vpop.permute.xlu0 %1293
    %v1295 = vsel %vm465, %v1292, 0
    %v1297 = vsel %vm465, %v1294, 0
    %1299 = vmatprep.subr.mxu0 0.0
    %1300 = vmatpush1.xpose.msra.mxu0 %v1297
    %1301 = vmatprep.subr.mxu0 0.0
    %1302 = vmatpush1.xpose.msra.mxu0 0.0
    %1303 = vmatprep.subr.mxu0 0.0
    %1304 = vmatpush1.xpose.msra.mxu0 0.0
    %1305 = vmatprep.subr.mxu0 0.0
    %1306 = vmatpush1.xpose.msra.mxu0 0.0
    %1307 = vmatprep.subr.mxu0 0.0
    %1308 = vmatpush1.xpose.msra.mxu0 0.0
    %1309 = vmatprep.subr.mxu0 0.0
    %1310 = vmatpush1.xpose.msra.mxu0 0.0
    %1311 = vmatprep.subr.mxu0 0.0
    %1312 = vmatpush1.xpose.msra.mxu0 0.0
    %1313 = vmatprep.subr.mxu0 0.0
    %1314 = vmatpush1.xpose.msra.mxu0 0.0
    %1315 = vmatprep.subr.mxu0 0.0
    %1316 = vmatpush1.xpose.msra.mxu0 0.0
    %1317 = vmatprep.subr.mxu0 0.0
    %1318 = vmatpush1.xpose.msra.mxu0 0.0
    %1319 = vmatprep.subr.mxu0 0.0
    %1320 = vmatpush1.xpose.msra.mxu0 0.0
    %1321 = vmatprep.subr.mxu0 0.0
    %1322 = vmatpush1.xpose.msra.mxu0 0.0
    %1323 = vmatprep.subr.mxu0 0.0
    %1324 = vmatpush1.xpose.msra.mxu0 0.0
    %1325 = vmatprep.subr.mxu0 0.0
    %1326 = vmatpush1.xpose.msra.mxu0 0.0
    %1327 = vmatprep.subr.mxu0 0.0
    %1328 = vmatpush1.xpose.msra.mxu0 0.0
    %1329 = vmatprep.subr.mxu0 0.0
    %1330 = vmatpush1.xpose.msra.mxu0 0.0
    %1331 = vmatprep.subr.mxu0 0.0
    %1332 = vmatpush1.xpose.msra.mxu0 0.0
    %1333 = vmatprep.subr.mxu0 0.0
    %1334 = vmatpush1.xpose.msra.mxu0 0.0
    %1335 = vmatprep.subr.mxu0 0.0
    %1336 = vmatpush1.xpose.msra.mxu0 0.0
    %1337 = vmatprep.subr.mxu0 0.0
    %1338 = vmatpush1.xpose.msra.mxu0 0.0
    %1339 = vmatprep.subr.mxu0 0.0
    %1340 = vmatpush1.xpose.msra.mxu0 0.0
    %1341 = vmatprep.subr.mxu0 0.0
    %1342 = vmatpush1.xpose.msra.mxu0 0.0
    %1343 = vmatprep.subr.mxu0 0.0
    %1344 = vmatpush1.xpose.msra.mxu0 0.0
    %1345 = vmatprep.subr.mxu0 0.0
    %1346 = vmatpush1.xpose.msra.mxu0 0.0
    %1347 = vmatprep.subr.mxu0 0.0
    %1348 = vmatpush1.xpose.msra.mxu0 0.0
    %1349 = vmatprep.subr.mxu0 0.0
    %1350 = vmatpush1.xpose.msra.mxu0 0.0
    %1351 = vmatprep.subr.mxu0 0.0
    %1352 = vmatpush1.xpose.msra.mxu0 0.0
    %1353 = vmatprep.subr.mxu0 0.0
    %1354 = vmatpush1.xpose.msra.mxu0 0.0
    %1355 = vmatprep.subr.mxu0 0.0
    %1356 = vmatpush1.xpose.msra.mxu0 0.0
    %1357 = vmatprep.subr.mxu0 0.0
    %1358 = vmatpush1.xpose.msra.mxu0 0.0
    %1359 = vmatprep.subr.mxu0 0.0
    %1360 = vmatpush1.xpose.msra.mxu0 0.0
    %1361 = vmatprep.subr.mxu0 0.0
    %1362 = vmatpush1.xpose.msra.mxu0 0.0
    %1363 = vmatprep.mubr.f32.mxu0 0.0
    %1364 = vmatmul.mubr.f32.gmra.mrb[0].mxu0 %v1295
    %v1365 = vpop.f32.mrb[0].mxu0
    %v1366 = vadd.f32 0.0, %v1365
    %v1367 = vpop.f32.mrb[0].mxu0
    %1368 = vdwg.mxu0
    %1369 = vrot.lane.b32.xlu0 %v451, 112
    %v1370 = vpop.permute.xlu0 %1369
    %1371 = vrot.lane.b32.xlu0 %v451, 80
    %v1372 = vpop.permute.xlu0 %1371
    %v1373 = vsel %vm465, %v1370, 0
    %v1375 = vsel %vm465, %v1372, 0
    %1377 = vmatprep.subr.mxu0 0.0
    %1378 = vmatpush1.xpose.msra.mxu0 %v1375
    %1379 = vmatprep.subr.mxu0 0.0
    %1380 = vmatpush1.xpose.msra.mxu0 0.0
    %1381 = vmatprep.subr.mxu0 0.0
    %1382 = vmatpush1.xpose.msra.mxu0 0.0
    %1383 = vmatprep.subr.mxu0 0.0
    %1384 = vmatpush1.xpose.msra.mxu0 0.0
    %1385 = vmatprep.subr.mxu0 0.0
    %1386 = vmatpush1.xpose.msra.mxu0 0.0
    %1387 = vmatprep.subr.mxu0 0.0
    %1388 = vmatpush1.xpose.msra.mxu0 0.0
    %1389 = vmatprep.subr.mxu0 0.0
    %1390 = vmatpush1.xpose.msra.mxu0 0.0
    %1391 = vmatprep.subr.mxu0 0.0
    %1392 = vmatpush1.xpose.msra.mxu0 0.0
    %1393 = vmatprep.subr.mxu0 0.0
    %1394 = vmatpush1.xpose.msra.mxu0 0.0
    %1395 = vmatprep.subr.mxu0 0.0
    %1396 = vmatpush1.xpose.msra.mxu0 0.0
    %1397 = vmatprep.subr.mxu0 0.0
    %1398 = vmatpush1.xpose.msra.mxu0 0.0
    %1399 = vmatprep.subr.mxu0 0.0
    %1400 = vmatpush1.xpose.msra.mxu0 0.0
    %1401 = vmatprep.subr.mxu0 0.0
    %1402 = vmatpush1.xpose.msra.mxu0 0.0
    %1403 = vmatprep.subr.mxu0 0.0
    %1404 = vmatpush1.xpose.msra.mxu0 0.0
    %1405 = vmatprep.subr.mxu0 0.0
    %1406 = vmatpush1.xpose.msra.mxu0 0.0
    %1407 = vmatprep.subr.mxu0 0.0
    %1408 = vmatpush1.xpose.msra.mxu0 0.0
    %1409 = vmatprep.subr.mxu0 0.0
    %1410 = vmatpush1.xpose.msra.mxu0 0.0
    %1411 = vmatprep.subr.mxu0 0.0
    %1412 = vmatpush1.xpose.msra.mxu0 0.0
    %1413 = vmatprep.subr.mxu0 0.0
    %1414 = vmatpush1.xpose.msra.mxu0 0.0
    %1415 = vmatprep.subr.mxu0 0.0
    %1416 = vmatpush1.xpose.msra.mxu0 0.0
    %1417 = vmatprep.subr.mxu0 0.0
    %1418 = vmatpush1.xpose.msra.mxu0 0.0
    %1419 = vmatprep.subr.mxu0 0.0
    %1420 = vmatpush1.xpose.msra.mxu0 0.0
    %1421 = vmatprep.subr.mxu0 0.0
    %1422 = vmatpush1.xpose.msra.mxu0 0.0
    %1423 = vmatprep.subr.mxu0 0.0
    %1424 = vmatpush1.xpose.msra.mxu0 0.0
    %1425 = vmatprep.subr.mxu0 0.0
    %1426 = vmatpush1.xpose.msra.mxu0 0.0
    %1427 = vmatprep.subr.mxu0 0.0
    %1428 = vmatpush1.xpose.msra.mxu0 0.0
    %1429 = vmatprep.subr.mxu0 0.0
    %1430 = vmatpush1.xpose.msra.mxu0 0.0
    %1431 = vmatprep.subr.mxu0 0.0
    %1432 = vmatpush1.xpose.msra.mxu0 0.0
    %1433 = vmatprep.subr.mxu0 0.0
    %1434 = vmatpush1.xpose.msra.mxu0 0.0
    %1435 = vmatprep.subr.mxu0 0.0
    %1436 = vmatpush1.xpose.msra.mxu0 0.0
    %1437 = vmatprep.subr.mxu0 0.0
    %1438 = vmatpush1.xpose.msra.mxu0 0.0
    %1439 = vmatprep.subr.mxu0 0.0
    %1440 = vmatpush1.xpose.msra.mxu0 0.0
    %1441 = vmatprep.mubr.f32.mxu0 0.0
    %1442 = vmatmul.mubr.f32.gmra.mrb[0].mxu0 %v1373
    %v1443 = vpop.f32.mrb[0].mxu0
    %v1444 = vadd.f32 0.0, %v1443
    %v1445 = vpop.f32.mrb[0].mxu0
    %1446 = vdwg.mxu0
    %v1447 = vmul.f32 %v1366, 0.35355338
    %v1448 = vmul.f32 %v1444, 0.35355338
    %v1449 = vsel %vm465, %v1447, -inf
    %1450 = vmax.xlane.f32.xlu0 %v1449
    %v1451 = vpop.xlane.xlu0 %1450
    %v1452 = vsel %vm465, %v1448, -inf
    %1453 = vmax.xlane.f32.xlu0 %v1452
    %v1454 = vpop.xlane.xlu0 %1453
    %v1455 = vsub.f32 %v1447, %v1451
    %v1456 = vsub.f32 %v1448, %v1454
    %v1457 = vmul.f32 %v1455, 1.442695
    %v1458 = vpow.pop %v1457
    %v1459 = vmul.f32 %v1456, 1.442695
    %v1460 = vpow.pop %v1459
    %v1461 = vsel %vm465, %v1458, 0.0
    %1462 = vadd.xlane.f32.xlu0 %v1461
    %v1463 = vpop.xlane.xlu0 %1462
    %v1464 = vsel %vm465, %v1460, 0.0
    %1465 = vadd.xlane.f32.xlu0 %v1464
    %v1466 = vpop.xlane.xlu0 %1465
    %v1467 = vrcp.pop %v1463
    %v1468 = vrcp.pop %v1466
    %v1469 = vmul.f32 %v1458, %v1467
    %v1470 = vmul.f32 %v1460, %v1468
    %1471 = vrot.lane.b32.xlu0 %v446, 48
    %v1472 = vpop.permute.xlu0 %1471
    %v1475 = vsel %vm465, %v1469, 0
    %1477 = vmatprep.subr.mxu0 0.0
    %1478 = vmatpush1.msra.mxu0 %v1472
    %1479 = vmatprep.subr.mxu0 0.0
    %1480 = vmatpush1.msra.mxu0 0.0
    %1481 = vmatprep.subr.mxu0 0.0
    %1482 = vmatpush1.msra.mxu0 0.0
    %1483 = vmatprep.subr.mxu0 0.0
    %1484 = vmatpush1.msra.mxu0 0.0
    %1485 = vmatprep.subr.mxu0 0.0
    %1486 = vmatpush1.msra.mxu0 0.0
    %1487 = vmatprep.subr.mxu0 0.0
    %1488 = vmatpush1.msra.mxu0 0.0
    %1489 = vmatprep.subr.mxu0 0.0
    %1490 = vmatpush1.msra.mxu0 0.0
    %1491 = vmatprep.subr.mxu0 0.0
    %1492 = vmatpush1.msra.mxu0 0.0
    %1493 = vmatprep.subr.mxu0 0.0
    %1494 = vmatpush1.msra.mxu0 0.0
    %1495 = vmatprep.subr.mxu0 0.0
    %1496 = vmatpush1.msra.mxu0 0.0
    %1497 = vmatprep.subr.mxu0 0.0
    %1498 = vmatpush1.msra.mxu0 0.0
    %1499 = vmatprep.subr.mxu0 0.0
    %1500 = vmatpush1.msra.mxu0 0.0
    %1501 = vmatprep.subr.mxu0 0.0
    %1502 = vmatpush1.msra.mxu0 0.0
    %1503 = vmatprep.subr.mxu0 0.0
    %1504 = vmatpush1.msra.mxu0 0.0
    %1505 = vmatprep.subr.mxu0 0.0
    %1506 = vmatpush1.msra.mxu0 0.0
    %1507 = vmatprep.subr.mxu0 0.0
    %1508 = vmatpush1.msra.mxu0 0.0
    %1509 = vmatprep.subr.mxu0 0.0
    %1510 = vmatpush1.msra.mxu0 0.0
    %1511 = vmatprep.subr.mxu0 0.0
    %1512 = vmatpush1.msra.mxu0 0.0
    %1513 = vmatprep.subr.mxu0 0.0
    %1514 = vmatpush1.msra.mxu0 0.0
    %1515 = vmatprep.subr.mxu0 0.0
    %1516 = vmatpush1.msra.mxu0 0.0
    %1517 = vmatprep.subr.mxu0 0.0
    %1518 = vmatpush1.msra.mxu0 0.0
    %1519 = vmatprep.subr.mxu0 0.0
    %1520 = vmatpush1.msra.mxu0 0.0
    %1521 = vmatprep.subr.mxu0 0.0
    %1522 = vmatpush1.msra.mxu0 0.0
    %1523 = vmatprep.subr.mxu0 0.0
    %1524 = vmatpush1.msra.mxu0 0.0
    %1525 = vmatprep.subr.mxu0 0.0
    %1526 = vmatpush1.msra.mxu0 0.0
    %1527 = vmatprep.subr.mxu0 0.0
    %1528 = vmatpush1.msra.mxu0 0.0
    %1529 = vmatprep.subr.mxu0 0.0
    %1530 = vmatpush1.msra.mxu0 0.0
    %1531 = vmatprep.subr.mxu0 0.0
    %1532 = vmatpush1.msra.mxu0 0.0
    %1533 = vmatprep.subr.mxu0 0.0
    %1534 = vmatpush1.msra.mxu0 0.0
    %1535 = vmatprep.subr.mxu0 0.0
    %1536 = vmatpush1.msra.mxu0 0.0
    %1537 = vmatprep.subr.mxu0 0.0
    %1538 = vmatpush1.msra.mxu0 0.0
    %1539 = vmatprep.subr.mxu0 0.0
    %1540 = vmatpush1.msra.mxu0 0.0
    %1541 = vmatprep.mubr.f32.mxu0 0.0
    %1542 = vmatmul.mubr.f32.gmra.mrb[0].mxu0 %v1475
    %v1543 = vpop.f32.mrb[0].mxu0
    %v1544 = vadd.f32 0.0, %v1543
    %v1545 = vpop.f32.mrb[0].mxu0
    %1546 = vdwg.mxu0
    %1547 = vrot.lane.b32.xlu0 %v451, 48
    %v1548 = vpop.permute.xlu0 %1547
    %v1551 = vsel %vm465, %v1470, 0
    %1553 = vmatprep.subr.mxu0 0.0
    %1554 = vmatpush1.msra.mxu0 %v1548
    %1555 = vmatprep.subr.mxu0 0.0
    %1556 = vmatpush1.msra.mxu0 0.0
    %1557 = vmatprep.subr.mxu0 0.0
    %1558 = vmatpush1.msra.mxu0 0.0
    %1559 = vmatprep.subr.mxu0 0.0
    %1560 = vmatpush1.msra.mxu0 0.0
    %1561 = vmatprep.subr.mxu0 0.0
    %1562 = vmatpush1.msra.mxu0 0.0
    %1563 = vmatprep.subr.mxu0 0.0
    %1564 = vmatpush1.msra.mxu0 0.0
    %1565 = vmatprep.subr.mxu0 0.0
    %1566 = vmatpush1.msra.mxu0 0.0
    %1567 = vmatprep.subr.mxu0 0.0
    %1568 = vmatpush1.msra.mxu0 0.0
    %1569 = vmatprep.subr.mxu0 0.0
    %1570 = vmatpush1.msra.mxu0 0.0
    %1571 = vmatprep.subr.mxu0 0.0
    %1572 = vmatpush1.msra.mxu0 0.0
    %1573 = vmatprep.subr.mxu0 0.0
    %1574 = vmatpush1.msra.mxu0 0.0
    %1575 = vmatprep.subr.mxu0 0.0
    %1576 = vmatpush1.msra.mxu0 0.0
    %1577 = vmatprep.subr.mxu0 0.0
    %1578 = vmatpush1.msra.mxu0 0.0
    %1579 = vmatprep.subr.mxu0 0.0
    %1580 = vmatpush1.msra.mxu0 0.0
    %1581 = vmatprep.subr.mxu0 0.0
    %1582 = vmatpush1.msra.mxu0 0.0
    %1583 = vmatprep.subr.mxu0 0.0
    %1584 = vmatpush1.msra.mxu0 0.0
    %1585 = vmatprep.subr.mxu0 0.0
    %1586 = vmatpush1.msra.mxu0 0.0
    %1587 = vmatprep.subr.mxu0 0.0
    %1588 = vmatpush1.msra.mxu0 0.0
    %1589 = vmatprep.subr.mxu0 0.0
    %1590 = vmatpush1.msra.mxu0 0.0
    %1591 = vmatprep.subr.mxu0 0.0
    %1592 = vmatpush1.msra.mxu0 0.0
    %1593 = vmatprep.subr.mxu0 0.0
    %1594 = vmatpush1.msra.mxu0 0.0
    %1595 = vmatprep.subr.mxu0 0.0
    %1596 = vmatpush1.msra.mxu0 0.0
    %1597 = vmatprep.subr.mxu0 0.0
    %1598 = vmatpush1.msra.mxu0 0.0
    %1599 = vmatprep.subr.mxu0 0.0
    %1600 = vmatpush1.msra.mxu0 0.0
    %1601 = vmatprep.subr.mxu0 0.0
    %1602 = vmatpush1.msra.mxu0 0.0
    %1603 = vmatprep.subr.mxu0 0.0
    %1604 = vmatpush1.msra.mxu0 0.0
    %1605 = vmatprep.subr.mxu0 0.0
    %1606 = vmatpush1.msra.mxu0 0.0
    %1607 = vmatprep.subr.mxu0 0.0
    %1608 = vmatpush1.msra.mxu0 0.0
    %1609 = vmatprep.subr.mxu0 0.0
    %1610 = vmatpush1.msra.mxu0 0.0
    %1611 = vmatprep.subr.mxu0 0.0
    %1612 = vmatpush1.msra.mxu0 0.0
    %1613 = vmatprep.subr.mxu0 0.0
    %1614 = vmatpush1.msra.mxu0 0.0
    %1615 = vmatprep.subr.mxu0 0.0
    %1616 = vmatpush1.msra.mxu0 0.0
    %1617 = vmatprep.mubr.f32.mxu0 0.0
    %1618 = vmatmul.mubr.f32.gmra.mrb[0].mxu0 %v1551
    %v1619 = vpop.f32.mrb[0].mxu0
    %v1620 = vadd.f32 0.0, %v1619
    %v1621 = vpop.f32.mrb[0].mxu0
    %1622 = vdwg.mxu0
    %v1624 = vsel %vm465, %v1544, 0
    %v1627 = vsel %vm465, %v1620, 0
    %1629 = vmatprep.subr.mxu0 0.0
    %1630 = vmatpush1.msra.mxu0 %v364
    %1631 = vmatprep.subr.mxu0 0.0
    %1632 = vmatpush1.msra.mxu0 0.0
    %1633 = vmatprep.subr.mxu0 0.0
    %1634 = vmatpush1.msra.mxu0 0.0
    %1635 = vmatprep.subr.mxu0 0.0
    %1636 = vmatpush1.msra.mxu0 0.0
    %1637 = vmatprep.subr.mxu0 0.0
    %1638 = vmatpush1.msra.mxu0 0.0
    %1639 = vmatprep.subr.mxu0 0.0
    %1640 = vmatpush1.msra.mxu0 0.0
    %1641 = vmatprep.subr.mxu0 0.0
    %1642 = vmatpush1.msra.mxu0 0.0
    %1643 = vmatprep.subr.mxu0 0.0
    %1644 = vmatpush1.msra.mxu0 0.0
    %1645 = vmatprep.subr.mxu0 0.0
    %1646 = vmatpush1.msra.mxu0 0.0
    %1647 = vmatprep.subr.mxu0 0.0
    %1648 = vmatpush1.msra.mxu0 0.0
    %1649 = vmatprep.subr.mxu0 0.0
    %1650 = vmatpush1.msra.mxu0 0.0
    %1651 = vmatprep.subr.mxu0 0.0
    %1652 = vmatpush1.msra.mxu0 0.0
    %1653 = vmatprep.subr.mxu0 0.0
    %1654 = vmatpush1.msra.mxu0 0.0
    %1655 = vmatprep.subr.mxu0 0.0
    %1656 = vmatpush1.msra.mxu0 0.0
    %1657 = vmatprep.subr.mxu0 0.0
    %1658 = vmatpush1.msra.mxu0 0.0
    %1659 = vmatprep.subr.mxu0 0.0
    %1660 = vmatpush1.msra.mxu0 0.0
    %1661 = vmatprep.subr.mxu0 0.0
    %1662 = vmatpush1.msra.mxu0 0.0
    %1663 = vmatprep.subr.mxu0 0.0
    %1664 = vmatpush1.msra.mxu0 0.0
    %1665 = vmatprep.subr.mxu0 0.0
    %1666 = vmatpush1.msra.mxu0 0.0
    %1667 = vmatprep.subr.mxu0 0.0
    %1668 = vmatpush1.msra.mxu0 0.0
    %1669 = vmatprep.subr.mxu0 0.0
    %1670 = vmatpush1.msra.mxu0 0.0
    %1671 = vmatprep.subr.mxu0 0.0
    %1672 = vmatpush1.msra.mxu0 0.0
    %1673 = vmatprep.subr.mxu0 0.0
    %1674 = vmatpush1.msra.mxu0 0.0
    %1675 = vmatprep.subr.mxu0 0.0
    %1676 = vmatpush1.msra.mxu0 0.0
    %1677 = vmatprep.subr.mxu0 0.0
    %1678 = vmatpush1.msra.mxu0 0.0
    %1679 = vmatprep.subr.mxu0 0.0
    %1680 = vmatpush1.msra.mxu0 0.0
    %1681 = vmatprep.subr.mxu0 0.0
    %1682 = vmatpush1.msra.mxu0 0.0
    %1683 = vmatprep.subr.mxu0 0.0
    %1684 = vmatpush1.msra.mxu0 0.0
    %1685 = vmatprep.subr.mxu0 0.0
    %1686 = vmatpush1.msra.mxu0 0.0
    %1687 = vmatprep.subr.mxu0 0.0
    %1688 = vmatpush1.msra.mxu0 0.0
    %1689 = vmatprep.subr.mxu0 0.0
    %1690 = vmatpush1.msra.mxu0 0.0
    %1691 = vmatprep.subr.mxu0 0.0
    %1692 = vmatpush1.msra.mxu0 0.0
    %1693 = vmatprep.mubr.f32.mxu0 0.0
    %1694 = vmatmul.mubr.f32.gmra.mrb[0].mxu0 %v1624
    %v1695 = vpop.f32.mrb[0].mxu0
    %v1696 = vadd.f32 0.0, %v1695
    %v1697 = vpop.f32.mrb[0].mxu0
    %1698 = vmatprep.mubr.f32.mxu0 0.0
    %1699 = vmatmul.mubr.f32.gmra.mrb[0].mxu0 %v1627
    %v1700 = vpop.f32.mrb[0].mxu0
    %v1701 = vadd.f32 0.0, %v1700
    %v1702 = vpop.f32.mrb[0].mxu0
    %1703 = vdwg.mxu0
    %v1704 = vadd.f32 %v1289, %v1696
    %v1705 = vadd.f32 %v1290, %v1701
    %1706 = vrot.lane.b32.xlu0 %v446, 104
    %v1707 = vpop.permute.xlu0 %1706
    %1708 = vrot.lane.b32.xlu0 %v446, 72
    %v1709 = vpop.permute.xlu0 %1708
    %v1710 = vsel %vm465, %v1707, 0
    %v1712 = vsel %vm465, %v1709, 0
    %1714 = vmatprep.subr.mxu0 0.0
    %1715 = vmatpush1.xpose.msra.mxu0 %v1712
    %1716 = vmatprep.subr.mxu0 0.0
    %1717 = vmatpush1.xpose.msra.mxu0 0.0
    %1718 = vmatprep.subr.mxu0 0.0
    %1719 = vmatpush1.xpose.msra.mxu0 0.0
    %1720 = vmatprep.subr.mxu0 0.0
    %1721 = vmatpush1.xpose.msra.mxu0 0.0
    %1722 = vmatprep.subr.mxu0 0.0
    %1723 = vmatpush1.xpose.msra.mxu0 0.0
    %1724 = vmatprep.subr.mxu0 0.0
    %1725 = vmatpush1.xpose.msra.mxu0 0.0
    %1726 = vmatprep.subr.mxu0 0.0
    %1727 = vmatpush1.xpose.msra.mxu0 0.0
    %1728 = vmatprep.subr.mxu0 0.0
    %1729 = vmatpush1.xpose.msra.mxu0 0.0
    %1730 = vmatprep.subr.mxu0 0.0
    %1731 = vmatpush1.xpose.msra.mxu0 0.0
    %1732 = vmatprep.subr.mxu0 0.0
    %1733 = vmatpush1.xpose.msra.mxu0 0.0
    %1734 = vmatprep.subr.mxu0 0.0
    %1735 = vmatpush1.xpose.msra.mxu0 0.0
    %1736 = vmatprep.subr.mxu0 0.0
    %1737 = vmatpush1.xpose.msra.mxu0 0.0
    %1738 = vmatprep.subr.mxu0 0.0
    %1739 = vmatpush1.xpose.msra.mxu0 0.0
    %1740 = vmatprep.subr.mxu0 0.0
    %1741 = vmatpush1.xpose.msra.mxu0 0.0
    %1742 = vmatprep.subr.mxu0 0.0
    %1743 = vmatpush1.xpose.msra.mxu0 0.0
    %1744 = vmatprep.subr.mxu0 0.0
    %1745 = vmatpush1.xpose.msra.mxu0 0.0
    %1746 = vmatprep.subr.mxu0 0.0
    %1747 = vmatpush1.xpose.msra.mxu0 0.0
    %1748 = vmatprep.subr.mxu0 0.0
    %1749 = vmatpush1.xpose.msra.mxu0 0.0
    %1750 = vmatprep.subr.mxu0 0.0
    %1751 = vmatpush1.xpose.msra.mxu0 0.0
    %1752 = vmatprep.subr.mxu0 0.0
    %1753 = vmatpush1.xpose.msra.mxu0 0.0
    %1754 = vmatprep.subr.mxu0 0.0
    %1755 = vmatpush1.xpose.msra.mxu0 0.0
    %1756 = vmatprep.subr.mxu0 0.0
    %1757 = vmatpush1.xpose.msra.mxu0 0.0
    %1758 = vmatprep.subr.mxu0 0.0
    %1759 = vmatpush1.xpose.msra.mxu0 0.0
    %1760 = vmatprep.subr.mxu0 0.0
    %1761 = vmatpush1.xpose.msra.mxu0 0.0
    %1762 = vmatprep.subr.mxu0 0.0
    %1763 = vmatpush1.xpose.msra.mxu0 0.0
    %1764 = vmatprep.subr.mxu0 0.0
    %1765 = vmatpush1.xpose.msra.mxu0 0.0
    %1766 = vmatprep.subr.mxu0 0.0
    %1767 = vmatpush1.xpose.msra.mxu0 0.0
    %1768 = vmatprep.subr.mxu0 0.0
    %1769 = vmatpush1.xpose.msra.mxu0 0.0
    %1770 = vmatprep.subr.mxu0 0.0
    %1771 = vmatpush1.xpose.msra.mxu0 0.0
    %1772 = vmatprep.subr.mxu0 0.0
    %1773 = vmatpush1.xpose.msra.mxu0 0.0
    %1774 = vmatprep.subr.mxu0 0.0
    %1775 = vmatpush1.xpose.msra.mxu0 0.0
    %1776 = vmatprep.subr.mxu0 0.0
    %1777 = vmatpush1.xpose.msra.mxu0 0.0
    %1778 = vmatprep.mubr.f32.mxu0 0.0
    %1779 = vmatmul.mubr.f32.gmra.mrb[0].mxu0 %v1710
    %v1780 = vpop.f32.mrb[0].mxu0
    %v1781 = vadd.f32 0.0, %v1780
    %v1782 = vpop.f32.mrb[0].mxu0
    %1783 = vdwg.mxu0
    %1784 = vrot.lane.b32.xlu0 %v451, 104
    %v1785 = vpop.permute.xlu0 %1784
    %1786 = vrot.lane.b32.xlu0 %v451, 72
    %v1787 = vpop.permute.xlu0 %1786
    %v1788 = vsel %vm465, %v1785, 0
    %v1790 = vsel %vm465, %v1787, 0
    %1792 = vmatprep.subr.mxu0 0.0
    %1793 = vmatpush1.xpose.msra.mxu0 %v1790
    %1794 = vmatprep.subr.mxu0 0.0
    %1795 = vmatpush1.xpose.msra.mxu0 0.0
    %1796 = vmatprep.subr.mxu0 0.0
    %1797 = vmatpush1.xpose.msra.mxu0 0.0
    %1798 = vmatprep.subr.mxu0 0.0
    %1799 = vmatpush1.xpose.msra.mxu0 0.0
    %1800 = vmatprep.subr.mxu0 0.0
    %1801 = vmatpush1.xpose.msra.mxu0 0.0
    %1802 = vmatprep.subr.mxu0 0.0
    %1803 = vmatpush1.xpose.msra.mxu0 0.0
    %1804 = vmatprep.subr.mxu0 0.0
    %1805 = vmatpush1.xpose.msra.mxu0 0.0
    %1806 = vmatprep.subr.mxu0 0.0
    %1807 = vmatpush1.xpose.msra.mxu0 0.0
    %1808 = vmatprep.subr.mxu0 0.0
    %1809 = vmatpush1.xpose.msra.mxu0 0.0
    %1810 = vmatprep.subr.mxu0 0.0
    %1811 = vmatpush1.xpose.msra.mxu0 0.0
    %1812 = vmatprep.subr.mxu0 0.0
    %1813 = vmatpush1.xpose.msra.mxu0 0.0
    %1814 = vmatprep.subr.mxu0 0.0
    %1815 = vmatpush1.xpose.msra.mxu0 0.0
    %1816 = vmatprep.subr.mxu0 0.0
    %1817 = vmatpush1.xpose.msra.mxu0 0.0
    %1818 = vmatprep.subr.mxu0 0.0
    %1819 = vmatpush1.xpose.msra.mxu0 0.0
    %1820 = vmatprep.subr.mxu0 0.0
    %1821 = vmatpush1.xpose.msra.mxu0 0.0
    %1822 = vmatprep.subr.mxu0 0.0
    %1823 = vmatpush1.xpose.msra.mxu0 0.0
    %1824 = vmatprep.subr.mxu0 0.0
    %1825 = vmatpush1.xpose.msra.mxu0 0.0
    %1826 = vmatprep.subr.mxu0 0.0
    %1827 = vmatpush1.xpose.msra.mxu0 0.0
    %1828 = vmatprep.subr.mxu0 0.0
    %1829 = vmatpush1.xpose.msra.mxu0 0.0
    %1830 = vmatprep.subr.mxu0 0.0
    %1831 = vmatpush1.xpose.msra.mxu0 0.0
    %1832 = vmatprep.subr.mxu0 0.0
    %1833 = vmatpush1.xpose.msra.mxu0 0.0
    %1834 = vmatprep.subr.mxu0 0.0
    %1835 = vmatpush1.xpose.msra.mxu0 0.0
    %1836 = vmatprep.subr.mxu0 0.0
    %1837 = vmatpush1.xpose.msra.mxu0 0.0
    %1838 = vmatprep.subr.mxu0 0.0
    %1839 = vmatpush1.xpose.msra.mxu0 0.0
    %1840 = vmatprep.subr.mxu0 0.0
    %1841 = vmatpush1.xpose.msra.mxu0 0.0
    %1842 = vmatprep.subr.mxu0 0.0
    %1843 = vmatpush1.xpose.msra.mxu0 0.0
    %1844 = vmatprep.subr.mxu0 0.0
    %1845 = vmatpush1.xpose.msra.mxu0 0.0
    %1846 = vmatprep.subr.mxu0 0.0
    %1847 = vmatpush1.xpose.msra.mxu0 0.0
    %1848 = vmatprep.subr.mxu0 0.0
    %1849 = vmatpush1.xpose.msra.mxu0 0.0
    %1850 = vmatprep.subr.mxu0 0.0
    %1851 = vmatpush1.xpose.msra.mxu0 0.0
    %1852 = vmatprep.subr.mxu0 0.0
    %1853 = vmatpush1.xpose.msra.mxu0 0.0
    %1854 = vmatprep.subr.mxu0 0.0
    %1855 = vmatpush1.xpose.msra.mxu0 0.0
    %1856 = vmatprep.mubr.f32.mxu0 0.0
    %1857 = vmatmul.mubr.f32.gmra.mrb[0].mxu0 %v1788
    %v1858 = vpop.f32.mrb[0].mxu0
    %v1859 = vadd.f32 0.0, %v1858
    %v1860 = vpop.f32.mrb[0].mxu0
    %1861 = vdwg.mxu0
    %v1862 = vmul.f32 %v1781, 0.35355338
    %v1863 = vmul.f32 %v1859, 0.35355338
    %v1864 = vsel %vm465, %v1862, -inf
    %1865 = vmax.xlane.f32.xlu0 %v1864
    %v1866 = vpop.xlane.xlu0 %1865
    %v1867 = vsel %vm465, %v1863, -inf
    %1868 = vmax.xlane.f32.xlu0 %v1867
    %v1869 = vpop.xlane.xlu0 %1868
    %v1870 = vsub.f32 %v1862, %v1866
    %v1871 = vsub.f32 %v1863, %v1869
    %v1872 = vmul.f32 %v1870, 1.442695
    %v1873 = vpow.pop %v1872
    %v1874 = vmul.f32 %v1871, 1.442695
    %v1875 = vpow.pop %v1874
    %v1876 = vsel %vm465, %v1873, 0.0
    %1877 = vadd.xlane.f32.xlu0 %v1876
    %v1878 = vpop.xlane.xlu0 %1877
    %v1879 = vsel %vm465, %v1875, 0.0
    %1880 = vadd.xlane.f32.xlu0 %v1879
    %v1881 = vpop.xlane.xlu0 %1880
    %v1882 = vrcp.pop %v1878
    %v1883 = vrcp.pop %v1881
    %v1884 = vmul.f32 %v1873, %v1882
    %v1885 = vmul.f32 %v1875, %v1883
    %1886 = vrot.lane.b32.xlu0 %v446, 40
    %v1887 = vpop.permute.xlu0 %1886
    %v1890 = vsel %vm465, %v1884, 0
    %1892 = vmatprep.subr.mxu0 0.0
    %1893 = vmatpush1.msra.mxu0 %v1887
    %1894 = vmatprep.subr.mxu0 0.0
    %1895 = vmatpush1.msra.mxu0 0.0
    %1896 = vmatprep.subr.mxu0 0.0
    %1897 = vmatpush1.msra.mxu0 0.0
    %1898 = vmatprep.subr.mxu0 0.0
    %1899 = vmatpush1.msra.mxu0 0.0
    %1900 = vmatprep.subr.mxu0 0.0
    %1901 = vmatpush1.msra.mxu0 0.0
    %1902 = vmatprep.subr.mxu0 0.0
    %1903 = vmatpush1.msra.mxu0 0.0
    %1904 = vmatprep.subr.mxu0 0.0
    %1905 = vmatpush1.msra.mxu0 0.0
    %1906 = vmatprep.subr.mxu0 0.0
    %1907 = vmatpush1.msra.mxu0 0.0
    %1908 = vmatprep.subr.mxu0 0.0
    %1909 = vmatpush1.msra.mxu0 0.0
    %1910 = vmatprep.subr.mxu0 0.0
    %1911 = vmatpush1.msra.mxu0 0.0
    %1912 = vmatprep.subr.mxu0 0.0
    %1913 = vmatpush1.msra.mxu0 0.0
    %1914 = vmatprep.subr.mxu0 0.0
    %1915 = vmatpush1.msra.mxu0 0.0
    %1916 = vmatprep.subr.mxu0 0.0
    %1917 = vmatpush1.msra.mxu0 0.0
    %1918 = vmatprep.subr.mxu0 0.0
    %1919 = vmatpush1.msra.mxu0 0.0
    %1920 = vmatprep.subr.mxu0 0.0
    %1921 = vmatpush1.msra.mxu0 0.0
    %1922 = vmatprep.subr.mxu0 0.0
    %1923 = vmatpush1.msra.mxu0 0.0
    %1924 = vmatprep.subr.mxu0 0.0
    %1925 = vmatpush1.msra.mxu0 0.0
    %1926 = vmatprep.subr.mxu0 0.0
    %1927 = vmatpush1.msra.mxu0 0.0
    %1928 = vmatprep.subr.mxu0 0.0
    %1929 = vmatpush1.msra.mxu0 0.0
    %1930 = vmatprep.subr.mxu0 0.0
    %1931 = vmatpush1.msra.mxu0 0.0
    %1932 = vmatprep.subr.mxu0 0.0
    %1933 = vmatpush1.msra.mxu0 0.0
    %1934 = vmatprep.subr.mxu0 0.0
    %1935 = vmatpush1.msra.mxu0 0.0
    %1936 = vmatprep.subr.mxu0 0.0
    %1937 = vmatpush1.msra.mxu0 0.0
    %1938 = vmatprep.subr.mxu0 0.0
    %1939 = vmatpush1.msra.mxu0 0.0
    %1940 = vmatprep.subr.mxu0 0.0
    %1941 = vmatpush1.msra.mxu0 0.0
    %1942 = vmatprep.subr.mxu0 0.0
    %1943 = vmatpush1.msra.mxu0 0.0
    %1944 = vmatprep.subr.mxu0 0.0
    %1945 = vmatpush1.msra.mxu0 0.0
    %1946 = vmatprep.subr.mxu0 0.0
    %1947 = vmatpush1.msra.mxu0 0.0
    %1948 = vmatprep.subr.mxu0 0.0
    %1949 = vmatpush1.msra.mxu0 0.0
    %1950 = vmatprep.subr.mxu0 0.0
    %1951 = vmatpush1.msra.mxu0 0.0
    %1952 = vmatprep.subr.mxu0 0.0
    %1953 = vmatpush1.msra.mxu0 0.0
    %1954 = vmatprep.subr.mxu0 0.0
    %1955 = vmatpush1.msra.mxu0 0.0
    %1956 = vmatprep.mubr.f32.mxu0 0.0
    %1957 = vmatmul.mubr.f32.gmra.mrb[0].mxu0 %v1890
    %v1958 = vpop.f32.mrb[0].mxu0
    %v1959 = vadd.f32 0.0, %v1958
    %v1960 = vpop.f32.mrb[0].mxu0
    %1961 = vdwg.mxu0
    %1962 = vrot.lane.b32.xlu0 %v451, 40
    %v1963 = vpop.permute.xlu0 %1962
    %v1966 = vsel %vm465, %v1885, 0
    %1968 = vmatprep.subr.mxu0 0.0
    %1969 = vmatpush1.msra.mxu0 %v1963
    %1970 = vmatprep.subr.mxu0 0.0
    %1971 = vmatpush1.msra.mxu0 0.0
    %1972 = vmatprep.subr.mxu0 0.0
    %1973 = vmatpush1.msra.mxu0 0.0
    %1974 = vmatprep.subr.mxu0 0.0
    %1975 = vmatpush1.msra.mxu0 0.0
    %1976 = vmatprep.subr.mxu0 0.0
    %1977 = vmatpush1.msra.mxu0 0.0
    %1978 = vmatprep.subr.mxu0 0.0
    %1979 = vmatpush1.msra.mxu0 0.0
    %1980 = vmatprep.subr.mxu0 0.0
    %1981 = vmatpush1.msra.mxu0 0.0
    %1982 = vmatprep.subr.mxu0 0.0
    %1983 = vmatpush1.msra.mxu0 0.0
    %1984 = vmatprep.subr.mxu0 0.0
    %1985 = vmatpush1.msra.mxu0 0.0
    %1986 = vmatprep.subr.mxu0 0.0
    %1987 = vmatpush1.msra.mxu0 0.0
    %1988 = vmatprep.subr.mxu0 0.0
    %1989 = vmatpush1.msra.mxu0 0.0
    %1990 = vmatprep.subr.mxu0 0.0
    %1991 = vmatpush1.msra.mxu0 0.0
    %1992 = vmatprep.subr.mxu0 0.0
    %1993 = vmatpush1.msra.mxu0 0.0
    %1994 = vmatprep.subr.mxu0 0.0
    %1995 = vmatpush1.msra.mxu0 0.0
    %1996 = vmatprep.subr.mxu0 0.0
    %1997 = vmatpush1.msra.mxu0 0.0
    %1998 = vmatprep.subr.mxu0 0.0
    %1999 = vmatpush1.msra.mxu0 0.0
    %2000 = vmatprep.subr.mxu0 0.0
    %2001 = vmatpush1.msra.mxu0 0.0
    %2002 = vmatprep.subr.mxu0 0.0
    %2003 = vmatpush1.msra.mxu0 0.0
    %2004 = vmatprep.subr.mxu0 0.0
    %2005 = vmatpush1.msra.mxu0 0.0
    %2006 = vmatprep.subr.mxu0 0.0
    %2007 = vmatpush1.msra.mxu0 0.0
    %2008 = vmatprep.subr.mxu0 0.0
    %2009 = vmatpush1.msra.mxu0 0.0
    %2010 = vmatprep.subr.mxu0 0.0
    %2011 = vmatpush1.msra.mxu0 0.0
    %2012 = vmatprep.subr.mxu0 0.0
    %2013 = vmatpush1.msra.mxu0 0.0
    %2014 = vmatprep.subr.mxu0 0.0
    %2015 = vmatpush1.msra.mxu0 0.0
    %2016 = vmatprep.subr.mxu0 0.0
    %2017 = vmatpush1.msra.mxu0 0.0
    %2018 = vmatprep.subr.mxu0 0.0
    %2019 = vmatpush1.msra.mxu0 0.0
    %2020 = vmatprep.subr.mxu0 0.0
    %2021 = vmatpush1.msra.mxu0 0.0
    %2022 = vmatprep.subr.mxu0 0.0
    %2023 = vmatpush1.msra.mxu0 0.0
    %2024 = vmatprep.subr.mxu0 0.0
    %2025 = vmatpush1.msra.mxu0 0.0
    %2026 = vmatprep.subr.mxu0 0.0
    %2027 = vmatpush1.msra.mxu0 0.0
    %2028 = vmatprep.subr.mxu0 0.0
    %2029 = vmatpush1.msra.mxu0 0.0
    %2030 = vmatprep.subr.mxu0 0.0
    %2031 = vmatpush1.msra.mxu0 0.0
    %2032 = vmatprep.mubr.f32.mxu0 0.0
    %2033 = vmatmul.mubr.f32.gmra.mrb[0].mxu0 %v1966
    %v2034 = vpop.f32.mrb[0].mxu0
    %v2035 = vadd.f32 0.0, %v2034
    %v2036 = vpop.f32.mrb[0].mxu0
    %2037 = vdwg.mxu0
    %v2039 = vsel %vm465, %v1959, 0
    %v2042 = vsel %vm465, %v2035, 0
    %2044 = vmatprep.subr.mxu0 0.0
    %2045 = vmatpush1.msra.mxu0 %v365
    %2046 = vmatprep.subr.mxu0 0.0
    %2047 = vmatpush1.msra.mxu0 0.0
    %2048 = vmatprep.subr.mxu0 0.0
    %2049 = vmatpush1.msra.mxu0 0.0
    %2050 = vmatprep.subr.mxu0 0.0
    %2051 = vmatpush1.msra.mxu0 0.0
    %2052 = vmatprep.subr.mxu0 0.0
    %2053 = vmatpush1.msra.mxu0 0.0
    %2054 = vmatprep.subr.mxu0 0.0
    %2055 = vmatpush1.msra.mxu0 0.0
    %2056 = vmatprep.subr.mxu0 0.0
    %2057 = vmatpush1.msra.mxu0 0.0
    %2058 = vmatprep.subr.mxu0 0.0
    %2059 = vmatpush1.msra.mxu0 0.0
    %2060 = vmatprep.subr.mxu0 0.0
    %2061 = vmatpush1.msra.mxu0 0.0
    %2062 = vmatprep.subr.mxu0 0.0
    %2063 = vmatpush1.msra.mxu0 0.0
    %2064 = vmatprep.subr.mxu0 0.0
    %2065 = vmatpush1.msra.mxu0 0.0
    %2066 = vmatprep.subr.mxu0 0.0
    %2067 = vmatpush1.msra.mxu0 0.0
    %2068 = vmatprep.subr.mxu0 0.0
    %2069 = vmatpush1.msra.mxu0 0.0
    %2070 = vmatprep.subr.mxu0 0.0
    %2071 = vmatpush1.msra.mxu0 0.0
    %2072 = vmatprep.subr.mxu0 0.0
    %2073 = vmatpush1.msra.mxu0 0.0
    %2074 = vmatprep.subr.mxu0 0.0
    %2075 = vmatpush1.msra.mxu0 0.0
    %2076 = vmatprep.subr.mxu0 0.0
    %2077 = vmatpush1.msra.mxu0 0.0
    %2078 = vmatprep.subr.mxu0 0.0
    %2079 = vmatpush1.msra.mxu0 0.0
    %2080 = vmatprep.subr.mxu0 0.0
    %2081 = vmatpush1.msra.mxu0 0.0
    %2082 = vmatprep.subr.mxu0 0.0
    %2083 = vmatpush1.msra.mxu0 0.0
    %2084 = vmatprep.subr.mxu0 0.0
    %2085 = vmatpush1.msra.mxu0 0.0
    %2086 = vmatprep.subr.mxu0 0.0
    %2087 = vmatpush1.msra.mxu0 0.0
    %2088 = vmatprep.subr.mxu0 0.0
    %2089 = vmatpush1.msra.mxu0 0.0
    %2090 = vmatprep.subr.mxu0 0.0
    %2091 = vmatpush1.msra.mxu0 0.0
    %2092 = vmatprep.subr.mxu0 0.0
    %2093 = vmatpush1.msra.mxu0 0.0
    %2094 = vmatprep.subr.mxu0 0.0
    %2095 = vmatpush1.msra.mxu0 0.0
    %2096 = vmatprep.subr.mxu0 0.0
    %2097 = vmatpush1.msra.mxu0 0.0
    %2098 = vmatprep.subr.mxu0 0.0
    %2099 = vmatpush1.msra.mxu0 0.0
    %2100 = vmatprep.subr.mxu0 0.0
    %2101 = vmatpush1.msra.mxu0 0.0
    %2102 = vmatprep.subr.mxu0 0.0
    %2103 = vmatpush1.msra.mxu0 0.0
    %2104 = vmatprep.subr.mxu0 0.0
    %2105 = vmatpush1.msra.mxu0 0.0
    %2106 = vmatprep.subr.mxu0 0.0
    %2107 = vmatpush1.msra.mxu0 0.0
    %2108 = vmatprep.mubr.f32.mxu0 0.0
    %2109 = vmatmul.mubr.f32.gmra.mrb[0].mxu0 %v2039
    %v2110 = vpop.f32.mrb[0].mxu0
    %v2111 = vadd.f32 0.0, %v2110
    %v2112 = vpop.f32.mrb[0].mxu0
    %2113 = vmatprep.mubr.f32.mxu0 0.0
    %2114 = vmatmul.mubr.f32.gmra.mrb[0].mxu0 %v2042
    %v2115 = vpop.f32.mrb[0].mxu0
    %v2116 = vadd.f32 0.0, %v2115
    %v2117 = vpop.f32.mrb[0].mxu0
    %2118 = vdwg.mxu0
    %v2119 = vadd.f32 %v1704, %v2111
    %v2120 = vadd.f32 %v1705, %v2116
    %v2121 = vld [vmem:[%s9] sm:$0xff]
    %v2122 = vld [vmem:[%s9 + $0x8] sm:$0xff]
    %v2123 = vld [vmem:[%s9 + $0x10] sm:$0xff]
    %v2124 = vld [vmem:[%s9 + $0x18] sm:$0xff]
    %v2125 = vld [vmem:[%s10] sm:$0x1]
    %v2126 = vld [vmem:[#allocation14] sm:$0xff]
    %v2127 = vld [vmem:[#allocation14 + $0x8] sm:$0xff]
    %v2128 = vld [vmem:[#allocation14 + $0x10] sm:$0xff]
    %v2129 = vld [vmem:[#allocation14 + $0x18] sm:$0xff]
    %v2130 = vld [vmem:[%s12] sm:$0x1]
    %v2132 = vlaneseq
    %v2133 = vshrl.u32 %v2132, 7
    %v2134 = vsub.s32 0, %v2133
    %v2135 = vrot.slane %v2125, %v2134
    %v2138 = vsel %vm275, %v2119, 0
    %v2141 = vsel %vm275, %v2120, 0
    %2143 = vmatprep.subr.mxu0 0.0
    %2144 = vmatpush1.msra.mxu0 %v2121
    %2145 = vmatprep.subr.mxu0 0.0
    %2146 = vmatpush1.msra.mxu0 %v2122
    %2147 = vmatprep.subr.mxu0 0.0
    %2148 = vmatpush1.msra.mxu0 %v2123
    %2149 = vmatprep.subr.mxu0 0.0
    %2150 = vmatpush1.msra.mxu0 %v2124
    %2151 = vmatprep.subr.mxu0 0.0
    %2152 = vmatpush1.msra.mxu0 0.0
    %2153 = vmatprep.subr.mxu0 0.0
    %2154 = vmatpush1.msra.mxu0 0.0
    %2155 = vmatprep.subr.mxu0 0.0
    %2156 = vmatpush1.msra.mxu0 0.0
    %2157 = vmatprep.subr.mxu0 0.0
    %2158 = vmatpush1.msra.mxu0 0.0
    %2159 = vmatprep.subr.mxu0 0.0
    %2160 = vmatpush1.msra.mxu0 0.0
    %2161 = vmatprep.subr.mxu0 0.0
    %2162 = vmatpush1.msra.mxu0 0.0
    %2163 = vmatprep.subr.mxu0 0.0
    %2164 = vmatpush1.msra.mxu0 0.0
    %2165 = vmatprep.subr.mxu0 0.0
    %2166 = vmatpush1.msra.mxu0 0.0
    %2167 = vmatprep.subr.mxu0 0.0
    %2168 = vmatpush1.msra.mxu0 0.0
    %2169 = vmatprep.subr.mxu0 0.0
    %2170 = vmatpush1.msra.mxu0 0.0
    %2171 = vmatprep.subr.mxu0 0.0
    %2172 = vmatpush1.msra.mxu0 0.0
    %2173 = vmatprep.subr.mxu0 0.0
    %2174 = vmatpush1.msra.mxu0 0.0
    %2175 = vmatprep.subr.mxu0 0.0
    %2176 = vmatpush1.msra.mxu0 0.0
    %2177 = vmatprep.subr.mxu0 0.0
    %2178 = vmatpush1.msra.mxu0 0.0
    %2179 = vmatprep.subr.mxu0 0.0
    %2180 = vmatpush1.msra.mxu0 0.0
    %2181 = vmatprep.subr.mxu0 0.0
    %2182 = vmatpush1.msra.mxu0 0.0
    %2183 = vmatprep.subr.mxu0 0.0
    %2184 = vmatpush1.msra.mxu0 0.0
    %2185 = vmatprep.subr.mxu0 0.0
    %2186 = vmatpush1.msra.mxu0 0.0
    %2187 = vmatprep.subr.mxu0 0.0
    %2188 = vmatpush1.msra.mxu0 0.0
    %2189 = vmatprep.subr.mxu0 0.0
    %2190 = vmatpush1.msra.mxu0 0.0
    %2191 = vmatprep.subr.mxu0 0.0
    %2192 = vmatpush1.msra.mxu0 0.0
    %2193 = vmatprep.subr.mxu0 0.0
    %2194 = vmatpush1.msra.mxu0 0.0
    %2195 = vmatprep.subr.mxu0 0.0
    %2196 = vmatpush1.msra.mxu0 0.0
    %2197 = vmatprep.subr.mxu0 0.0
    %2198 = vmatpush1.msra.mxu0 0.0
    %2199 = vmatprep.subr.mxu0 0.0
    %2200 = vmatpush1.msra.mxu0 0.0
    %2201 = vmatprep.subr.mxu0 0.0
    %2202 = vmatpush1.msra.mxu0 0.0
    %2203 = vmatprep.subr.mxu0 0.0
    %2204 = vmatpush1.msra.mxu0 0.0
    %2205 = vmatprep.subr.mxu0 0.0
    %2206 = vmatpush1.msra.mxu0 0.0
    %2207 = vmatprep.mubr.f32.mxu0 0.0
    %2208 = vmatmul.mubr.f32.gmra.mrb[0].mxu0 %v2138
    %v2209 = vpop.f32.mrb[0].mxu0
    %v2210 = vadd.f32 %v2135, %v2209
    %v2211 = vpop.f32.mrb[0].mxu0
    %2212 = vmatprep.mubr.f32.mxu0 0.0
    %2213 = vmatmul.mubr.f32.gmra.mrb[0].mxu0 %v2141
    %v2214 = vpop.f32.mrb[0].mxu0
    %v2215 = vadd.f32 %v2135, %v2214
    %v2216 = vpop.f32.mrb[0].mxu0
    %2217 = vdwg.mxu0
    %v2219 = vlaneseq
    %v2220 = vshrl.u32 %v2219, 7
    %v2221 = vsub.s32 0, %v2220
    %v2222 = vrot.slane %v2130, %v2221
    %v2224 = vadd.f32 %v2119, %v2222
    %v2225 = vadd.f32 %v2120, %v2222
    %2227 = vrot.lane.b32.xlu0 %v2210, 96
    %v2228 = vpop.permute.xlu0 %2227
    %v2229 = vsel %vm465, %v2210, 0
    %v2231 = vsel %vm465, %v2228, 0
    %2233 = vmatprep.subr.mxu0 0.0
    %2234 = vmatpush1.xpose.msra.mxu0 %v2231
    %2235 = vmatprep.subr.mxu0 0.0
    %2236 = vmatpush1.xpose.msra.mxu0 0.0
    %2237 = vmatprep.subr.mxu0 0.0
    %2238 = vmatpush1.xpose.msra.mxu0 0.0
    %2239 = vmatprep.subr.mxu0 0.0
    %2240 = vmatpush1.xpose.msra.mxu0 0.0
    %2241 = vmatprep.subr.mxu0 0.0
    %2242 = vmatpush1.xpose.msra.mxu0 0.0
    %2243 = vmatprep.subr.mxu0 0.0
    %2244 = vmatpush1.xpose.msra.mxu0 0.0
    %2245 = vmatprep.subr.mxu0 0.0
    %2246 = vmatpush1.xpose.msra.mxu0 0.0
    %2247 = vmatprep.subr.mxu0 0.0
    %2248 = vmatpush1.xpose.msra.mxu0 0.0
    %2249 = vmatprep.subr.mxu0 0.0
    %2250 = vmatpush1.xpose.msra.mxu0 0.0
    %2251 = vmatprep.subr.mxu0 0.0
    %2252 = vmatpush1.xpose.msra.mxu0 0.0
    %2253 = vmatprep.subr.mxu0 0.0
    %2254 = vmatpush1.xpose.msra.mxu0 0.0
    %2255 = vmatprep.subr.mxu0 0.0
    %2256 = vmatpush1.xpose.msra.mxu0 0.0
    %2257 = vmatprep.subr.mxu0 0.0
    %2258 = vmatpush1.xpose.msra.mxu0 0.0
    %2259 = vmatprep.subr.mxu0 0.0
    %2260 = vmatpush1.xpose.msra.mxu0 0.0
    %2261 = vmatprep.subr.mxu0 0.0
    %2262 = vmatpush1.xpose.msra.mxu0 0.0
    %2263 = vmatprep.subr.mxu0 0.0
    %2264 = vmatpush1.xpose.msra.mxu0 0.0
    %2265 = vmatprep.subr.mxu0 0.0
    %2266 = vmatpush1.xpose.msra.mxu0 0.0
    %2267 = vmatprep.subr.mxu0 0.0
    %2268 = vmatpush1.xpose.msra.mxu0 0.0
    %2269 = vmatprep.subr.mxu0 0.0
    %2270 = vmatpush1.xpose.msra.mxu0 0.0
    %2271 = vmatprep.subr.mxu0 0.0
    %2272 = vmatpush1.xpose.msra.mxu0 0.0
    %2273 = vmatprep.subr.mxu0 0.0
    %2274 = vmatpush1.xpose.msra.mxu0 0.0
    %2275 = vmatprep.subr.mxu0 0.0
    %2276 = vmatpush1.xpose.msra.mxu0 0.0
    %2277 = vmatprep.subr.mxu0 0.0
    %2278 = vmatpush1.xpose.msra.mxu0 0.0
    %2279 = vmatprep.subr.mxu0 0.0
    %2280 = vmatpush1.xpose.msra.mxu0 0.0
    %2281 = vmatprep.subr.mxu0 0.0
    %2282 = vmatpush1.xpose.msra.mxu0 0.0
    %2283 = vmatprep.subr.mxu0 0.0
    %2284 = vmatpush1.xpose.msra.mxu0 0.0
    %2285 = vmatprep.subr.mxu0 0.0
    %2286 = vmatpush1.xpose.msra.mxu0 0.0
    %2287 = vmatprep.subr.mxu0 0.0
    %2288 = vmatpush1.xpose.msra.mxu0 0.0
    %2289 = vmatprep.subr.mxu0 0.0
    %2290 = vmatpush1.xpose.msra.mxu0 0.0
    %2291 = vmatprep.subr.mxu0 0.0
    %2292 = vmatpush1.xpose.msra.mxu0 0.0
    %2293 = vmatprep.subr.mxu0 0.0
    %2294 = vmatpush1.xpose.msra.mxu0 0.0
    %2295 = vmatprep.subr.mxu0 0.0
    %2296 = vmatpush1.xpose.msra.mxu0 0.0
    %2297 = vmatprep.mubr.f32.mxu0 0.0
    %2298 = vmatmul.mubr.f32.gmra.mrb[0].mxu0 %v2229
    %v2299 = vpop.f32.mrb[0].mxu0
    %v2300 = vadd.f32 0.0, %v2299
    %v2301 = vpop.f32.mrb[0].mxu0
    %2302 = vdwg.mxu0
    %2304 = vrot.lane.b32.xlu0 %v2215, 96
    %v2305 = vpop.permute.xlu0 %2304
    %v2306 = vsel %vm465, %v2215, 0
    %v2308 = vsel %vm465, %v2305, 0
    %2310 = vmatprep.subr.mxu0 0.0
    %2311 = vmatpush1.xpose.msra.mxu0 %v2308
    %2312 = vmatprep.subr.mxu0 0.0
    %2313 = vmatpush1.xpose.msra.mxu0 0.0
    %2314 = vmatprep.subr.mxu0 0.0
    %2315 = vmatpush1.xpose.msra.mxu0 0.0
    %2316 = vmatprep.subr.mxu0 0.0
    %2317 = vmatpush1.xpose.msra.mxu0 0.0
    %2318 = vmatprep.subr.mxu0 0.0
    %2319 = vmatpush1.xpose.msra.mxu0 0.0
    %2320 = vmatprep.subr.mxu0 0.0
    %2321 = vmatpush1.xpose.msra.mxu0 0.0
    %2322 = vmatprep.subr.mxu0 0.0
    %2323 = vmatpush1.xpose.msra.mxu0 0.0
    %2324 = vmatprep.subr.mxu0 0.0
    %2325 = vmatpush1.xpose.msra.mxu0 0.0
    %2326 = vmatprep.subr.mxu0 0.0
    %2327 = vmatpush1.xpose.msra.mxu0 0.0
    %2328 = vmatprep.subr.mxu0 0.0
    %2329 = vmatpush1.xpose.msra.mxu0 0.0
    %2330 = vmatprep.subr.mxu0 0.0
    %2331 = vmatpush1.xpose.msra.mxu0 0.0
    %2332 = vmatprep.subr.mxu0 0.0
    %2333 = vmatpush1.xpose.msra.mxu0 0.0
    %2334 = vmatprep.subr.mxu0 0.0
    %2335 = vmatpush1.xpose.msra.mxu0 0.0
    %2336 = vmatprep.subr.mxu0 0.0
    %2337 = vmatpush1.xpose.msra.mxu0 0.0
    %2338 = vmatprep.subr.mxu0 0.0
    %2339 = vmatpush1.xpose.msra.mxu0 0.0
    %2340 = vmatprep.subr.mxu0 0.0
    %2341 = vmatpush1.xpose.msra.mxu0 0.0
    %2342 = vmatprep.subr.mxu0 0.0
    %2343 = vmatpush1.xpose.msra.mxu0 0.0
    %2344 = vmatprep.subr.mxu0 0.0
    %2345 = vmatpush1.xpose.msra.mxu0 0.0
    %2346 = vmatprep.subr.mxu0 0.0
    %2347 = vmatpush1.xpose.msra.mxu0 0.0
    %2348 = vmatprep.subr.mxu0 0.0
    %2349 = vmatpush1.xpose.msra.mxu0 0.0
    %2350 = vmatprep.subr.mxu0 0.0
    %2351 = vmatpush1.xpose.msra.mxu0 0.0
    %2352 = vmatprep.subr.mxu0 0.0
    %2353 = vmatpush1.xpose.msra.mxu0 0.0
    %2354 = vmatprep.subr.mxu0 0.0
    %2355 = vmatpush1.xpose.msra.mxu0 0.0
    %2356 = vmatprep.subr.mxu0 0.0
    %2357 = vmatpush1.xpose.msra.mxu0 0.0
    %2358 = vmatprep.subr.mxu0 0.0
    %2359 = vmatpush1.xpose.msra.mxu0 0.0
    %2360 = vmatprep.subr.mxu0 0.0
    %2361 = vmatpush1.xpose.msra.mxu0 0.0
    %2362 = vmatprep.subr.mxu0 0.0
    %2363 = vmatpush1.xpose.msra.mxu0 0.0
    %2364 = vmatprep.subr.mxu0 0.0
    %2365 = vmatpush1.xpose.msra.mxu0 0.0
    %2366 = vmatprep.subr.mxu0 0.0
    %2367 = vmatpush1.xpose.msra.mxu0 0.0
    %2368 = vmatprep.subr.mxu0 0.0
    %2369 = vmatpush1.xpose.msra.mxu0 0.0
    %2370 = vmatprep.subr.mxu0 0.0
    %2371 = vmatpush1.xpose.msra.mxu0 0.0
    %2372 = vmatprep.subr.mxu0 0.0
    %2373 = vmatpush1.xpose.msra.mxu0 0.0
    %2374 = vmatprep.mubr.f32.mxu0 0.0
    %2375 = vmatmul.mubr.f32.gmra.mrb[0].mxu0 %v2306
    %v2376 = vpop.f32.mrb[0].mxu0
    %v2377 = vadd.f32 0.0, %v2376
    %v2378 = vpop.f32.mrb[0].mxu0
    %2379 = vdwg.mxu0
    %v2380 = vmul.f32 %v2300, 0.35355338
    %v2381 = vmul.f32 %v2377, 0.35355338
    %v2382 = vsel %vm465, %v2380, -inf
    %2383 = vmax.xlane.f32.xlu0 %v2382
    %v2384 = vpop.xlane.xlu0 %2383
    %v2385 = vsel %vm465, %v2381, -inf
    %2386 = vmax.xlane.f32.xlu0 %v2385
    %v2387 = vpop.xlane.xlu0 %2386
    %v2388 = vsub.f32 %v2380, %v2384
    %v2389 = vsub.f32 %v2381, %v2387
    %v2390 = vmul.f32 %v2388, 1.442695
    %v2391 = vpow.pop %v2390
    %v2392 = vmul.f32 %v2389, 1.442695
    %v2393 = vpow.pop %v2392
    %v2394 = vsel %vm465, %v2391, 0.0
    %2395 = vadd.xlane.f32.xlu0 %v2394
    %v2396 = vpop.xlane.xlu0 %2395
    %v2397 = vsel %vm465, %v2393, 0.0
    %2398 = vadd.xlane.f32.xlu0 %v2397
    %v2399 = vpop.xlane.xlu0 %2398
    %v2400 = vrcp.pop %v2396
    %v2401 = vrcp.pop %v2399
    %v2402 = vmul.f32 %v2391, %v2400
    %v2403 = vmul.f32 %v2393, %v2401
    %2404 = vrot.lane.b32.xlu0 %v2210, 64
    %v2405 = vpop.permute.xlu0 %2404
    %v2408 = vsel %vm465, %v2402, 0
    %2410 = vmatprep.subr.mxu0 0.0
    %2411 = vmatpush1.msra.mxu0 %v2405
    %2412 = vmatprep.subr.mxu0 0.0
    %2413 = vmatpush1.msra.mxu0 0.0
    %2414 = vmatprep.subr.mxu0 0.0
    %2415 = vmatpush1.msra.mxu0 0.0
    %2416 = vmatprep.subr.mxu0 0.0
    %2417 = vmatpush1.msra.mxu0 0.0
    %2418 = vmatprep.subr.mxu0 0.0
    %2419 = vmatpush1.msra.mxu0 0.0
    %2420 = vmatprep.subr.mxu0 0.0
    %2421 = vmatpush1.msra.mxu0 0.0
    %2422 = vmatprep.subr.mxu0 0.0
    %2423 = vmatpush1.msra.mxu0 0.0
    %2424 = vmatprep.subr.mxu0 0.0
    %2425 = vmatpush1.msra.mxu0 0.0
    %2426 = vmatprep.subr.mxu0 0.0
    %2427 = vmatpush1.msra.mxu0 0.0
    %2428 = vmatprep.subr.mxu0 0.0
    %2429 = vmatpush1.msra.mxu0 0.0
    %2430 = vmatprep.subr.mxu0 0.0
    %2431 = vmatpush1.msra.mxu0 0.0
    %2432 = vmatprep.subr.mxu0 0.0
    %2433 = vmatpush1.msra.mxu0 0.0
    %2434 = vmatprep.subr.mxu0 0.0
    %2435 = vmatpush1.msra.mxu0 0.0
    %2436 = vmatprep.subr.mxu0 0.0
    %2437 = vmatpush1.msra.mxu0 0.0
    %2438 = vmatprep.subr.mxu0 0.0
    %2439 = vmatpush1.msra.mxu0 0.0
    %2440 = vmatprep.subr.mxu0 0.0
    %2441 = vmatpush1.msra.mxu0 0.0
    %2442 = vmatprep.subr.mxu0 0.0
    %2443 = vmatpush1.msra.mxu0 0.0
    %2444 = vmatprep.subr.mxu0 0.0
    %2445 = vmatpush1.msra.mxu0 0.0
    %2446 = vmatprep.subr.mxu0 0.0
    %2447 = vmatpush1.msra.mxu0 0.0
    %2448 = vmatprep.subr.mxu0 0.0
    %2449 = vmatpush1.msra.mxu0 0.0
    %2450 = vmatprep.subr.mxu0 0.0
    %2451 = vmatpush1.msra.mxu0 0.0
    %2452 = vmatprep.subr.mxu0 0.0
    %2453 = vmatpush1.msra.mxu0 0.0
    %2454 = vmatprep.subr.mxu0 0.0
    %2455 = vmatpush1.msra.mxu0 0.0
    %2456 = vmatprep.subr.mxu0 0.0
    %2457 = vmatpush1.msra.mxu0 0.0
    %2458 = vmatprep.subr.mxu0 0.0
    %2459 = vmatpush1.msra.mxu0 0.0
    %2460 = vmatprep.subr.mxu0 0.0
    %2461 = vmatpush1.msra.mxu0 0.0
    %2462 = vmatprep.subr.mxu0 0.0
    %2463 = vmatpush1.msra.mxu0 0.0
    %2464 = vmatprep.subr.mxu0 0.0
    %2465 = vmatpush1.msra.mxu0 0.0
    %2466 = vmatprep.subr.mxu0 0.0
    %2467 = vmatpush1.msra.mxu0 0.0
    %2468 = vmatprep.subr.mxu0 0.0
    %2469 = vmatpush1.msra.mxu0 0.0
    %2470 = vmatprep.subr.mxu0 0.0
    %2471 = vmatpush1.msra.mxu0 0.0
    %2472 = vmatprep.subr.mxu0 0.0
    %2473 = vmatpush1.msra.mxu0 0.0
    %2474 = vmatprep.mubr.f32.mxu0 0.0
    %2475 = vmatmul.mubr.f32.gmra.mrb[0].mxu0 %v2408
    %v2476 = vpop.f32.mrb[0].mxu0
    %v2477 = vadd.f32 0.0, %v2476
    %v2478 = vpop.f32.mrb[0].mxu0
    %2479 = vdwg.mxu0
    %2480 = vrot.lane.b32.xlu0 %v2215, 64
    %v2481 = vpop.permute.xlu0 %2480
    %v2484 = vsel %vm465, %v2403, 0
    %2486 = vmatprep.subr.mxu0 0.0
    %2487 = vmatpush1.msra.mxu0 %v2481
    %2488 = vmatprep.subr.mxu0 0.0
    %2489 = vmatpush1.msra.mxu0 0.0
    %2490 = vmatprep.subr.mxu0 0.0
    %2491 = vmatpush1.msra.mxu0 0.0
    %2492 = vmatprep.subr.mxu0 0.0
    %2493 = vmatpush1.msra.mxu0 0.0
    %2494 = vmatprep.subr.mxu0 0.0
    %2495 = vmatpush1.msra.mxu0 0.0
    %2496 = vmatprep.subr.mxu0 0.0
    %2497 = vmatpush1.msra.mxu0 0.0
    %2498 = vmatprep.subr.mxu0 0.0
    %2499 = vmatpush1.msra.mxu0 0.0
    %2500 = vmatprep.subr.mxu0 0.0
    %2501 = vmatpush1.msra.mxu0 0.0
    %2502 = vmatprep.subr.mxu0 0.0
    %2503 = vmatpush1.msra.mxu0 0.0
    %2504 = vmatprep.subr.mxu0 0.0
    %2505 = vmatpush1.msra.mxu0 0.0
    %2506 = vmatprep.subr.mxu0 0.0
    %2507 = vmatpush1.msra.mxu0 0.0
    %2508 = vmatprep.subr.mxu0 0.0
    %2509 = vmatpush1.msra.mxu0 0.0
    %2510 = vmatprep.subr.mxu0 0.0
    %2511 = vmatpush1.msra.mxu0 0.0
    %2512 = vmatprep.subr.mxu0 0.0
    %2513 = vmatpush1.msra.mxu0 0.0
    %2514 = vmatprep.subr.mxu0 0.0
    %2515 = vmatpush1.msra.mxu0 0.0
    %2516 = vmatprep.subr.mxu0 0.0
    %2517 = vmatpush1.msra.mxu0 0.0
    %2518 = vmatprep.subr.mxu0 0.0
    %2519 = vmatpush1.msra.mxu0 0.0
    %2520 = vmatprep.subr.mxu0 0.0
    %2521 = vmatpush1.msra.mxu0 0.0
    %2522 = vmatprep.subr.mxu0 0.0
    %2523 = vmatpush1.msra.mxu0 0.0
    %2524 = vmatprep.subr.mxu0 0.0
    %2525 = vmatpush1.msra.mxu0 0.0
    %2526 = vmatprep.subr.mxu0 0.0
    %2527 = vmatpush1.msra.mxu0 0.0
    %2528 = vmatprep.subr.mxu0 0.0
    %2529 = vmatpush1.msra.mxu0 0.0
    %2530 = vmatprep.subr.mxu0 0.0
    %2531 = vmatpush1.msra.mxu0 0.0
    %2532 = vmatprep.subr.mxu0 0.0
    %2533 = vmatpush1.msra.mxu0 0.0
    %2534 = vmatprep.subr.mxu0 0.0
    %2535 = vmatpush1.msra.mxu0 0.0
    %2536 = vmatprep.subr.mxu0 0.0
    %2537 = vmatpush1.msra.mxu0 0.0
    %2538 = vmatprep.subr.mxu0 0.0
    %2539 = vmatpush1.msra.mxu0 0.0
    %2540 = vmatprep.subr.mxu0 0.0
    %2541 = vmatpush1.msra.mxu0 0.0
    %2542 = vmatprep.subr.mxu0 0.0
    %2543 = vmatpush1.msra.mxu0 0.0
    %2544 = vmatprep.subr.mxu0 0.0
    %2545 = vmatpush1.msra.mxu0 0.0
    %2546 = vmatprep.subr.mxu0 0.0
    %2547 = vmatpush1.msra.mxu0 0.0
    %2548 = vmatprep.subr.mxu0 0.0
    %2549 = vmatpush1.msra.mxu0 0.0
    %2550 = vmatprep.mubr.f32.mxu0 0.0
    %2551 = vmatmul.mubr.f32.gmra.mrb[0].mxu0 %v2484
    %v2552 = vpop.f32.mrb[0].mxu0
    %v2553 = vadd.f32 0.0, %v2552
    %v2554 = vpop.f32.mrb[0].mxu0
    %2555 = vdwg.mxu0
    %v2557 = vsel %vm465, %v2477, 0
    %v2560 = vsel %vm465, %v2553, 0
    %2562 = vmatprep.subr.mxu0 0.0
    %2563 = vmatpush1.msra.mxu0 %v2126
    %2564 = vmatprep.subr.mxu0 0.0
    %2565 = vmatpush1.msra.mxu0 0.0
    %2566 = vmatprep.subr.mxu0 0.0
    %2567 = vmatpush1.msra.mxu0 0.0
    %2568 = vmatprep.subr.mxu0 0.0
    %2569 = vmatpush1.msra.mxu0 0.0
    %2570 = vmatprep.subr.mxu0 0.0
    %2571 = vmatpush1.msra.mxu0 0.0
    %2572 = vmatprep.subr.mxu0 0.0
    %2573 = vmatpush1.msra.mxu0 0.0
    %2574 = vmatprep.subr.mxu0 0.0
    %2575 = vmatpush1.msra.mxu0 0.0
    %2576 = vmatprep.subr.mxu0 0.0
    %2577 = vmatpush1.msra.mxu0 0.0
    %2578 = vmatprep.subr.mxu0 0.0
    %2579 = vmatpush1.msra.mxu0 0.0
    %2580 = vmatprep.subr.mxu0 0.0
    %2581 = vmatpush1.msra.mxu0 0.0
    %2582 = vmatprep.subr.mxu0 0.0
    %2583 = vmatpush1.msra.mxu0 0.0
    %2584 = vmatprep.subr.mxu0 0.0
    %2585 = vmatpush1.msra.mxu0 0.0
    %2586 = vmatprep.subr.mxu0 0.0
    %2587 = vmatpush1.msra.mxu0 0.0
    %2588 = vmatprep.subr.mxu0 0.0
    %2589 = vmatpush1.msra.mxu0 0.0
    %2590 = vmatprep.subr.mxu0 0.0
    %2591 = vmatpush1.msra.mxu0 0.0
    %2592 = vmatprep.subr.mxu0 0.0
    %2593 = vmatpush1.msra.mxu0 0.0
    %2594 = vmatprep.subr.mxu0 0.0
    %2595 = vmatpush1.msra.mxu0 0.0
    %2596 = vmatprep.subr.mxu0 0.0
    %2597 = vmatpush1.msra.mxu0 0.0
    %2598 = vmatprep.subr.mxu0 0.0
    %2599 = vmatpush1.msra.mxu0 0.0
    %2600 = vmatprep.subr.mxu0 0.0
    %2601 = vmatpush1.msra.mxu0 0.0
    %2602 = vmatprep.subr.mxu0 0.0
    %2603 = vmatpush1.msra.mxu0 0.0
    %2604 = vmatprep.subr.mxu0 0.0
    %2605 = vmatpush1.msra.mxu0 0.0
    %2606 = vmatprep.subr.mxu0 0.0
    %2607 = vmatpush1.msra.mxu0 0.0
    %2608 = vmatprep.subr.mxu0 0.0
    %2609 = vmatpush1.msra.mxu0 0.0
    %2610 = vmatprep.subr.mxu0 0.0
    %2611 = vmatpush1.msra.mxu0 0.0
    %2612 = vmatprep.subr.mxu0 0.0
    %2613 = vmatpush1.msra.mxu0 0.0
    %2614 = vmatprep.subr.mxu0 0.0
    %2615 = vmatpush1.msra.mxu0 0.0
    %2616 = vmatprep.subr.mxu0 0.0
    %2617 = vmatpush1.msra.mxu0 0.0
    %2618 = vmatprep.subr.mxu0 0.0
    %2619 = vmatpush1.msra.mxu0 0.0
    %2620 = vmatprep.subr.mxu0 0.0
    %2621 = vmatpush1.msra.mxu0 0.0
    %2622 = vmatprep.subr.mxu0 0.0
    %2623 = vmatpush1.msra.mxu0 0.0
    %2624 = vmatprep.subr.mxu0 0.0
    %2625 = vmatpush1.msra.mxu0 0.0
    %2626 = vmatprep.mubr.f32.mxu0 0.0
    %2627 = vmatmul.mubr.f32.gmra.mrb[0].mxu0 %v2557
    %v2628 = vpop.f32.mrb[0].mxu0
    %v2629 = vadd.f32 0.0, %v2628
    %v2630 = vpop.f32.mrb[0].mxu0
    %2631 = vmatprep.mubr.f32.mxu0 0.0
    %2632 = vmatmul.mubr.f32.gmra.mrb[0].mxu0 %v2560
    %v2633 = vpop.f32.mrb[0].mxu0
    %v2634 = vadd.f32 0.0, %v2633
    %v2635 = vpop.f32.mrb[0].mxu0
    %2636 = vdwg.mxu0
    %v2637 = vadd.f32 %v2224, %v2629
    %v2638 = vadd.f32 %v2225, %v2634
    %2639 = vrot.lane.b32.xlu0 %v2210, 120
    %v2640 = vpop.permute.xlu0 %2639
    %2641 = vrot.lane.b32.xlu0 %v2210, 88
    %v2642 = vpop.permute.xlu0 %2641
    %v2643 = vsel %vm465, %v2640, 0
    %v2645 = vsel %vm465, %v2642, 0
    %2647 = vmatprep.subr.mxu0 0.0
    %2648 = vmatpush1.xpose.msra.mxu0 %v2645
    %2649 = vmatprep.subr.mxu0 0.0
    %2650 = vmatpush1.xpose.msra.mxu0 0.0
    %2651 = vmatprep.subr.mxu0 0.0
    %2652 = vmatpush1.xpose.msra.mxu0 0.0
    %2653 = vmatprep.subr.mxu0 0.0
    %2654 = vmatpush1.xpose.msra.mxu0 0.0
    %2655 = vmatprep.subr.mxu0 0.0
    %2656 = vmatpush1.xpose.msra.mxu0 0.0
    %2657 = vmatprep.subr.mxu0 0.0
    %2658 = vmatpush1.xpose.msra.mxu0 0.0
    %2659 = vmatprep.subr.mxu0 0.0
    %2660 = vmatpush1.xpose.msra.mxu0 0.0
    %2661 = vmatprep.subr.mxu0 0.0
    %2662 = vmatpush1.xpose.msra.mxu0 0.0
    %2663 = vmatprep.subr.mxu0 0.0
    %2664 = vmatpush1.xpose.msra.mxu0 0.0
    %2665 = vmatprep.subr.mxu0 0.0
    %2666 = vmatpush1.xpose.msra.mxu0 0.0
    %2667 = vmatprep.subr.mxu0 0.0
    %2668 = vmatpush1.xpose.msra.mxu0 0.0
    %2669 = vmatprep.subr.mxu0 0.0
    %2670 = vmatpush1.xpose.msra.mxu0 0.0
    %2671 = vmatprep.subr.mxu0 0.0
    %2672 = vmatpush1.xpose.msra.mxu0 0.0
    %2673 = vmatprep.subr.mxu0 0.0
    %2674 = vmatpush1.xpose.msra.mxu0 0.0
    %2675 = vmatprep.subr.mxu0 0.0
    %2676 = vmatpush1.xpose.msra.mxu0 0.0
    %2677 = vmatprep.subr.mxu0 0.0
    %2678 = vmatpush1.xpose.msra.mxu0 0.0
    %2679 = vmatprep.subr.mxu0 0.0
    %2680 = vmatpush1.xpose.msra.mxu0 0.0
    %2681 = vmatprep.subr.mxu0 0.0
    %2682 = vmatpush1.xpose.msra.mxu0 0.0
    %2683 = vmatprep.subr.mxu0 0.0
    %2684 = vmatpush1.xpose.msra.mxu0 0.0
    %2685 = vmatprep.subr.mxu0 0.0
    %2686 = vmatpush1.xpose.msra.mxu0 0.0
    %2687 = vmatprep.subr.mxu0 0.0
    %2688 = vmatpush1.xpose.msra.mxu0 0.0
    %2689 = vmatprep.subr.mxu0 0.0
    %2690 = vmatpush1.xpose.msra.mxu0 0.0
    %2691 = vmatprep.subr.mxu0 0.0
    %2692 = vmatpush1.xpose.msra.mxu0 0.0
    %2693 = vmatprep.subr.mxu0 0.0
    %2694 = vmatpush1.xpose.msra.mxu0 0.0
    %2695 = vmatprep.subr.mxu0 0.0
    %2696 = vmatpush1.xpose.msra.mxu0 0.0
    %2697 = vmatprep.subr.mxu0 0.0
    %2698 = vmatpush1.xpose.msra.mxu0 0.0
    %2699 = vmatprep.subr.mxu0 0.0
    %2700 = vmatpush1.xpose.msra.mxu0 0.0
    %2701 = vmatprep.subr.mxu0 0.0
    %2702 = vmatpush1.xpose.msra.mxu0 0.0
    %2703 = vmatprep.subr.mxu0 0.0
    %2704 = vmatpush1.xpose.msra.mxu0 0.0
    %2705 = vmatprep.subr.mxu0 0.0
    %2706 = vmatpush1.xpose.msra.mxu0 0.0
    %2707 = vmatprep.subr.mxu0 0.0
    %2708 = vmatpush1.xpose.msra.mxu0 0.0
    %2709 = vmatprep.subr.mxu0 0.0
    %2710 = vmatpush1.xpose.msra.mxu0 0.0
    %2711 = vmatprep.mubr.f32.mxu0 0.0
    %2712 = vmatmul.mubr.f32.gmra.mrb[0].mxu0 %v2643
    %v2713 = vpop.f32.mrb[0].mxu0
    %v2714 = vadd.f32 0.0, %v2713
    %v2715 = vpop.f32.mrb[0].mxu0
    %2716 = vdwg.mxu0
    %2717 = vrot.lane.b32.xlu0 %v2215, 120
    %v2718 = vpop.permute.xlu0 %2717
    %2719 = vrot.lane.b32.xlu0 %v2215, 88
    %v2720 = vpop.permute.xlu0 %2719
    %v2721 = vsel %vm465, %v2718, 0
    %v2723 = vsel %vm465, %v2720, 0
    %2725 = vmatprep.subr.mxu0 0.0
    %2726 = vmatpush1.xpose.msra.mxu0 %v2723
    %2727 = vmatprep.subr.mxu0 0.0
    %2728 = vmatpush1.xpose.msra.mxu0 0.0
    %2729 = vmatprep.subr.mxu0 0.0
    %2730 = vmatpush1.xpose.msra.mxu0 0.0
    %2731 = vmatprep.subr.mxu0 0.0
    %2732 = vmatpush1.xpose.msra.mxu0 0.0
    %2733 = vmatprep.subr.mxu0 0.0
    %2734 = vmatpush1.xpose.msra.mxu0 0.0
    %2735 = vmatprep.subr.mxu0 0.0
    %2736 = vmatpush1.xpose.msra.mxu0 0.0
    %2737 = vmatprep.subr.mxu0 0.0
    %2738 = vmatpush1.xpose.msra.mxu0 0.0
    %2739 = vmatprep.subr.mxu0 0.0
    %2740 = vmatpush1.xpose.msra.mxu0 0.0
    %2741 = vmatprep.subr.mxu0 0.0
    %2742 = vmatpush1.xpose.msra.mxu0 0.0
    %2743 = vmatprep.subr.mxu0 0.0
    %2744 = vmatpush1.xpose.msra.mxu0 0.0
    %2745 = vmatprep.subr.mxu0 0.0
    %2746 = vmatpush1.xpose.msra.mxu0 0.0
    %2747 = vmatprep.subr.mxu0 0.0
    %2748 = vmatpush1.xpose.msra.mxu0 0.0
    %2749 = vmatprep.subr.mxu0 0.0
    %2750 = vmatpush1.xpose.msra.mxu0 0.0
    %2751 = vmatprep.subr.mxu0 0.0
    %2752 = vmatpush1.xpose.msra.mxu0 0.0
    %2753 = vmatprep.subr.mxu0 0.0
    %2754 = vmatpush1.xpose.msra.mxu0 0.0
    %2755 = vmatprep.subr.mxu0 0.0
    %2756 = vmatpush1.xpose.msra.mxu0 0.0
    %2757 = vmatprep.subr.mxu0 0.0
    %2758 = vmatpush1.xpose.msra.mxu0 0.0
    %2759 = vmatprep.subr.mxu0 0.0
    %2760 = vmatpush1.xpose.msra.mxu0 0.0
    %2761 = vmatprep.subr.mxu0 0.0
    %2762 = vmatpush1.xpose.msra.mxu0 0.0
    %2763 = vmatprep.subr.mxu0 0.0
    %2764 = vmatpush1.xpose.msra.mxu0 0.0
    %2765 = vmatprep.subr.mxu0 0.0
    %2766 = vmatpush1.xpose.msra.mxu0 0.0
    %2767 = vmatprep.subr.mxu0 0.0
    %2768 = vmatpush1.xpose.msra.mxu0 0.0
    %2769 = vmatprep.subr.mxu0 0.0
    %2770 = vmatpush1.xpose.msra.mxu0 0.0
    %2771 = vmatprep.subr.mxu0 0.0
    %2772 = vmatpush1.xpose.msra.mxu0 0.0
    %2773 = vmatprep.subr.mxu0 0.0
    %2774 = vmatpush1.xpose.msra.mxu0 0.0
    %2775 = vmatprep.subr.mxu0 0.0
    %2776 = vmatpush1.xpose.msra.mxu0 0.0
    %2777 = vmatprep.subr.mxu0 0.0
    %2778 = vmatpush1.xpose.msra.mxu0 0.0
    %2779 = vmatprep.subr.mxu0 0.0
    %2780 = vmatpush1.xpose.msra.mxu0 0.0
    %2781 = vmatprep.subr.mxu0 0.0
    %2782 = vmatpush1.xpose.msra.mxu0 0.0
    %2783 = vmatprep.subr.mxu0 0.0
    %2784 = vmatpush1.xpose.msra.mxu0 0.0
    %2785 = vmatprep.subr.mxu0 0.0
    %2786 = vmatpush1.xpose.msra.mxu0 0.0
    %2787 = vmatprep.subr.mxu0 0.0
    %2788 = vmatpush1.xpose.msra.mxu0 0.0
    %2789 = vmatprep.mubr.f32.mxu0 0.0
    %2790 = vmatmul.mubr.f32.gmra.mrb[0].mxu0 %v2721
    %v2791 = vpop.f32.mrb[0].mxu0
    %v2792 = vadd.f32 0.0, %v2791
    %v2793 = vpop.f32.mrb[0].mxu0
    %2794 = vdwg.mxu0
    %v2795 = vmul.f32 %v2714, 0.35355338
    %v2796 = vmul.f32 %v2792, 0.35355338
    %v2797 = vsel %vm465, %v2795, -inf
    %2798 = vmax.xlane.f32.xlu0 %v2797
    %v2799 = vpop.xlane.xlu0 %2798
    %v2800 = vsel %vm465, %v2796, -inf
    %2801 = vmax.xlane.f32.xlu0 %v2800
    %v2802 = vpop.xlane.xlu0 %2801
    %v2803 = vsub.f32 %v2795, %v2799
    %v2804 = vsub.f32 %v2796, %v2802
    %v2805 = vmul.f32 %v2803, 1.442695
    %v2806 = vpow.pop %v2805
    %v2807 = vmul.f32 %v2804, 1.442695
    %v2808 = vpow.pop %v2807
    %v2809 = vsel %vm465, %v2806, 0.0
    %2810 = vadd.xlane.f32.xlu0 %v2809
    %v2811 = vpop.xlane.xlu0 %2810
    %v2812 = vsel %vm465, %v2808, 0.0
    %2813 = vadd.xlane.f32.xlu0 %v2812
    %v2814 = vpop.xlane.xlu0 %2813
    %v2815 = vrcp.pop %v2811
    %v2816 = vrcp.pop %v2814
    %v2817 = vmul.f32 %v2806, %v2815
    %v2818 = vmul.f32 %v2808, %v2816
    %2819 = vrot.lane.b32.xlu0 %v2210, 56
    %v2820 = vpop.permute.xlu0 %2819
    %v2823 = vsel %vm465, %v2817, 0
    %2825 = vmatprep.subr.mxu0 0.0
    %2826 = vmatpush1.msra.mxu0 %v2820
    %2827 = vmatprep.subr.mxu0 0.0
    %2828 = vmatpush1.msra.mxu0 0.0
    %2829 = vmatprep.subr.mxu0 0.0
    %2830 = vmatpush1.msra.mxu0 0.0
    %2831 = vmatprep.subr.mxu0 0.0
    %2832 = vmatpush1.msra.mxu0 0.0
    %2833 = vmatprep.subr.mxu0 0.0
    %2834 = vmatpush1.msra.mxu0 0.0
    %2835 = vmatprep.subr.mxu0 0.0
    %2836 = vmatpush1.msra.mxu0 0.0
    %2837 = vmatprep.subr.mxu0 0.0
    %2838 = vmatpush1.msra.mxu0 0.0
    %2839 = vmatprep.subr.mxu0 0.0
    %2840 = vmatpush1.msra.mxu0 0.0
    %2841 = vmatprep.subr.mxu0 0.0
    %2842 = vmatpush1.msra.mxu0 0.0
    %2843 = vmatprep.subr.mxu0 0.0
    %2844 = vmatpush1.msra.mxu0 0.0
    %2845 = vmatprep.subr.mxu0 0.0
    %2846 = vmatpush1.msra.mxu0 0.0
    %2847 = vmatprep.subr.mxu0 0.0
    %2848 = vmatpush1.msra.mxu0 0.0
    %2849 = vmatprep.subr.mxu0 0.0
    %2850 = vmatpush1.msra.mxu0 0.0
    %2851 = vmatprep.subr.mxu0 0.0
    %2852 = vmatpush1.msra.mxu0 0.0
    %2853 = vmatprep.subr.mxu0 0.0
    %2854 = vmatpush1.msra.mxu0 0.0
    %2855 = vmatprep.subr.mxu0 0.0
    %2856 = vmatpush1.msra.mxu0 0.0
    %2857 = vmatprep.subr.mxu0 0.0
    %2858 = vmatpush1.msra.mxu0 0.0
    %2859 = vmatprep.subr.mxu0 0.0
    %2860 = vmatpush1.msra.mxu0 0.0
    %2861 = vmatprep.subr.mxu0 0.0
    %2862 = vmatpush1.msra.mxu0 0.0
    %2863 = vmatprep.subr.mxu0 0.0
    %2864 = vmatpush1.msra.mxu0 0.0
    %2865 = vmatprep.subr.mxu0 0.0
    %2866 = vmatpush1.msra.mxu0 0.0
    %2867 = vmatprep.subr.mxu0 0.0
    %2868 = vmatpush1.msra.mxu0 0.0
    %2869 = vmatprep.subr.mxu0 0.0
    %2870 = vmatpush1.msra.mxu0 0.0
    %2871 = vmatprep.subr.mxu0 0.0
    %2872 = vmatpush1.msra.mxu0 0.0
    %2873 = vmatprep.subr.mxu0 0.0
    %2874 = vmatpush1.msra.mxu0 0.0
    %2875 = vmatprep.subr.mxu0 0.0
    %2876 = vmatpush1.msra.mxu0 0.0
    %2877 = vmatprep.subr.mxu0 0.0
    %2878 = vmatpush1.msra.mxu0 0.0
    %2879 = vmatprep.subr.mxu0 0.0
    %2880 = vmatpush1.msra.mxu0 0.0
    %2881 = vmatprep.subr.mxu0 0.0
    %2882 = vmatpush1.msra.mxu0 0.0
    %2883 = vmatprep.subr.mxu0 0.0
    %2884 = vmatpush1.msra.mxu0 0.0
    %2885 = vmatprep.subr.mxu0 0.0
    %2886 = vmatpush1.msra.mxu0 0.0
    %2887 = vmatprep.subr.mxu0 0.0
    %2888 = vmatpush1.msra.mxu0 0.0
    %2889 = vmatprep.mubr.f32.mxu0 0.0
    %2890 = vmatmul.mubr.f32.gmra.mrb[0].mxu0 %v2823
    %v2891 = vpop.f32.mrb[0].mxu0
    %v2892 = vadd.f32 0.0, %v2891
    %v2893 = vpop.f32.mrb[0].mxu0
    %2894 = vdwg.mxu0
    %2895 = vrot.lane.b32.xlu0 %v2215, 56
    %v2896 = vpop.permute.xlu0 %2895
    %v2899 = vsel %vm465, %v2818, 0
    %2901 = vmatprep.subr.mxu0 0.0
    %2902 = vmatpush1.msra.mxu0 %v2896
    %2903 = vmatprep.subr.mxu0 0.0
    %2904 = vmatpush1.msra.mxu0 0.0
    %2905 = vmatprep.subr.mxu0 0.0
    %2906 = vmatpush1.msra.mxu0 0.0
    %2907 = vmatprep.subr.mxu0 0.0
    %2908 = vmatpush1.msra.mxu0 0.0
    %2909 = vmatprep.subr.mxu0 0.0
    %2910 = vmatpush1.msra.mxu0 0.0
    %2911 = vmatprep.subr.mxu0 0.0
    %2912 = vmatpush1.msra.mxu0 0.0
    %2913 = vmatprep.subr.mxu0 0.0
    %2914 = vmatpush1.msra.mxu0 0.0
    %2915 = vmatprep.subr.mxu0 0.0
    %2916 = vmatpush1.msra.mxu0 0.0
    %2917 = vmatprep.subr.mxu0 0.0
    %2918 = vmatpush1.msra.mxu0 0.0
    %2919 = vmatprep.subr.mxu0 0.0
    %2920 = vmatpush1.msra.mxu0 0.0
    %2921 = vmatprep.subr.mxu0 0.0
    %2922 = vmatpush1.msra.mxu0 0.0
    %2923 = vmatprep.subr.mxu0 0.0
    %2924 = vmatpush1.msra.mxu0 0.0
    %2925 = vmatprep.subr.mxu0 0.0
    %2926 = vmatpush1.msra.mxu0 0.0
    %2927 = vmatprep.subr.mxu0 0.0
    %2928 = vmatpush1.msra.mxu0 0.0
    %2929 = vmatprep.subr.mxu0 0.0
    %2930 = vmatpush1.msra.mxu0 0.0
    %2931 = vmatprep.subr.mxu0 0.0
    %2932 = vmatpush1.msra.mxu0 0.0
    %2933 = vmatprep.subr.mxu0 0.0
    %2934 = vmatpush1.msra.mxu0 0.0
    %2935 = vmatprep.subr.mxu0 0.0
    %2936 = vmatpush1.msra.mxu0 0.0
    %2937 = vmatprep.subr.mxu0 0.0
    %2938 = vmatpush1.msra.mxu0 0.0
    %2939 = vmatprep.subr.mxu0 0.0
    %2940 = vmatpush1.msra.mxu0 0.0
    %2941 = vmatprep.subr.mxu0 0.0
    %2942 = vmatpush1.msra.mxu0 0.0
    %2943 = vmatprep.subr.mxu0 0.0
    %2944 = vmatpush1.msra.mxu0 0.0
    %2945 = vmatprep.subr.mxu0 0.0
    %2946 = vmatpush1.msra.mxu0 0.0
    %2947 = vmatprep.subr.mxu0 0.0
    %2948 = vmatpush1.msra.mxu0 0.0
    %2949 = vmatprep.subr.mxu0 0.0
    %2950 = vmatpush1.msra.mxu0 0.0
    %2951 = vmatprep.subr.mxu0 0.0
    %2952 = vmatpush1.msra.mxu0 0.0
    %2953 = vmatprep.subr.mxu0 0.0
    %2954 = vmatpush1.msra.mxu0 0.0
    %2955 = vmatprep.subr.mxu0 0.0
    %2956 = vmatpush1.msra.mxu0 0.0
    %2957 = vmatprep.subr.mxu0 0.0
    %2958 = vmatpush1.msra.mxu0 0.0
    %2959 = vmatprep.subr.mxu0 0.0
    %2960 = vmatpush1.msra.mxu0 0.0
    %2961 = vmatprep.subr.mxu0 0.0
    %2962 = vmatpush1.msra.mxu0 0.0
    %2963 = vmatprep.subr.mxu0 0.0
    %2964 = vmatpush1.msra.mxu0 0.0
    %2965 = vmatprep.mubr.f32.mxu0 0.0
    %2966 = vmatmul.mubr.f32.gmra.mrb[0].mxu0 %v2899
    %v2967 = vpop.f32.mrb[0].mxu0
    %v2968 = vadd.f32 0.0, %v2967
    %v2969 = vpop.f32.mrb[0].mxu0
    %2970 = vdwg.mxu0
    %v2972 = vsel %vm465, %v2892, 0
    %v2975 = vsel %vm465, %v2968, 0
    %2977 = vmatprep.subr.mxu0 0.0
    %2978 = vmatpush1.msra.mxu0 %v2127
    %2979 = vmatprep.subr.mxu0 0.0
    %2980 = vmatpush1.msra.mxu0 0.0
    %2981 = vmatprep.subr.mxu0 0.0
    %2982 = vmatpush1.msra.mxu0 0.0
    %2983 = vmatprep.subr.mxu0 0.0
    %2984 = vmatpush1.msra.mxu0 0.0
    %2985 = vmatprep.subr.mxu0 0.0
    %2986 = vmatpush1.msra.mxu0 0.0
    %2987 = vmatprep.subr.mxu0 0.0
    %2988 = vmatpush1.msra.mxu0 0.0
    %2989 = vmatprep.subr.mxu0 0.0
    %2990 = vmatpush1.msra.mxu0 0.0
    %2991 = vmatprep.subr.mxu0 0.0
    %2992 = vmatpush1.msra.mxu0 0.0
    %2993 = vmatprep.subr.mxu0 0.0
    %2994 = vmatpush1.msra.mxu0 0.0
    %2995 = vmatprep.subr.mxu0 0.0
    %2996 = vmatpush1.msra.mxu0 0.0
    %2997 = vmatprep.subr.mxu0 0.0
    %2998 = vmatpush1.msra.mxu0 0.0
    %2999 = vmatprep.subr.mxu0 0.0
    %3000 = vmatpush1.msra.mxu0 0.0
    %3001 = vmatprep.subr.mxu0 0.0
    %3002 = vmatpush1.msra.mxu0 0.0
    %3003 = vmatprep.subr.mxu0 0.0
    %3004 = vmatpush1.msra.mxu0 0.0
    %3005 = vmatprep.subr.mxu0 0.0
    %3006 = vmatpush1.msra.mxu0 0.0
    %3007 = vmatprep.subr.mxu0 0.0
    %3008 = vmatpush1.msra.mxu0 0.0
    %3009 = vmatprep.subr.mxu0 0.0
    %3010 = vmatpush1.msra.mxu0 0.0
    %3011 = vmatprep.subr.mxu0 0.0
    %3012 = vmatpush1.msra.mxu0 0.0
    %3013 = vmatprep.subr.mxu0 0.0
    %3014 = vmatpush1.msra.mxu0 0.0
    %3015 = vmatprep.subr.mxu0 0.0
    %3016 = vmatpush1.msra.mxu0 0.0
    %3017 = vmatprep.subr.mxu0 0.0
    %3018 = vmatpush1.msra.mxu0 0.0
    %3019 = vmatprep.subr.mxu0 0.0
    %3020 = vmatpush1.msra.mxu0 0.0
    %3021 = vmatprep.subr.mxu0 0.0
    %3022 = vmatpush1.msra.mxu0 0.0
    %3023 = vmatprep.subr.mxu0 0.0
    %3024 = vmatpush1.msra.mxu0 0.0
    %3025 = vmatprep.subr.mxu0 0.0
    %3026 = vmatpush1.msra.mxu0 0.0
    %3027 = vmatprep.subr.mxu0 0.0
    %3028 = vmatpush1.msra.mxu0 0.0
    %3029 = vmatprep.subr.mxu0 0.0
    %3030 = vmatpush1.msra.mxu0 0.0
    %3031 = vmatprep.subr.mxu0 0.0
    %3032 = vmatpush1.msra.mxu0 0.0
    %3033 = vmatprep.subr.mxu0 0.0
    %3034 = vmatpush1.msra.mxu0 0.0
    %3035 = vmatprep.subr.mxu0 0.0
    %3036 = vmatpush1.msra.mxu0 0.0
    %3037 = vmatprep.subr.mxu0 0.0
    %3038 = vmatpush1.msra.mxu0 0.0
    %3039 = vmatprep.subr.mxu0 0.0
    %3040 = vmatpush1.msra.mxu0 0.0
    %3041 = vmatprep.mubr.f32.mxu0 0.0
    %3042 = vmatmul.mubr.f32.gmra.mrb[0].mxu0 %v2972
    %v3043 = vpop.f32.mrb[0].mxu0
    %v3044 = vadd.f32 0.0, %v3043
    %v3045 = vpop.f32.mrb[0].mxu0
    %3046 = vmatprep.mubr.f32.mxu0 0.0
    %3047 = vmatmul.mubr.f32.gmra.mrb[0].mxu0 %v2975
    %v3048 = vpop.f32.mrb[0].mxu0
    %v3049 = vadd.f32 0.0, %v3048
    %v3050 = vpop.f32.mrb[0].mxu0
    %3051 = vdwg.mxu0
    %v3052 = vadd.f32 %v2637, %v3044
    %v3053 = vadd.f32 %v2638, %v3049
    %3054 = vrot.lane.b32.xlu0 %v2210, 112
    %v3055 = vpop.permute.xlu0 %3054
    %3056 = vrot.lane.b32.xlu0 %v2210, 80
    %v3057 = vpop.permute.xlu0 %3056
    %v3058 = vsel %vm465, %v3055, 0
    %v3060 = vsel %vm465, %v3057, 0
    %3062 = vmatprep.subr.mxu0 0.0
    %3063 = vmatpush1.xpose.msra.mxu0 %v3060
    %3064 = vmatprep.subr.mxu0 0.0
    %3065 = vmatpush1.xpose.msra.mxu0 0.0
    %3066 = vmatprep.subr.mxu0 0.0
    %3067 = vmatpush1.xpose.msra.mxu0 0.0
    %3068 = vmatprep.subr.mxu0 0.0
    %3069 = vmatpush1.xpose.msra.mxu0 0.0
    %3070 = vmatprep.subr.mxu0 0.0
    %3071 = vmatpush1.xpose.msra.mxu0 0.0
    %3072 = vmatprep.subr.mxu0 0.0
    %3073 = vmatpush1.xpose.msra.mxu0 0.0
    %3074 = vmatprep.subr.mxu0 0.0
    %3075 = vmatpush1.xpose.msra.mxu0 0.0
    %3076 = vmatprep.subr.mxu0 0.0
    %3077 = vmatpush1.xpose.msra.mxu0 0.0
    %3078 = vmatprep.subr.mxu0 0.0
    %3079 = vmatpush1.xpose.msra.mxu0 0.0
    %3080 = vmatprep.subr.mxu0 0.0
    %3081 = vmatpush1.xpose.msra.mxu0 0.0
    %3082 = vmatprep.subr.mxu0 0.0
    %3083 = vmatpush1.xpose.msra.mxu0 0.0
    %3084 = vmatprep.subr.mxu0 0.0
    %3085 = vmatpush1.xpose.msra.mxu0 0.0
    %3086 = vmatprep.subr.mxu0 0.0
    %3087 = vmatpush1.xpose.msra.mxu0 0.0
    %3088 = vmatprep.subr.mxu0 0.0
    %3089 = vmatpush1.xpose.msra.mxu0 0.0
    %3090 = vmatprep.subr.mxu0 0.0
    %3091 = vmatpush1.xpose.msra.mxu0 0.0
    %3092 = vmatprep.subr.mxu0 0.0
    %3093 = vmatpush1.xpose.msra.mxu0 0.0
    %3094 = vmatprep.subr.mxu0 0.0
    %3095 = vmatpush1.xpose.msra.mxu0 0.0
    %3096 = vmatprep.subr.mxu0 0.0
    %3097 = vmatpush1.xpose.msra.mxu0 0.0
    %3098 = vmatprep.subr.mxu0 0.0
    %3099 = vmatpush1.xpose.msra.mxu0 0.0
    %3100 = vmatprep.subr.mxu0 0.0
    %3101 = vmatpush1.xpose.msra.mxu0 0.0
    %3102 = vmatprep.subr.mxu0 0.0
    %3103 = vmatpush1.xpose.msra.mxu0 0.0
    %3104 = vmatprep.subr.mxu0 0.0
    %3105 = vmatpush1.xpose.msra.mxu0 0.0
    %3106 = vmatprep.subr.mxu0 0.0
    %3107 = vmatpush1.xpose.msra.mxu0 0.0
    %3108 = vmatprep.subr.mxu0 0.0
    %3109 = vmatpush1.xpose.msra.mxu0 0.0
    %3110 = vmatprep.subr.mxu0 0.0
    %3111 = vmatpush1.xpose.msra.mxu0 0.0
    %3112 = vmatprep.subr.mxu0 0.0
    %3113 = vmatpush1.xpose.msra.mxu0 0.0
    %3114 = vmatprep.subr.mxu0 0.0
    %3115 = vmatpush1.xpose.msra.mxu0 0.0
    %3116 = vmatprep.subr.mxu0 0.0
    %3117 = vmatpush1.xpose.msra.mxu0 0.0
    %3118 = vmatprep.subr.mxu0 0.0
    %3119 = vmatpush1.xpose.msra.mxu0 0.0
    %3120 = vmatprep.subr.mxu0 0.0
    %3121 = vmatpush1.xpose.msra.mxu0 0.0
    %3122 = vmatprep.subr.mxu0 0.0
    %3123 = vmatpush1.xpose.msra.mxu0 0.0
    %3124 = vmatprep.subr.mxu0 0.0
    %3125 = vmatpush1.xpose.msra.mxu0 0.0
    %3126 = vmatprep.mubr.f32.mxu0 0.0
    %3127 = vmatmul.mubr.f32.gmra.mrb[0].mxu0 %v3058
    %v3128 = vpop.f32.mrb[0].mxu0
    %v3129 = vadd.f32 0.0, %v3128
    %v3130 = vpop.f32.mrb[0].mxu0
    %3131 = vdwg.mxu0
    %3132 = vrot.lane.b32.xlu0 %v2215, 112
    %v3133 = vpop.permute.xlu0 %3132
    %3134 = vrot.lane.b32.xlu0 %v2215, 80
    %v3135 = vpop.permute.xlu0 %3134
    %v3136 = vsel %vm465, %v3133, 0
    %v3138 = vsel %vm465, %v3135, 0
    %3140 = vmatprep.subr.mxu0 0.0
    %3141 = vmatpush1.xpose.msra.mxu0 %v3138
    %3142 = vmatprep.subr.mxu0 0.0
    %3143 = vmatpush1.xpose.msra.mxu0 0.0
    %3144 = vmatprep.subr.mxu0 0.0
    %3145 = vmatpush1.xpose.msra.mxu0 0.0
    %3146 = vmatprep.subr.mxu0 0.0
    %3147 = vmatpush1.xpose.msra.mxu0 0.0
    %3148 = vmatprep.subr.mxu0 0.0
    %3149 = vmatpush1.xpose.msra.mxu0 0.0
    %3150 = vmatprep.subr.mxu0 0.0
    %3151 = vmatpush1.xpose.msra.mxu0 0.0
    %3152 = vmatprep.subr.mxu0 0.0
    %3153 = vmatpush1.xpose.msra.mxu0 0.0
    %3154 = vmatprep.subr.mxu0 0.0
    %3155 = vmatpush1.xpose.msra.mxu0 0.0
    %3156 = vmatprep.subr.mxu0 0.0
    %3157 = vmatpush1.xpose.msra.mxu0 0.0
    %3158 = vmatprep.subr.mxu0 0.0
    %3159 = vmatpush1.xpose.msra.mxu0 0.0
    %3160 = vmatprep.subr.mxu0 0.0
    %3161 = vmatpush1.xpose.msra.mxu0 0.0
    %3162 = vmatprep.subr.mxu0 0.0
    %3163 = vmatpush1.xpose.msra.mxu0 0.0
    %3164 = vmatprep.subr.mxu0 0.0
    %3165 = vmatpush1.xpose.msra.mxu0 0.0
    %3166 = vmatprep.subr.mxu0 0.0
    %3167 = vmatpush1.xpose.msra.mxu0 0.0
    %3168 = vmatprep.subr.mxu0 0.0
    %3169 = vmatpush1.xpose.msra.mxu0 0.0
    %3170 = vmatprep.subr.mxu0 0.0
    %3171 = vmatpush1.xpose.msra.mxu0 0.0
    %3172 = vmatprep.subr.mxu0 0.0
    %3173 = vmatpush1.xpose.msra.mxu0 0.0
    %3174 = vmatprep.subr.mxu0 0.0
    %3175 = vmatpush1.xpose.msra.mxu0 0.0
    %3176 = vmatprep.subr.mxu0 0.0
    %3177 = vmatpush1.xpose.msra.mxu0 0.0
    %3178 = vmatprep.subr.mxu0 0.0
    %3179 = vmatpush1.xpose.msra.mxu0 0.0
    %3180 = vmatprep.subr.mxu0 0.0
    %3181 = vmatpush1.xpose.msra.mxu0 0.0
    %3182 = vmatprep.subr.mxu0 0.0
    %3183 = vmatpush1.xpose.msra.mxu0 0.0
    %3184 = vmatprep.subr.mxu0 0.0
    %3185 = vmatpush1.xpose.msra.mxu0 0.0
    %3186 = vmatprep.subr.mxu0 0.0
    %3187 = vmatpush1.xpose.msra.mxu0 0.0
    %3188 = vmatprep.subr.mxu0 0.0
    %3189 = vmatpush1.xpose.msra.mxu0 0.0
    %3190 = vmatprep.subr.mxu0 0.0
    %3191 = vmatpush1.xpose.msra.mxu0 0.0
    %3192 = vmatprep.subr.mxu0 0.0
    %3193 = vmatpush1.xpose.msra.mxu0 0.0
    %3194 = vmatprep.subr.mxu0 0.0
    %3195 = vmatpush1.xpose.msra.mxu0 0.0
    %3196 = vmatprep.subr.mxu0 0.0
    %3197 = vmatpush1.xpose.msra.mxu0 0.0
    %3198 = vmatprep.subr.mxu0 0.0
    %3199 = vmatpush1.xpose.msra.mxu0 0.0
    %3200 = vmatprep.subr.mxu0 0.0
    %3201 = vmatpush1.xpose.msra.mxu0 0.0
    %3202 = vmatprep.subr.mxu0 0.0
    %3203 = vmatpush1.xpose.msra.mxu0 0.0
    %3204 = vmatprep.mubr.f32.mxu0 0.0
    %3205 = vmatmul.mubr.f32.gmra.mrb[0].mxu0 %v3136
    %v3206 = vpop.f32.mrb[0].mxu0
    %v3207 = vadd.f32 0.0, %v3206
    %v3208 = vpop.f32.mrb[0].mxu0
    %3209 = vdwg.mxu0
    %v3210 = vmul.f32 %v3129, 0.35355338
    %v3211 = vmul.f32 %v3207, 0.35355338
    %v3212 = vsel %vm465, %v3210, -inf
    %3213 = vmax.xlane.f32.xlu0 %v3212
    %v3214 = vpop.xlane.xlu0 %3213
    %v3215 = vsel %vm465, %v3211, -inf
    %3216 = vmax.xlane.f32.xlu0 %v3215
    %v3217 = vpop.xlane.xlu0 %3216
    %v3218 = vsub.f32 %v3210, %v3214
    %v3219 = vsub.f32 %v3211, %v3217
    %v3220 = vmul.f32 %v3218, 1.442695
    %v3221 = vpow.pop %v3220
    %v3222 = vmul.f32 %v3219, 1.442695
    %v3223 = vpow.pop %v3222
    %v3224 = vsel %vm465, %v3221, 0.0
    %3225 = vadd.xlane.f32.xlu0 %v3224
    %v3226 = vpop.xlane.xlu0 %3225
    %v3227 = vsel %vm465, %v3223, 0.0
    %3228 = vadd.xlane.f32.xlu0 %v3227
    %v3229 = vpop.xlane.xlu0 %3228
    %v3230 = vrcp.pop %v3226
    %v3231 = vrcp.pop %v3229
    %v3232 = vmul.f32 %v3221, %v3230
    %v3233 = vmul.f32 %v3223, %v3231
    %3234 = vrot.lane.b32.xlu0 %v2210, 48
    %v3235 = vpop.permute.xlu0 %3234
    %v3238 = vsel %vm465, %v3232, 0
    %3240 = vmatprep.subr.mxu0 0.0
    %3241 = vmatpush1.msra.mxu0 %v3235
    %3242 = vmatprep.subr.mxu0 0.0
    %3243 = vmatpush1.msra.mxu0 0.0
    %3244 = vmatprep.subr.mxu0 0.0
    %3245 = vmatpush1.msra.mxu0 0.0
    %3246 = vmatprep.subr.mxu0 0.0
    %3247 = vmatpush1.msra.mxu0 0.0
    %3248 = vmatprep.subr.mxu0 0.0
    %3249 = vmatpush1.msra.mxu0 0.0
    %3250 = vmatprep.subr.mxu0 0.0
    %3251 = vmatpush1.msra.mxu0 0.0
    %3252 = vmatprep.subr.mxu0 0.0
    %3253 = vmatpush1.msra.mxu0 0.0
    %3254 = vmatprep.subr.mxu0 0.0
    %3255 = vmatpush1.msra.mxu0 0.0
    %3256 = vmatprep.subr.mxu0 0.0
    %3257 = vmatpush1.msra.mxu0 0.0
    %3258 = vmatprep.subr.mxu0 0.0
    %3259 = vmatpush1.msra.mxu0 0.0
    %3260 = vmatprep.subr.mxu0 0.0
    %3261 = vmatpush1.msra.mxu0 0.0
    %3262 = vmatprep.subr.mxu0 0.0
    %3263 = vmatpush1.msra.mxu0 0.0
    %3264 = vmatprep.subr.mxu0 0.0
    %3265 = vmatpush1.msra.mxu0 0.0
    %3266 = vmatprep.subr.mxu0 0.0
    %3267 = vmatpush1.msra.mxu0 0.0
    %3268 = vmatprep.subr.mxu0 0.0
    %3269 = vmatpush1.msra.mxu0 0.0
    %3270 = vmatprep.subr.mxu0 0.0
    %3271 = vmatpush1.msra.mxu0 0.0
    %3272 = vmatprep.subr.mxu0 0.0
    %3273 = vmatpush1.msra.mxu0 0.0
    %3274 = vmatprep.subr.mxu0 0.0
    %3275 = vmatpush1.msra.mxu0 0.0
    %3276 = vmatprep.subr.mxu0 0.0
    %3277 = vmatpush1.msra.mxu0 0.0
    %3278 = vmatprep.subr.mxu0 0.0
    %3279 = vmatpush1.msra.mxu0 0.0
    %3280 = vmatprep.subr.mxu0 0.0
    %3281 = vmatpush1.msra.mxu0 0.0
    %3282 = vmatprep.subr.mxu0 0.0
    %3283 = vmatpush1.msra.mxu0 0.0
    %3284 = vmatprep.subr.mxu0 0.0
    %3285 = vmatpush1.msra.mxu0 0.0
    %3286 = vmatprep.subr.mxu0 0.0
    %3287 = vmatpush1.msra.mxu0 0.0
    %3288 = vmatprep.subr.mxu0 0.0
    %3289 = vmatpush1.msra.mxu0 0.0
    %3290 = vmatprep.subr.mxu0 0.0
    %3291 = vmatpush1.msra.mxu0 0.0
    %3292 = vmatprep.subr.mxu0 0.0
    %3293 = vmatpush1.msra.mxu0 0.0
    %3294 = vmatprep.subr.mxu0 0.0
    %3295 = vmatpush1.msra.mxu0 0.0
    %3296 = vmatprep.subr.mxu0 0.0
    %3297 = vmatpush1.msra.mxu0 0.0
    %3298 = vmatprep.subr.mxu0 0.0
    %3299 = vmatpush1.msra.mxu0 0.0
    %3300 = vmatprep.subr.mxu0 0.0
    %3301 = vmatpush1.msra.mxu0 0.0
    %3302 = vmatprep.subr.mxu0 0.0
    %3303 = vmatpush1.msra.mxu0 0.0
    %3304 = vmatprep.mubr.f32.mxu0 0.0
    %3305 = vmatmul.mubr.f32.gmra.mrb[0].mxu0 %v3238
    %v3306 = vpop.f32.mrb[0].mxu0
    %v3307 = vadd.f32 0.0, %v3306
    %v3308 = vpop.f32.mrb[0].mxu0
    %3309 = vdwg.mxu0
    %3310 = vrot.lane.b32.xlu0 %v2215, 48
    %v3311 = vpop.permute.xlu0 %3310
    %v3314 = vsel %vm465, %v3233, 0
    %3316 = vmatprep.subr.mxu0 0.0
    %3317 = vmatpush1.msra.mxu0 %v3311
    %3318 = vmatprep.subr.mxu0 0.0
    %3319 = vmatpush1.msra.mxu0 0.0
    %3320 = vmatprep.subr.mxu0 0.0
    %3321 = vmatpush1.msra.mxu0 0.0
    %3322 = vmatprep.subr.mxu0 0.0
    %3323 = vmatpush1.msra.mxu0 0.0
    %3324 = vmatprep.subr.mxu0 0.0
    %3325 = vmatpush1.msra.mxu0 0.0
    %3326 = vmatprep.subr.mxu0 0.0
    %3327 = vmatpush1.msra.mxu0 0.0
    %3328 = vmatprep.subr.mxu0 0.0
    %3329 = vmatpush1.msra.mxu0 0.0
    %3330 = vmatprep.subr.mxu0 0.0
    %3331 = vmatpush1.msra.mxu0 0.0
    %3332 = vmatprep.subr.mxu0 0.0
    %3333 = vmatpush1.msra.mxu0 0.0
    %3334 = vmatprep.subr.mxu0 0.0
    %3335 = vmatpush1.msra.mxu0 0.0
    %3336 = vmatprep.subr.mxu0 0.0
    %3337 = vmatpush1.msra.mxu0 0.0
    %3338 = vmatprep.subr.mxu0 0.0
    %3339 = vmatpush1.msra.mxu0 0.0
    %3340 = vmatprep.subr.mxu0 0.0
    %3341 = vmatpush1.msra.mxu0 0.0
    %3342 = vmatprep.subr.mxu0 0.0
    %3343 = vmatpush1.msra.mxu0 0.0
    %3344 = vmatprep.subr.mxu0 0.0
    %3345 = vmatpush1.msra.mxu0 0.0
    %3346 = vmatprep.subr.mxu0 0.0
    %3347 = vmatpush1.msra.mxu0 0.0
    %3348 = vmatprep.subr.mxu0 0.0
    %3349 = vmatpush1.msra.mxu0 0.0
    %3350 = vmatprep.subr.mxu0 0.0
    %3351 = vmatpush1.msra.mxu0 0.0
    %3352 = vmatprep.subr.mxu0 0.0
    %3353 = vmatpush1.msra.mxu0 0.0
    %3354 = vmatprep.subr.mxu0 0.0
    %3355 = vmatpush1.msra.mxu0 0.0
    %3356 = vmatprep.subr.mxu0 0.0
    %3357 = vmatpush1.msra.mxu0 0.0
    %3358 = vmatprep.subr.mxu0 0.0
    %3359 = vmatpush1.msra.mxu0 0.0
    %3360 = vmatprep.subr.mxu0 0.0
    %3361 = vmatpush1.msra.mxu0 0.0
    %3362 = vmatprep.subr.mxu0 0.0
    %3363 = vmatpush1.msra.mxu0 0.0
    %3364 = vmatprep.subr.mxu0 0.0
    %3365 = vmatpush1.msra.mxu0 0.0
    %3366 = vmatprep.subr.mxu0 0.0
    %3367 = vmatpush1.msra.mxu0 0.0
    %3368 = vmatprep.subr.mxu0 0.0
    %3369 = vmatpush1.msra.mxu0 0.0
    %3370 = vmatprep.subr.mxu0 0.0
    %3371 = vmatpush1.msra.mxu0 0.0
    %3372 = vmatprep.subr.mxu0 0.0
    %3373 = vmatpush1.msra.mxu0 0.0
    %3374 = vmatprep.subr.mxu0 0.0
    %3375 = vmatpush1.msra.mxu0 0.0
    %3376 = vmatprep.subr.mxu0 0.0
    %3377 = vmatpush1.msra.mxu0 0.0
    %3378 = vmatprep.subr.mxu0 0.0
    %3379 = vmatpush1.msra.mxu0 0.0
    %3380 = vmatprep.mubr.f32.mxu0 0.0
    %3381 = vmatmul.mubr.f32.gmra.mrb[0].mxu0 %v3314
    %v3382 = vpop.f32.mrb[0].mxu0
    %v3383 = vadd.f32 0.0, %v3382
    %v3384 = vpop.f32.mrb[0].mxu0
    %3385 = vdwg.mxu0
    %v3387 = vsel %vm465, %v3307, 0
    %v3390 = vsel %vm465, %v3383, 0
    %3392 = vmatprep.subr.mxu0 0.0
    %3393 = vmatpush1.msra.mxu0 %v2128
    %3394 = vmatprep.subr.mxu0 0.0
    %3395 = vmatpush1.msra.mxu0 0.0
    %3396 = vmatprep.subr.mxu0 0.0
    %3397 = vmatpush1.msra.mxu0 0.0
    %3398 = vmatprep.subr.mxu0 0.0
    %3399 = vmatpush1.msra.mxu0 0.0
    %3400 = vmatprep.subr.mxu0 0.0
    %3401 = vmatpush1.msra.mxu0 0.0
    %3402 = vmatprep.subr.mxu0 0.0
    %3403 = vmatpush1.msra.mxu0 0.0
    %3404 = vmatprep.subr.mxu0 0.0
    %3405 = vmatpush1.msra.mxu0 0.0
    %3406 = vmatprep.subr.mxu0 0.0
    %3407 = vmatpush1.msra.mxu0 0.0
    %3408 = vmatprep.subr.mxu0 0.0
    %3409 = vmatpush1.msra.mxu0 0.0
    %3410 = vmatprep.subr.mxu0 0.0
    %3411 = vmatpush1.msra.mxu0 0.0
    %3412 = vmatprep.subr.mxu0 0.0
    %3413 = vmatpush1.msra.mxu0 0.0
    %3414 = vmatprep.subr.mxu0 0.0
    %3415 = vmatpush1.msra.mxu0 0.0
    %3416 = vmatprep.subr.mxu0 0.0
    %3417 = vmatpush1.msra.mxu0 0.0
    %3418 = vmatprep.subr.mxu0 0.0
    %3419 = vmatpush1.msra.mxu0 0.0
    %3420 = vmatprep.subr.mxu0 0.0
    %3421 = vmatpush1.msra.mxu0 0.0
    %3422 = vmatprep.subr.mxu0 0.0
    %3423 = vmatpush1.msra.mxu0 0.0
    %3424 = vmatprep.subr.mxu0 0.0
    %3425 = vmatpush1.msra.mxu0 0.0
    %3426 = vmatprep.subr.mxu0 0.0
    %3427 = vmatpush1.msra.mxu0 0.0
    %3428 = vmatprep.subr.mxu0 0.0
    %3429 = vmatpush1.msra.mxu0 0.0
    %3430 = vmatprep.subr.mxu0 0.0
    %3431 = vmatpush1.msra.mxu0 0.0
    %3432 = vmatprep.subr.mxu0 0.0
    %3433 = vmatpush1.msra.mxu0 0.0
    %3434 = vmatprep.subr.mxu0 0.0
    %3435 = vmatpush1.msra.mxu0 0.0
    %3436 = vmatprep.subr.mxu0 0.0
    %3437 = vmatpush1.msra.mxu0 0.0
    %3438 = vmatprep.subr.mxu0 0.0
    %3439 = vmatpush1.msra.mxu0 0.0
    %3440 = vmatprep.subr.mxu0 0.0
    %3441 = vmatpush1.msra.mxu0 0.0
    %3442 = vmatprep.subr.mxu0 0.0
    %3443 = vmatpush1.msra.mxu0 0.0
    %3444 = vmatprep.subr.mxu0 0.0
    %3445 = vmatpush1.msra.mxu0 0.0
    %3446 = vmatprep.subr.mxu0 0.0
    %3447 = vmatpush1.msra.mxu0 0.0
    %3448 = vmatprep.subr.mxu0 0.0
    %3449 = vmatpush1.msra.mxu0 0.0
    %3450 = vmatprep.subr.mxu0 0.0
    %3451 = vmatpush1.msra.mxu0 0.0
    %3452 = vmatprep.subr.mxu0 0.0
    %3453 = vmatpush1.msra.mxu0 0.0
    %3454 = vmatprep.subr.mxu0 0.0
    %3455 = vmatpush1.msra.mxu0 0.0
    %3456 = vmatprep.mubr.f32.mxu0 0.0
    %3457 = vmatmul.mubr.f32.gmra.mrb[0].mxu0 %v3387
    %v3458 = vpop.f32.mrb[0].mxu0
    %v3459 = vadd.f32 0.0, %v3458
    %v3460 = vpop.f32.mrb[0].mxu0
    %3461 = vmatprep.mubr.f32.mxu0 0.0
    %3462 = vmatmul.mubr.f32.gmra.mrb[0].mxu0 %v3390
    %v3463 = vpop.f32.mrb[0].mxu0
    %v3464 = vadd.f32 0.0, %v3463
    %v3465 = vpop.f32.mrb[0].mxu0
    %3466 = vdwg.mxu0
    %v3467 = vadd.f32 %v3052, %v3459
    %v3468 = vadd.f32 %v3053, %v3464
    %3469 = vrot.lane.b32.xlu0 %v2210, 104
    %v3470 = vpop.permute.xlu0 %3469
    %3471 = vrot.lane.b32.xlu0 %v2210, 72
    %v3472 = vpop.permute.xlu0 %3471
    %v3473 = vsel %vm465, %v3470, 0
    %v3475 = vsel %vm465, %v3472, 0
    %3477 = vmatprep.subr.mxu0 0.0
    %3478 = vmatpush1.xpose.msra.mxu0 %v3475
    %3479 = vmatprep.subr.mxu0 0.0
    %3480 = vmatpush1.xpose.msra.mxu0 0.0
    %3481 = vmatprep.subr.mxu0 0.0
    %3482 = vmatpush1.xpose.msra.mxu0 0.0
    %3483 = vmatprep.subr.mxu0 0.0
    %3484 = vmatpush1.xpose.msra.mxu0 0.0
    %3485 = vmatprep.subr.mxu0 0.0
    %3486 = vmatpush1.xpose.msra.mxu0 0.0
    %3487 = vmatprep.subr.mxu0 0.0
    %3488 = vmatpush1.xpose.msra.mxu0 0.0
    %3489 = vmatprep.subr.mxu0 0.0
    %3490 = vmatpush1.xpose.msra.mxu0 0.0
    %3491 = vmatprep.subr.mxu0 0.0
    %3492 = vmatpush1.xpose.msra.mxu0 0.0
    %3493 = vmatprep.subr.mxu0 0.0
    %3494 = vmatpush1.xpose.msra.mxu0 0.0
    %3495 = vmatprep.subr.mxu0 0.0
    %3496 = vmatpush1.xpose.msra.mxu0 0.0
    %3497 = vmatprep.subr.mxu0 0.0
    %3498 = vmatpush1.xpose.msra.mxu0 0.0
    %3499 = vmatprep.subr.mxu0 0.0
    %3500 = vmatpush1.xpose.msra.mxu0 0.0
    %3501 = vmatprep.subr.mxu0 0.0
    %3502 = vmatpush1.xpose.msra.mxu0 0.0
    %3503 = vmatprep.subr.mxu0 0.0
    %3504 = vmatpush1.xpose.msra.mxu0 0.0
    %3505 = vmatprep.subr.mxu0 0.0
    %3506 = vmatpush1.xpose.msra.mxu0 0.0
    %3507 = vmatprep.subr.mxu0 0.0
    %3508 = vmatpush1.xpose.msra.mxu0 0.0
    %3509 = vmatprep.subr.mxu0 0.0
    %3510 = vmatpush1.xpose.msra.mxu0 0.0
    %3511 = vmatprep.subr.mxu0 0.0
    %3512 = vmatpush1.xpose.msra.mxu0 0.0
    %3513 = vmatprep.subr.mxu0 0.0
    %3514 = vmatpush1.xpose.msra.mxu0 0.0
    %3515 = vmatprep.subr.mxu0 0.0
    %3516 = vmatpush1.xpose.msra.mxu0 0.0
    %3517 = vmatprep.subr.mxu0 0.0
    %3518 = vmatpush1.xpose.msra.mxu0 0.0
    %3519 = vmatprep.subr.mxu0 0.0
    %3520 = vmatpush1.xpose.msra.mxu0 0.0
    %3521 = vmatprep.subr.mxu0 0.0
    %3522 = vmatpush1.xpose.msra.mxu0 0.0
    %3523 = vmatprep.subr.mxu0 0.0
    %3524 = vmatpush1.xpose.msra.mxu0 0.0
    %3525 = vmatprep.subr.mxu0 0.0
    %3526 = vmatpush1.xpose.msra.mxu0 0.0
    %3527 = vmatprep.subr.mxu0 0.0
    %3528 = vmatpush1.xpose.msra.mxu0 0.0
    %3529 = vmatprep.subr.mxu0 0.0
    %3530 = vmatpush1.xpose.msra.mxu0 0.0
    %3531 = vmatprep.subr.mxu0 0.0
    %3532 = vmatpush1.xpose.msra.mxu0 0.0
    %3533 = vmatprep.subr.mxu0 0.0
    %3534 = vmatpush1.xpose.msra.mxu0 0.0
    %3535 = vmatprep.subr.mxu0 0.0
    %3536 = vmatpush1.xpose.msra.mxu0 0.0
    %3537 = vmatprep.subr.mxu0 0.0
    %3538 = vmatpush1.xpose.msra.mxu0 0.0
    %3539 = vmatprep.subr.mxu0 0.0
    %3540 = vmatpush1.xpose.msra.mxu0 0.0
    %3541 = vmatprep.mubr.f32.mxu0 0.0
    %3542 = vmatmul.mubr.f32.gmra.mrb[0].mxu0 %v3473
    %v3543 = vpop.f32.mrb[0].mxu0
    %v3544 = vadd.f32 0.0, %v3543
    %v3545 = vpop.f32.mrb[0].mxu0
    %3546 = vdwg.mxu0
    %3547 = vrot.lane.b32.xlu0 %v2215, 104
    %v3548 = vpop.permute.xlu0 %3547
    %3549 = vrot.lane.b32.xlu0 %v2215, 72
    %v3550 = vpop.permute.xlu0 %3549
    %v3551 = vsel %vm465, %v3548, 0
    %v3553 = vsel %vm465, %v3550, 0
    %3555 = vmatprep.subr.mxu0 0.0
    %3556 = vmatpush1.xpose.msra.mxu0 %v3553
    %3557 = vmatprep.subr.mxu0 0.0
    %3558 = vmatpush1.xpose.msra.mxu0 0.0
    %3559 = vmatprep.subr.mxu0 0.0
    %3560 = vmatpush1.xpose.msra.mxu0 0.0
    %3561 = vmatprep.subr.mxu0 0.0
    %3562 = vmatpush1.xpose.msra.mxu0 0.0
    %3563 = vmatprep.subr.mxu0 0.0
    %3564 = vmatpush1.xpose.msra.mxu0 0.0
    %3565 = vmatprep.subr.mxu0 0.0
    %3566 = vmatpush1.xpose.msra.mxu0 0.0
    %3567 = vmatprep.subr.mxu0 0.0
    %3568 = vmatpush1.xpose.msra.mxu0 0.0
    %3569 = vmatprep.subr.mxu0 0.0
    %3570 = vmatpush1.xpose.msra.mxu0 0.0
    %3571 = vmatprep.subr.mxu0 0.0
    %3572 = vmatpush1.xpose.msra.mxu0 0.0
    %3573 = vmatprep.subr.mxu0 0.0
    %3574 = vmatpush1.xpose.msra.mxu0 0.0
    %3575 = vmatprep.subr.mxu0 0.0
    %3576 = vmatpush1.xpose.msra.mxu0 0.0
    %3577 = vmatprep.subr.mxu0 0.0
    %3578 = vmatpush1.xpose.msra.mxu0 0.0
    %3579 = vmatprep.subr.mxu0 0.0
    %3580 = vmatpush1.xpose.msra.mxu0 0.0
    %3581 = vmatprep.subr.mxu0 0.0
    %3582 = vmatpush1.xpose.msra.mxu0 0.0
    %3583 = vmatprep.subr.mxu0 0.0
    %3584 = vmatpush1.xpose.msra.mxu0 0.0
    %3585 = vmatprep.subr.mxu0 0.0
    %3586 = vmatpush1.xpose.msra.mxu0 0.0
    %3587 = vmatprep.subr.mxu0 0.0
    %3588 = vmatpush1.xpose.msra.mxu0 0.0
    %3589 = vmatprep.subr.mxu0 0.0
    %3590 = vmatpush1.xpose.msra.mxu0 0.0
    %3591 = vmatprep.subr.mxu0 0.0
    %3592 = vmatpush1.xpose.msra.mxu0 0.0
    %3593 = vmatprep.subr.mxu0 0.0
    %3594 = vmatpush1.xpose.msra.mxu0 0.0
    %3595 = vmatprep.subr.mxu0 0.0
    %3596 = vmatpush1.xpose.msra.mxu0 0.0
    %3597 = vmatprep.subr.mxu0 0.0
    %3598 = vmatpush1.xpose.msra.mxu0 0.0
    %3599 = vmatprep.subr.mxu0 0.0
    %3600 = vmatpush1.xpose.msra.mxu0 0.0
    %3601 = vmatprep.subr.mxu0 0.0
    %3602 = vmatpush1.xpose.msra.mxu0 0.0
    %3603 = vmatprep.subr.mxu0 0.0
    %3604 = vmatpush1.xpose.msra.mxu0 0.0
    %3605 = vmatprep.subr.mxu0 0.0
    %3606 = vmatpush1.xpose.msra.mxu0 0.0
    %3607 = vmatprep.subr.mxu0 0.0
    %3608 = vmatpush1.xpose.msra.mxu0 0.0
    %3609 = vmatprep.subr.mxu0 0.0
    %3610 = vmatpush1.xpose.msra.mxu0 0.0
    %3611 = vmatprep.subr.mxu0 0.0
    %3612 = vmatpush1.xpose.msra.mxu0 0.0
    %3613 = vmatprep.subr.mxu0 0.0
    %3614 = vmatpush1.xpose.msra.mxu0 0.0
    %3615 = vmatprep.subr.mxu0 0.0
    %3616 = vmatpush1.xpose.msra.mxu0 0.0
    %3617 = vmatprep.subr.mxu0 0.0
    %3618 = vmatpush1.xpose.msra.mxu0 0.0
    %3619 = vmatprep.mubr.f32.mxu0 0.0
    %3620 = vmatmul.mubr.f32.gmra.mrb[0].mxu0 %v3551
    %v3621 = vpop.f32.mrb[0].mxu0
    %v3622 = vadd.f32 0.0, %v3621
    %v3623 = vpop.f32.mrb[0].mxu0
    %3624 = vdwg.mxu0
    %v3625 = vmul.f32 %v3544, 0.35355338
    %v3626 = vmul.f32 %v3622, 0.35355338
    %v3627 = vsel %vm465, %v3625, -inf
    %3628 = vmax.xlane.f32.xlu0 %v3627
    %v3629 = vpop.xlane.xlu0 %3628
    %v3630 = vsel %vm465, %v3626, -inf
    %3631 = vmax.xlane.f32.xlu0 %v3630
    %v3632 = vpop.xlane.xlu0 %3631
    %v3633 = vsub.f32 %v3625, %v3629
    %v3634 = vsub.f32 %v3626, %v3632
    %v3635 = vmul.f32 %v3633, 1.442695
    %v3636 = vpow.pop %v3635
    %v3637 = vmul.f32 %v3634, 1.442695
    %v3638 = vpow.pop %v3637
    %v3639 = vsel %vm465, %v3636, 0.0
    %3640 = vadd.xlane.f32.xlu0 %v3639
    %v3641 = vpop.xlane.xlu0 %3640
    %v3642 = vsel %vm465, %v3638, 0.0
    %3643 = vadd.xlane.f32.xlu0 %v3642
    %v3644 = vpop.xlane.xlu0 %3643
    %v3645 = vrcp.pop %v3641
    %v3646 = vrcp.pop %v3644
    %v3647 = vmul.f32 %v3636, %v3645
    %v3648 = vmul.f32 %v3638, %v3646
    %3649 = vrot.lane.b32.xlu0 %v2210, 40
    %v3650 = vpop.permute.xlu0 %3649
    %v3653 = vsel %vm465, %v3647, 0
    %3655 = vmatprep.subr.mxu0 0.0
    %3656 = vmatpush1.msra.mxu0 %v3650
    %3657 = vmatprep.subr.mxu0 0.0
    %3658 = vmatpush1.msra.mxu0 0.0
    %3659 = vmatprep.subr.mxu0 0.0
    %3660 = vmatpush1.msra.mxu0 0.0
    %3661 = vmatprep.subr.mxu0 0.0
    %3662 = vmatpush1.msra.mxu0 0.0
    %3663 = vmatprep.subr.mxu0 0.0
    %3664 = vmatpush1.msra.mxu0 0.0
    %3665 = vmatprep.subr.mxu0 0.0
    %3666 = vmatpush1.msra.mxu0 0.0
    %3667 = vmatprep.subr.mxu0 0.0
    %3668 = vmatpush1.msra.mxu0 0.0
    %3669 = vmatprep.subr.mxu0 0.0
    %3670 = vmatpush1.msra.mxu0 0.0
    %3671 = vmatprep.subr.mxu0 0.0
    %3672 = vmatpush1.msra.mxu0 0.0
    %3673 = vmatprep.subr.mxu0 0.0
    %3674 = vmatpush1.msra.mxu0 0.0
    %3675 = vmatprep.subr.mxu0 0.0
    %3676 = vmatpush1.msra.mxu0 0.0
    %3677 = vmatprep.subr.mxu0 0.0
    %3678 = vmatpush1.msra.mxu0 0.0
    %3679 = vmatprep.subr.mxu0 0.0
    %3680 = vmatpush1.msra.mxu0 0.0
    %3681 = vmatprep.subr.mxu0 0.0
    %3682 = vmatpush1.msra.mxu0 0.0
    %3683 = vmatprep.subr.mxu0 0.0
    %3684 = vmatpush1.msra.mxu0 0.0
    %3685 = vmatprep.subr.mxu0 0.0
    %3686 = vmatpush1.msra.mxu0 0.0
    %3687 = vmatprep.subr.mxu0 0.0
    %3688 = vmatpush1.msra.mxu0 0.0
    %3689 = vmatprep.subr.mxu0 0.0
    %3690 = vmatpush1.msra.mxu0 0.0
    %3691 = vmatprep.subr.mxu0 0.0
    %3692 = vmatpush1.msra.mxu0 0.0
    %3693 = vmatprep.subr.mxu0 0.0
    %3694 = vmatpush1.msra.mxu0 0.0
    %3695 = vmatprep.subr.mxu0 0.0
    %3696 = vmatpush1.msra.mxu0 0.0
    %3697 = vmatprep.subr.mxu0 0.0
    %3698 = vmatpush1.msra.mxu0 0.0
    %3699 = vmatprep.subr.mxu0 0.0
    %3700 = vmatpush1.msra.mxu0 0.0
    %3701 = vmatprep.subr.mxu0 0.0
    %3702 = vmatpush1.msra.mxu0 0.0
    %3703 = vmatprep.subr.mxu0 0.0
    %3704 = vmatpush1.msra.mxu0 0.0
    %3705 = vmatprep.subr.mxu0 0.0
    %3706 = vmatpush1.msra.mxu0 0.0
    %3707 = vmatprep.subr.mxu0 0.0
    %3708 = vmatpush1.msra.mxu0 0.0
    %3709 = vmatprep.subr.mxu0 0.0
    %3710 = vmatpush1.msra.mxu0 0.0
    %3711 = vmatprep.subr.mxu0 0.0
    %3712 = vmatpush1.msra.mxu0 0.0
    %3713 = vmatprep.subr.mxu0 0.0
    %3714 = vmatpush1.msra.mxu0 0.0
    %3715 = vmatprep.subr.mxu0 0.0
    %3716 = vmatpush1.msra.mxu0 0.0
    %3717 = vmatprep.subr.mxu0 0.0
    %3718 = vmatpush1.msra.mxu0 0.0
    %3719 = vmatprep.mubr.f32.mxu0 0.0
    %3720 = vmatmul.mubr.f32.gmra.mrb[0].mxu0 %v3653
    %v3721 = vpop.f32.mrb[0].mxu0
    %v3722 = vadd.f32 0.0, %v3721
    %v3723 = vpop.f32.mrb[0].mxu0
    %3724 = vdwg.mxu0
    %3725 = vrot.lane.b32.xlu0 %v2215, 40
    %v3726 = vpop.permute.xlu0 %3725
    %v3729 = vsel %vm465, %v3648, 0
    %3731 = vmatprep.subr.mxu0 0.0
    %3732 = vmatpush1.msra.mxu0 %v3726
    %3733 = vmatprep.subr.mxu0 0.0
    %3734 = vmatpush1.msra.mxu0 0.0
    %3735 = vmatprep.subr.mxu0 0.0
    %3736 = vmatpush1.msra.mxu0 0.0
    %3737 = vmatprep.subr.mxu0 0.0
    %3738 = vmatpush1.msra.mxu0 0.0
    %3739 = vmatprep.subr.mxu0 0.0
    %3740 = vmatpush1.msra.mxu0 0.0
    %3741 = vmatprep.subr.mxu0 0.0
    %3742 = vmatpush1.msra.mxu0 0.0
    %3743 = vmatprep.subr.mxu0 0.0
    %3744 = vmatpush1.msra.mxu0 0.0
    %3745 = vmatprep.subr.mxu0 0.0
    %3746 = vmatpush1.msra.mxu0 0.0
    %3747 = vmatprep.subr.mxu0 0.0
    %3748 = vmatpush1.msra.mxu0 0.0
    %3749 = vmatprep.subr.mxu0 0.0
    %3750 = vmatpush1.msra.mxu0 0.0
    %3751 = vmatprep.subr.mxu0 0.0
    %3752 = vmatpush1.msra.mxu0 0.0
    %3753 = vmatprep.subr.mxu0 0.0
    %3754 = vmatpush1.msra.mxu0 0.0
    %3755 = vmatprep.subr.mxu0 0.0
    %3756 = vmatpush1.msra.mxu0 0.0
    %3757 = vmatprep.subr.mxu0 0.0
    %3758 = vmatpush1.msra.mxu0 0.0
    %3759 = vmatprep.subr.mxu0 0.0
    %3760 = vmatpush1.msra.mxu0 0.0
    %3761 = vmatprep.subr.mxu0 0.0
    %3762 = vmatpush1.msra.mxu0 0.0
    %3763 = vmatprep.subr.mxu0 0.0
    %3764 = vmatpush1.msra.mxu0 0.0
    %3765 = vmatprep.subr.mxu0 0.0
    %3766 = vmatpush1.msra.mxu0 0.0
    %3767 = vmatprep.subr.mxu0 0.0
    %3768 = vmatpush1.msra.mxu0 0.0
    %3769 = vmatprep.subr.mxu0 0.0
    %3770 = vmatpush1.msra.mxu0 0.0
    %3771 = vmatprep.subr.mxu0 0.0
    %3772 = vmatpush1.msra.mxu0 0.0
    %3773 = vmatprep.subr.mxu0 0.0
    %3774 = vmatpush1.msra.mxu0 0.0
    %3775 = vmatprep.subr.mxu0 0.0
    %3776 = vmatpush1.msra.mxu0 0.0
    %3777 = vmatprep.subr.mxu0 0.0
    %3778 = vmatpush1.msra.mxu0 0.0
    %3779 = vmatprep.subr.mxu0 0.0
    %3780 = vmatpush1.msra.mxu0 0.0
    %3781 = vmatprep.subr.mxu0 0.0
    %3782 = vmatpush1.msra.mxu0 0.0
    %3783 = vmatprep.subr.mxu0 0.0
    %3784 = vmatpush1.msra.mxu0 0.0
    %3785 = vmatprep.subr.mxu0 0.0
    %3786 = vmatpush1.msra.mxu0 0.0
    %3787 = vmatprep.subr.mxu0 0.0
    %3788 = vmatpush1.msra.mxu0 0.0
    %3789 = vmatprep.subr.mxu0 0.0
    %3790 = vmatpush1.msra.mxu0 0.0
    %3791 = vmatprep.subr.mxu0 0.0
    %3792 = vmatpush1.msra.mxu0 0.0
    %3793 = vmatprep.subr.mxu0 0.0
    %3794 = vmatpush1.msra.mxu0 0.0
    %3795 = vmatprep.mubr.f32.mxu0 0.0
    %3796 = vmatmul.mubr.f32.gmra.mrb[0].mxu0 %v3729
    %v3797 = vpop.f32.mrb[0].mxu0
    %v3798 = vadd.f32 0.0, %v3797
    %v3799 = vpop.f32.mrb[0].mxu0
    %3800 = vdwg.mxu0
    %v3802 = vsel %vm465, %v3722, 0
    %v3805 = vsel %vm465, %v3798, 0
    %3807 = vmatprep.subr.mxu0 0.0
    %3808 = vmatpush1.msra.mxu0 %v2129
    %3809 = vmatprep.subr.mxu0 0.0
    %3810 = vmatpush1.msra.mxu0 0.0
    %3811 = vmatprep.subr.mxu0 0.0
    %3812 = vmatpush1.msra.mxu0 0.0
    %3813 = vmatprep.subr.mxu0 0.0
    %3814 = vmatpush1.msra.mxu0 0.0
    %3815 = vmatprep.subr.mxu0 0.0
    %3816 = vmatpush1.msra.mxu0 0.0
    %3817 = vmatprep.subr.mxu0 0.0
    %3818 = vmatpush1.msra.mxu0 0.0
    %3819 = vmatprep.subr.mxu0 0.0
    %3820 = vmatpush1.msra.mxu0 0.0
    %3821 = vmatprep.subr.mxu0 0.0
    %3822 = vmatpush1.msra.mxu0 0.0
    %3823 = vmatprep.subr.mxu0 0.0
    %3824 = vmatpush1.msra.mxu0 0.0
    %3825 = vmatprep.subr.mxu0 0.0
    %3826 = vmatpush1.msra.mxu0 0.0
    %3827 = vmatprep.subr.mxu0 0.0
    %3828 = vmatpush1.msra.mxu0 0.0
    %3829 = vmatprep.subr.mxu0 0.0
    %3830 = vmatpush1.msra.mxu0 0.0
    %3831 = vmatprep.subr.mxu0 0.0
    %3832 = vmatpush1.msra.mxu0 0.0
    %3833 = vmatprep.subr.mxu0 0.0
    %3834 = vmatpush1.msra.mxu0 0.0
    %3835 = vmatprep.subr.mxu0 0.0
    %3836 = vmatpush1.msra.mxu0 0.0
    %3837 = vmatprep.subr.mxu0 0.0
    %3838 = vmatpush1.msra.mxu0 0.0
    %3839 = vmatprep.subr.mxu0 0.0
    %3840 = vmatpush1.msra.mxu0 0.0
    %3841 = vmatprep.subr.mxu0 0.0
    %3842 = vmatpush1.msra.mxu0 0.0
    %3843 = vmatprep.subr.mxu0 0.0
    %3844 = vmatpush1.msra.mxu0 0.0
    %3845 = vmatprep.subr.mxu0 0.0
    %3846 = vmatpush1.msra.mxu0 0.0
    %3847 = vmatprep.subr.mxu0 0.0
    %3848 = vmatpush1.msra.mxu0 0.0
    %3849 = vmatprep.subr.mxu0 0.0
    %3850 = vmatpush1.msra.mxu0 0.0
    %3851 = vmatprep.subr.mxu0 0.0
    %3852 = vmatpush1.msra.mxu0 0.0
    %3853 = vmatprep.subr.mxu0 0.0
    %3854 = vmatpush1.msra.mxu0 0.0
    %3855 = vmatprep.subr.mxu0 0.0
    %3856 = vmatpush1.msra.mxu0 0.0
    %3857 = vmatprep.subr.mxu0 0.0
    %3858 = vmatpush1.msra.mxu0 0.0
    %3859 = vmatprep.subr.mxu0 0.0
    %3860 = vmatpush1.msra.mxu0 0.0
    %3861 = vmatprep.subr.mxu0 0.0
    %3862 = vmatpush1.msra.mxu0 0.0
    %3863 = vmatprep.subr.mxu0 0.0
    %3864 = vmatpush1.msra.mxu0 0.0
    %3865 = vmatprep.subr.mxu0 0.0
    %3866 = vmatpush1.msra.mxu0 0.0
    %3867 = vmatprep.subr.mxu0 0.0
    %3868 = vmatpush1.msra.mxu0 0.0
    %3869 = vmatprep.subr.mxu0 0.0
    %3870 = vmatpush1.msra.mxu0 0.0
    %3871 = vmatprep.mubr.f32.mxu0 0.0
    %3872 = vmatmul.mubr.f32.gmra.mrb[0].mxu0 %v3802
    %v3873 = vpop.f32.mrb[0].mxu0
    %v3874 = vadd.f32 0.0, %v3873
    %v3875 = vpop.f32.mrb[0].mxu0
    %3876 = vmatprep.mubr.f32.mxu0 0.0
    %3877 = vmatmul.mubr.f32.gmra.mrb[0].mxu0 %v3805
    %v3878 = vpop.f32.mrb[0].mxu0
    %v3879 = vadd.f32 0.0, %v3878
    %v3880 = vpop.f32.mrb[0].mxu0
    %3881 = vdwg.mxu0
    %v3882 = vadd.f32 %v3467, %v3874
    %v3883 = vadd.f32 %v3468, %v3879
    %v3884 = vld [vmem:[#allocation16] sm:$0xff]
    %v3885 = vld [vmem:[#allocation16 + $0x8] sm:$0xff]
    %v3886 = vld [vmem:[#allocation16 + $0x10] sm:$0xff]
    %v3887 = vld [vmem:[#allocation16 + $0x18] sm:$0xff]
    %v3888 = vld [vmem:[%s14] sm:$0x1]
    %v3890 = vlaneseq
    %v3891 = vshrl.u32 %v3890, 7
    %v3892 = vsub.s32 0, %v3891
    %v3893 = vrot.slane %v3888, %v3892
    %v3896 = vsel %vm275, %v3882, 0
    %v3899 = vsel %vm275, %v3883, 0
    %3901 = vmatprep.subr.mxu0 0.0
    %3902 = vmatpush1.msra.mxu0 %v3884
    %3903 = vmatprep.subr.mxu0 0.0
    %3904 = vmatpush1.msra.mxu0 %v3885
    %3905 = vmatprep.subr.mxu0 0.0
    %3906 = vmatpush1.msra.mxu0 %v3886
    %3907 = vmatprep.subr.mxu0 0.0
    %3908 = vmatpush1.msra.mxu0 %v3887
    %3909 = vmatprep.subr.mxu0 0.0
    %3910 = vmatpush1.msra.mxu0 0.0
    %3911 = vmatprep.subr.mxu0 0.0
    %3912 = vmatpush1.msra.mxu0 0.0
    %3913 = vmatprep.subr.mxu0 0.0
    %3914 = vmatpush1.msra.mxu0 0.0
    %3915 = vmatprep.subr.mxu0 0.0
    %3916 = vmatpush1.msra.mxu0 0.0
    %3917 = vmatprep.subr.mxu0 0.0
    %3918 = vmatpush1.msra.mxu0 0.0
    %3919 = vmatprep.subr.mxu0 0.0
    %3920 = vmatpush1.msra.mxu0 0.0
    %3921 = vmatprep.subr.mxu0 0.0
    %3922 = vmatpush1.msra.mxu0 0.0
    %3923 = vmatprep.subr.mxu0 0.0
    %3924 = vmatpush1.msra.mxu0 0.0
    %3925 = vmatprep.subr.mxu0 0.0
    %3926 = vmatpush1.msra.mxu0 0.0
    %3927 = vmatprep.subr.mxu0 0.0
    %3928 = vmatpush1.msra.mxu0 0.0
    %3929 = vmatprep.subr.mxu0 0.0
    %3930 = vmatpush1.msra.mxu0 0.0
    %3931 = vmatprep.subr.mxu0 0.0
    %3932 = vmatpush1.msra.mxu0 0.0
    %3933 = vmatprep.subr.mxu0 0.0
    %3934 = vmatpush1.msra.mxu0 0.0
    %3935 = vmatprep.subr.mxu0 0.0
    %3936 = vmatpush1.msra.mxu0 0.0
    %3937 = vmatprep.subr.mxu0 0.0
    %3938 = vmatpush1.msra.mxu0 0.0
    %3939 = vmatprep.subr.mxu0 0.0
    %3940 = vmatpush1.msra.mxu0 0.0
    %3941 = vmatprep.subr.mxu0 0.0
    %3942 = vmatpush1.msra.mxu0 0.0
    %3943 = vmatprep.subr.mxu0 0.0
    %3944 = vmatpush1.msra.mxu0 0.0
    %3945 = vmatprep.subr.mxu0 0.0
    %3946 = vmatpush1.msra.mxu0 0.0
    %3947 = vmatprep.subr.mxu0 0.0
    %3948 = vmatpush1.msra.mxu0 0.0
    %3949 = vmatprep.subr.mxu0 0.0
    %3950 = vmatpush1.msra.mxu0 0.0
    %3951 = vmatprep.subr.mxu0 0.0
    %3952 = vmatpush1.msra.mxu0 0.0
    %3953 = vmatprep.subr.mxu0 0.0
    %3954 = vmatpush1.msra.mxu0 0.0
    %3955 = vmatprep.subr.mxu0 0.0
    %3956 = vmatpush1.msra.mxu0 0.0
    %3957 = vmatprep.subr.mxu0 0.0
    %3958 = vmatpush1.msra.mxu0 0.0
    %3959 = vmatprep.subr.mxu0 0.0
    %3960 = vmatpush1.msra.mxu0 0.0
    %3961 = vmatprep.subr.mxu0 0.0
    %3962 = vmatpush1.msra.mxu0 0.0
    %3963 = vmatprep.subr.mxu0 0.0
    %3964 = vmatpush1.msra.mxu0 0.0
    %3965 = vmatprep.mubr.f32.mxu0 0.0
    %3966 = vmatmul.mubr.f32.gmra.mrb[0].mxu0 %v3896
    %v3967 = vpop.f32.mrb[0].mxu0
    %v3968 = vadd.f32 %v3893, %v3967
    %v3969 = vpop.f32.mrb[0].mxu0
    %3970 = vmatprep.mubr.f32.mxu0 0.0
    %3971 = vmatmul.mubr.f32.gmra.mrb[0].mxu0 %v3899
    %v3972 = vpop.f32.mrb[0].mxu0
    %v3973 = vadd.f32 %v3893, %v3972
    %v3974 = vpop.f32.mrb[0].mxu0
    %3975 = vdwg.mxu0
    %3977 = vrot.lane.b32.xlu0 %v3968, 96
    %v3978 = vpop.permute.xlu0 %3977
    %v3979 = vsel %vm275, %v3968, 0
    %v3981 = vsel %vm275, %v3978, 0
    %3983 = vmatprep.subr.mxu0 0.0
    %3984 = vmatpush1.xpose.msra.mxu0 %v3981
    %3985 = vmatprep.subr.mxu0 0.0
    %3986 = vmatpush1.xpose.msra.mxu0 0.0
    %3987 = vmatprep.subr.mxu0 0.0
    %3988 = vmatpush1.xpose.msra.mxu0 0.0
    %3989 = vmatprep.subr.mxu0 0.0
    %3990 = vmatpush1.xpose.msra.mxu0 0.0
    %3991 = vmatprep.subr.mxu0 0.0
    %3992 = vmatpush1.xpose.msra.mxu0 0.0
    %3993 = vmatprep.subr.mxu0 0.0
    %3994 = vmatpush1.xpose.msra.mxu0 0.0
    %3995 = vmatprep.subr.mxu0 0.0
    %3996 = vmatpush1.xpose.msra.mxu0 0.0
    %3997 = vmatprep.subr.mxu0 0.0
    %3998 = vmatpush1.xpose.msra.mxu0 0.0
    %3999 = vmatprep.subr.mxu0 0.0
    %4000 = vmatpush1.xpose.msra.mxu0 0.0
    %4001 = vmatprep.subr.mxu0 0.0
    %4002 = vmatpush1.xpose.msra.mxu0 0.0
    %4003 = vmatprep.subr.mxu0 0.0
    %4004 = vmatpush1.xpose.msra.mxu0 0.0
    %4005 = vmatprep.subr.mxu0 0.0
    %4006 = vmatpush1.xpose.msra.mxu0 0.0
    %4007 = vmatprep.subr.mxu0 0.0
    %4008 = vmatpush1.xpose.msra.mxu0 0.0
    %4009 = vmatprep.subr.mxu0 0.0
    %4010 = vmatpush1.xpose.msra.mxu0 0.0
    %4011 = vmatprep.subr.mxu0 0.0
    %4012 = vmatpush1.xpose.msra.mxu0 0.0
    %4013 = vmatprep.subr.mxu0 0.0
    %4014 = vmatpush1.xpose.msra.mxu0 0.0
    %4015 = vmatprep.subr.mxu0 0.0
    %4016 = vmatpush1.xpose.msra.mxu0 0.0
    %4017 = vmatprep.subr.mxu0 0.0
    %4018 = vmatpush1.xpose.msra.mxu0 0.0
    %4019 = vmatprep.subr.mxu0 0.0
    %4020 = vmatpush1.xpose.msra.mxu0 0.0
    %4021 = vmatprep.subr.mxu0 0.0
    %4022 = vmatpush1.xpose.msra.mxu0 0.0
    %4023 = vmatprep.subr.mxu0 0.0
    %4024 = vmatpush1.xpose.msra.mxu0 0.0
    %4025 = vmatprep.subr.mxu0 0.0
    %4026 = vmatpush1.xpose.msra.mxu0 0.0
    %4027 = vmatprep.subr.mxu0 0.0
    %4028 = vmatpush1.xpose.msra.mxu0 0.0
    %4029 = vmatprep.subr.mxu0 0.0
    %4030 = vmatpush1.xpose.msra.mxu0 0.0
    %4031 = vmatprep.subr.mxu0 0.0
    %4032 = vmatpush1.xpose.msra.mxu0 0.0
    %4033 = vmatprep.subr.mxu0 0.0
    %4034 = vmatpush1.xpose.msra.mxu0 0.0
    %4035 = vmatprep.subr.mxu0 0.0
    %4036 = vmatpush1.xpose.msra.mxu0 0.0
    %4037 = vmatprep.subr.mxu0 0.0
    %4038 = vmatpush1.xpose.msra.mxu0 0.0
    %4039 = vmatprep.subr.mxu0 0.0
    %4040 = vmatpush1.xpose.msra.mxu0 0.0
    %4041 = vmatprep.subr.mxu0 0.0
    %4042 = vmatpush1.xpose.msra.mxu0 0.0
    %4043 = vmatprep.subr.mxu0 0.0
    %4044 = vmatpush1.xpose.msra.mxu0 0.0
    %4045 = vmatprep.subr.mxu0 0.0
    %4046 = vmatpush1.xpose.msra.mxu0 0.0
    %4047 = vmatprep.mubr.f32.mxu0 0.0
    %4048 = vmatmul.mubr.f32.gmra.mrb[0].mxu0 %v3979
    %v4049 = vpop.f32.mrb[0].mxu0
    %v4050 = vadd.f32 0.0, %v4049
    %v4051 = vpop.f32.mrb[0].mxu0
    %4052 = vdwg.mxu0
    %4054 = vrot.lane.b32.xlu0 %v3973, 96
    %v4055 = vpop.permute.xlu0 %4054
    %v4056 = vsel %vm275, %v3973, 0
    %v4058 = vsel %vm275, %v4055, 0
    %4060 = vmatprep.subr.mxu0 0.0
    %4061 = vmatpush1.xpose.msra.mxu0 %v4058
    %4062 = vmatprep.subr.mxu0 0.0
    %4063 = vmatpush1.xpose.msra.mxu0 0.0
    %4064 = vmatprep.subr.mxu0 0.0
    %4065 = vmatpush1.xpose.msra.mxu0 0.0
    %4066 = vmatprep.subr.mxu0 0.0
    %4067 = vmatpush1.xpose.msra.mxu0 0.0
    %4068 = vmatprep.subr.mxu0 0.0
    %4069 = vmatpush1.xpose.msra.mxu0 0.0
    %4070 = vmatprep.subr.mxu0 0.0
    %4071 = vmatpush1.xpose.msra.mxu0 0.0
    %4072 = vmatprep.subr.mxu0 0.0
    %4073 = vmatpush1.xpose.msra.mxu0 0.0
    %4074 = vmatprep.subr.mxu0 0.0
    %4075 = vmatpush1.xpose.msra.mxu0 0.0
    %4076 = vmatprep.subr.mxu0 0.0
    %4077 = vmatpush1.xpose.msra.mxu0 0.0
    %4078 = vmatprep.subr.mxu0 0.0
    %4079 = vmatpush1.xpose.msra.mxu0 0.0
    %4080 = vmatprep.subr.mxu0 0.0
    %4081 = vmatpush1.xpose.msra.mxu0 0.0
    %4082 = vmatprep.subr.mxu0 0.0
    %4083 = vmatpush1.xpose.msra.mxu0 0.0
    %4084 = vmatprep.subr.mxu0 0.0
    %4085 = vmatpush1.xpose.msra.mxu0 0.0
    %4086 = vmatprep.subr.mxu0 0.0
    %4087 = vmatpush1.xpose.msra.mxu0 0.0
    %4088 = vmatprep.subr.mxu0 0.0
    %4089 = vmatpush1.xpose.msra.mxu0 0.0
    %4090 = vmatprep.subr.mxu0 0.0
    %4091 = vmatpush1.xpose.msra.mxu0 0.0
    %4092 = vmatprep.subr.mxu0 0.0
    %4093 = vmatpush1.xpose.msra.mxu0 0.0
    %4094 = vmatprep.subr.mxu0 0.0
    %4095 = vmatpush1.xpose.msra.mxu0 0.0
    %4096 = vmatprep.subr.mxu0 0.0
    %4097 = vmatpush1.xpose.msra.mxu0 0.0
    %4098 = vmatprep.subr.mxu0 0.0
    %4099 = vmatpush1.xpose.msra.mxu0 0.0
    %4100 = vmatprep.subr.mxu0 0.0
    %4101 = vmatpush1.xpose.msra.mxu0 0.0
    %4102 = vmatprep.subr.mxu0 0.0
    %4103 = vmatpush1.xpose.msra.mxu0 0.0
    %4104 = vmatprep.subr.mxu0 0.0
    %4105 = vmatpush1.xpose.msra.mxu0 0.0
    %4106 = vmatprep.subr.mxu0 0.0
    %4107 = vmatpush1.xpose.msra.mxu0 0.0
    %4108 = vmatprep.subr.mxu0 0.0
    %4109 = vmatpush1.xpose.msra.mxu0 0.0
    %4110 = vmatprep.subr.mxu0 0.0
    %4111 = vmatpush1.xpose.msra.mxu0 0.0
    %4112 = vmatprep.subr.mxu0 0.0
    %4113 = vmatpush1.xpose.msra.mxu0 0.0
    %4114 = vmatprep.subr.mxu0 0.0
    %4115 = vmatpush1.xpose.msra.mxu0 0.0
    %4116 = vmatprep.subr.mxu0 0.0
    %4117 = vmatpush1.xpose.msra.mxu0 0.0
    %4118 = vmatprep.subr.mxu0 0.0
    %4119 = vmatpush1.xpose.msra.mxu0 0.0
    %4120 = vmatprep.subr.mxu0 0.0
    %4121 = vmatpush1.xpose.msra.mxu0 0.0
    %4122 = vmatprep.subr.mxu0 0.0
    %4123 = vmatpush1.xpose.msra.mxu0 0.0
    %4124 = vmatprep.mubr.f32.mxu0 0.0
    %4125 = vmatmul.mubr.f32.gmra.mrb[0].mxu0 %v4056
    %v4126 = vpop.f32.mrb[0].mxu0
    %v4127 = vadd.f32 0.0, %v4126
    %v4128 = vpop.f32.mrb[0].mxu0
    %4129 = vdwg.mxu0
    %4130 = vxpose.xlu0.b32.start [1/16] %v4050, 128
    %4131 = vxpose.xlu0.b32.cont [2/16] 0.0, 128
    %4132 = vxpose.xlu0.b32.cont [3/16] 0.0, 128
    %4133 = vxpose.xlu0.b32.cont [4/16] 0.0, 128
    %4134 = vxpose.xlu0.b32.cont [5/16] 0.0, 128
    %4135 = vxpose.xlu0.b32.cont [6/16] 0.0, 128
    %4136 = vxpose.xlu0.b32.cont [7/16] 0.0, 128
    %4137 = vxpose.xlu0.b32.cont [8/16] 0.0, 128
    %4138 = vxpose.xlu0.b32.cont [9/16] 0.0, 128
    %4139 = vxpose.xlu0.b32.cont [10/16] 0.0, 128
    %4140 = vxpose.xlu0.b32.cont [11/16] 0.0, 128
    %4141 = vxpose.xlu0.b32.cont [12/16] 0.0, 128
    %4142 = vxpose.xlu0.b32.cont [13/16] 0.0, 128
    %4143 = vxpose.xlu0.b32.cont [14/16] 0.0, 128
    %4144 = vxpose.xlu0.b32.cont [15/16] 0.0, 128
    %4145 = vxpose.xlu0.b32.end [16/16] 0.0, 128
    %v4146 = vpop.trf.xlu0
    %v4147 = vpop.trf.xlu0
    %v4148 = vpop.trf.xlu0
    %v4149 = vpop.trf.xlu0
    %v4150 = vpop.trf.xlu0
    %v4151 = vpop.trf.xlu0
    %v4152 = vpop.trf.xlu0
    %v4153 = vpop.trf.xlu0
    %v4154 = vpop.trf.xlu0
    %v4155 = vpop.trf.xlu0
    %v4156 = vpop.trf.xlu0
    %v4157 = vpop.trf.xlu0
    %v4158 = vpop.trf.xlu0
    %v4159 = vpop.trf.xlu0
    %v4160 = vpop.trf.xlu0
    %v4161 = vpop.trf.xlu0
    %v4162 = vadd.f32 %v4050, %v4146
    %v4163 = vmul.f32 %v4162, 0.088388346
    %4164 = vxpose.xlu0.b32.start [1/16] %v4127, 128
    %4165 = vxpose.xlu0.b32.cont [2/16] 0.0, 128
    %4166 = vxpose.xlu0.b32.cont [3/16] 0.0, 128
    %4167 = vxpose.xlu0.b32.cont [4/16] 0.0, 128
    %4168 = vxpose.xlu0.b32.cont [5/16] 0.0, 128
    %4169 = vxpose.xlu0.b32.cont [6/16] 0.0, 128
    %4170 = vxpose.xlu0.b32.cont [7/16] 0.0, 128
    %4171 = vxpose.xlu0.b32.cont [8/16] 0.0, 128
    %4172 = vxpose.xlu0.b32.cont [9/16] 0.0, 128
    %4173 = vxpose.xlu0.b32.cont [10/16] 0.0, 128
    %4174 = vxpose.xlu0.b32.cont [11/16] 0.0, 128
    %4175 = vxpose.xlu0.b32.cont [12/16] 0.0, 128
    %4176 = vxpose.xlu0.b32.cont [13/16] 0.0, 128
    %4177 = vxpose.xlu0.b32.cont [14/16] 0.0, 128
    %4178 = vxpose.xlu0.b32.cont [15/16] 0.0, 128
    %4179 = vxpose.xlu0.b32.end [16/16] 0.0, 128
    %v4180 = vpop.trf.xlu0
    %v4181 = vpop.trf.xlu0
    %v4182 = vpop.trf.xlu0
    %v4183 = vpop.trf.xlu0
    %v4184 = vpop.trf.xlu0
    %v4185 = vpop.trf.xlu0
    %v4186 = vpop.trf.xlu0
    %v4187 = vpop.trf.xlu0
    %v4188 = vpop.trf.xlu0
    %v4189 = vpop.trf.xlu0
    %v4190 = vpop.trf.xlu0
    %v4191 = vpop.trf.xlu0
    %v4192 = vpop.trf.xlu0
    %v4193 = vpop.trf.xlu0
    %v4194 = vpop.trf.xlu0
    %v4195 = vpop.trf.xlu0
    %v4196 = vadd.f32 %v4127, %v4180
    %v4197 = vmul.f32 %v4196, 0.088388346
    %4199 = vrot.lane.b32.xlu0 %v4197, 8
    %v4200 = vpop.permute.xlu0 %4199
    %v4202 = vsel %vm465, %v4163, %v4200
    %4203 = vst.msk [vmem:[#allocation17] sm:$0xff] %vm180, %v4202
    // Predicated region
    $region98: #{tpu_custom_call.1} parent=1 // pred_check
      _
    $region99: #{tpu_custom_call.1} parent=1 // pred_check_branch
      %4205 = sbr.rel (0) target = $region101
    $region100: #{tpu_custom_call.1} parent=1 // pred_region
      %s4207 = ssub.s32 128, 128
      %4208 = vsyncadd [#allocation4], %s4207
      %s4210 = sshll.u32 [#allocation17], 4
      %s4211 = int_to_ptr.vmem [resolvable:$true] %s4210
      %4213 = dma.vmem_to_hbm [thread:$0]  %s4211, 128, %s15, [#allocation4]
    $region101: #{tpu_custom_call.1} parent=1 // pred_fallthru
      _
    // Predicated region
    $region102: #{tpu_custom_call.1} parent=1 // pred_check
      _
    $region103: #{tpu_custom_call.1} parent=1 // pred_check_branch
      %4215 = sbr.rel (0) target = $region105
    $region104: #{tpu_custom_call.1} parent=1 // pred_region
      %4216 = dma.done [#allocation4], 128
    $region105: #{tpu_custom_call.1} parent=1 // pred_fallthru
      _
    %4217 = vsyncpa [#allocation3], 1
    %4218 = vsyncpa [#allocation6], 1
    %4219 = vsyncpa [#allocation9], 1
    %4220 = vsyncpa [#allocation12], 1
    %4221 = vsyncpa [#allocation15], 1
    %4222 = vsyncpa [#allocation4], 1

</llo_original>
